<compile_context>
chip_gen: v6e
topology: v6e:2x2x1
jax: 0.10.0
libtpu: 0.0.40
codegen_flags: <defaults>
</compile_context>

<pallas_src>
import functools

import jax
import jax.numpy as jnp
from jax.experimental import pallas as pl
from jax.experimental.pallas import tpu as pltpu

EPS_BALL = 1e-5    # hype PoincareManifold renorm eps (maxnorm = 1 - eps)
EPS_TANH = 1e-7    # artanh domain clamp
EPS_MIN = 1e-15    # norm clamps (geoopt clamp_min)
# 48 MiB scoped VMEM: safe on v7x (64 MiB physical) and leaves big headroom on
# v5e/v6e (128 MiB). Per-generation tuning: raise toward ~96 MiB on v6e/v5e
# together with a larger batch_tile; keep <=56 MiB and re-derive tiles on v7x.
VMEM_LIMIT = 48 * 1024 * 1024


# ---------------- in-kernel hyperbolic math helpers (c = 1) -----------------

def _row_norm(x):
    return jnp.sqrt(jnp.sum(x * x, axis=-1, keepdims=True))


def _artanh(x):
    # operates on (rows, 1) norms only, so the divide is cheap and exact.
    x = jnp.clip(x, -1.0 + EPS_TANH, 1.0 - EPS_TANH)
    return 0.5 * jnp.log((1.0 + x) / (1.0 - x))


def _project(x, xn):
    """hype manifold.normalize / geoopt project with a threaded norm.

    Returns (projected x, its exact row norm min(xn, 1-eps))."""
    maxn = 1.0 - EPS_BALL
    scale = jnp.where(xn > maxn, maxn / jnp.maximum(xn, EPS_MIN), 1.0)
    return x * scale, jnp.minimum(xn, maxn)


def _expmap0(u, un):
    """expmap0 with a threaded input norm; output norm is tanh(un) exactly."""
    t = jnp.tanh(un)
    return u * (t / jnp.maximum(un, EPS_MIN)), t


def _mobius_add(x, y, x2, y2, xy):
    """mobius_add with all three inner products supplied by the caller."""
    num = (1.0 + 2.0 * xy + y2) * x + (1.0 - x2) * y
    den = 1.0 + 2.0 * xy + x2 * y2
    return num * (1.0 / jnp.maximum(den, EPS_MIN))   # narrow exact reciprocal


# ------------------------------ fused kernel --------------------------------

def _fused_kernel(e_ref, w_ref, b_ref, b2_ref, r_ref, r2_ref, out_ref, *,
                  num_layers, n_cols):
    rows, d = e_ref.shape
    bt = rows // n_cols                       # batches handled by this block

    # ---------------- transform stage (rows = bt * n_cols points) ----------
    x = e_ref[...].astype(jnp.float32)

    xn = _row_norm(x)                         # only unavoidable initial reduce
    x, xn = _project(x, xn)                   # manifold.normalize (no_grad)
    x, xn = _expmap0(x, xn)                   # emb_vec_choice != 'poincareglove'

    for l in range(num_layers):               # static unroll over MobiusLinear
        w_t = w_ref[l]                        # (d, d) pre-transposed, bf16/f32
        b = b_ref[l]                          # (1, d) f32 bias point
        b2 = b2_ref[l]                        # (1, 1) precomputed b.b

        # mobius_matvec -- x_norm threaded from the previous stage (no reduce)
        x_norm = jnp.maximum(xn, EPS_MIN)
        mx = jnp.dot(x.astype(w_t.dtype), w_t,
                     preferred_element_type=jnp.float32)
        mxn_raw = _row_norm(mx)               # reduce 1/layer
        mxn = jnp.maximum(mxn_raw, EPS_MIN)
        t = jnp.tanh(mxn / x_norm * _artanh(x_norm))      # (rows, 1)
        x = jnp.where(mxn_raw == 0.0, 0.0, t / mxn) * mx
        xn = jnp.where(mxn_raw == 0.0, 0.0, t)            # ||x|| == t exactly

        # mobius_add bias -- x2 threaded, y2 precomputed, only xy reduced
        xy = jnp.sum(x * b, axis=-1, keepdims=True)       # reduce 2/layer
        x = _mobius_add(x, b, xn * xn, b2, xy)

        # nonlin: expmap0(tanh(logmap0(x))), then project back into the ball
        n = _row_norm(x)                                   # reduce 3/layer
        v = jnp.tanh(x * (_artanh(n) / jnp.maximum(n, EPS_MIN)))
        vn = _row_norm(v)                                  # reduce 4/layer
        x, xn = _expmap0(v, vn)
        x, xn = _project(x, xn)

    # ---------------- energy stage (stays in VMEM / vregs) -----------------
    # Layout note: for n_cols == 8 this reshape is a pure re-tiling no-op.
    et = x.reshape(bt, n_cols, d)             # (bt, N, d) transformed points
    e0 = et[:, 0:1, :]                        # source point (torch narrow(1,0,1))
    r = r_ref[...]                            # (1, d) relation embedding
    r2 = r2_ref[...]                          # (1, 1) precomputed r.r

    x2 = jnp.sum(e0 * e0, axis=-1, keepdims=True)          # (bt,1,1) cheap
    xy = jnp.sum(e0 * r, axis=-1, keepdims=True)           # (bt,1,1) cheap
    s = _mobius_add(e0, r, x2, r2, xy)                     # rel_emb == True

    su = jnp.sum(s * s, axis=-1)                           # (bt, 1)
    so = jnp.sum(et * et, axis=-1)                         # (bt, N)
    diff = s - et
    sq = jnp.sum(diff * diff, axis=-1)                     # (bt, N) main reduce
    den = jnp.maximum((1.0 - su) * (1.0 - so), EPS_MIN)
    zm1 = jnp.maximum(2.0 * sq * pl.reciprocal(den, approx=True), EPS_TANH)
    # arccosh(1 + zm1) without the z*z - 1 cancellation near zero distance.
    out_ref[...] = jnp.log((1.0 + zm1) + jnp.sqrt(zm1 * (zm1 + 2.0)))


# ------------------------------- wrappers ------------------------------------

def _round_up(x, m):
    return (x + m - 1) // m * m


def preprocess_params(weights, biases, r_emb, matmul_dtype=jnp.bfloat16):
    """One-time parameter prep (hoisted out of the per-call forward).

    weights: (L, D, D) torch-Linear-convention MobiusLinear weights
    biases:  (L, 1, D) bias points on the ball
    r_emb:   (1, D) relation embedding point
    matmul_dtype: MXU operand dtype; pass jnp.float32 for an exact fallback.
    """
    weights_t = jnp.swapaxes(weights, 1, 2).astype(matmul_dtype)   # (L, D, D)
    biases = biases.astype(jnp.float32)
    r_emb = r_emb.astype(jnp.float32)
    b2 = jnp.sum(biases * biases, axis=-1, keepdims=True)          # (L, 1, 1)
    r2 = jnp.sum(r_emb * r_emb, axis=-1, keepdims=True)            # (1, 1)
    return weights_t, biases, b2, r_emb, r2


def energy_function_forward(lt, inputs, params, *, batch_tile=64):
    """Forward pass of EnergyFunction (design='transformation', rel_emb=True).

    lt:      (num_objects, D) f32 embedding table
    inputs:  (B, N) int32 indices; column 0 = source, columns 1.. = candidates
    params:  output of preprocess_params()
    returns: (B, N-1) f32 energies (Poincare distances)
    """
    weights_t, biases, b2, r_emb, r2 = params
    B, N = inputs.shape
    D = lt.shape[1]
    L = weights_t.shape[0]
    lt = lt.astype(jnp.float32)

    # Batch tiling: bt batches (= bt*N transformed rows) per grid step. bt is
    # kept a multiple of 8 so every block is sublane aligned; padded batches
    # reuse index 0 and are discarded after the kernel.
    bt = max(8, min(batch_tile, _round_up(B, 8)))
    bt = _round_up(bt, 8)
    B_pad = _round_up(B, bt)
    rows = bt * N

    idx = jnp.zeros((B_pad * N,), jnp.int32).at[:B * N].set(
        inputs.reshape(-1).astype(jnp.int32))
    e_flat = lt[idx]                          # (B_pad*N, D) gather (XLA glue)

    fused = pl.pallas_call(
        functools.partial(_fused_kernel, num_layers=L, n_cols=N),
        out_shape=jax.ShapeDtypeStruct((B_pad, N), jnp.float32),
        grid=(B_pad // bt,),
        in_specs=[
            pl.BlockSpec((rows, D), lambda i: (i, 0)),
            pl.BlockSpec((L, D, D), lambda i: (0, 0, 0)),
            pl.BlockSpec((L, 1, D), lambda i: (0, 0, 0)),
            pl.BlockSpec((L, 1, 1), lambda i: (0, 0, 0)),
            pl.BlockSpec((1, D), lambda i: (0, 0)),
            pl.BlockSpec((1, 1), lambda i: (0, 0)),
        ],
        out_specs=pl.BlockSpec((bt, N), lambda i: (i, 0)),
        compiler_params=pltpu.CompilerParams(
            dimension_semantics=("parallel",),
            vmem_limit_bytes=VMEM_LIMIT),
    )
    out = fused(e_flat, weights_t, biases, b2, r_emb, r2)
    return out[:B, 1:]                        # drop pad rows + the self column


# --------------------------------- main ---------------------------------------

if __name__ == "__main__":
    key = jax.random.PRNGKey(0)
    B, N = 2, 8              # 1 source + 7 candidate objects per example
    nobjects, dim = 64, 32   # size, dim
    num_layers = 2           # design_config['num_linear_layers']

    k_lt, k_w, k_b, k_idx = jax.random.split(key, 4)

    # hype-style embedding init: small uniform values inside the ball.
    lt = jax.random.uniform(k_lt, (nobjects, dim), jnp.float32, -1e-3, 1e-3)

    # MobiusLinear params (deterministic synthetic init, Linear-like scale).
    weights = jax.random.uniform(
        k_w, (num_layers, dim, dim), jnp.float32, -1.0, 1.0) / jnp.sqrt(dim)
    b_tan = jax.random.uniform(
        k_b, (num_layers, 1, dim), jnp.float32, -1e-2, 1e-2)
    bn = jnp.maximum(jnp.linalg.norm(b_tan, axis=-1, keepdims=True), EPS_MIN)
    biases = jnp.tanh(bn) * b_tan / bn      # expmap0 of tangent init

    # r_emb = expmap0(zeros) = zeros, exactly as in the module's __init__.
    r_emb = jnp.zeros((1, dim), jnp.float32)

    inputs = jax.random.randint(k_idx, (B, N), 0, nobjects, dtype=jnp.int32)

    params = preprocess_params(weights, biases, r_emb)   # one-time prep
    out = energy_function_forward(lt, inputs, params)
    out = jax.block_until_ready(out)
    assert out.shape == (B, N - 1) and out.dtype == jnp.float32
    assert bool(jnp.all(jnp.isfinite(out)))
    print("KERNEL_OK")
</pallas_src>

<mosaic_0001>
module attributes {stable_mosaic.version = 11 : i64} {
  func.func @_fused_kernel(%arg0: i32, %arg1: memref<64x32xf32, #tpu.memory_space<vmem>>, %arg2: memref<2x32x32xbf16, #tpu.memory_space<vmem>>, %arg3: memref<2x1x32xf32, #tpu.memory_space<vmem>>, %arg4: memref<2x1x1xf32, #tpu.memory_space<vmem>>, %arg5: memref<1x32xf32, #tpu.memory_space<vmem>>, %arg6: memref<1x1xf32, #tpu.memory_space<vmem>>, %arg7: memref<8x8xf32, #tpu.memory_space<vmem>>) attributes {dimension_semantics = [#tpu.dimension_semantics<parallel>], iteration_bounds = array<i64: 1>, scalar_prefetch = 0 : i64, scratch_operands = 0 : i64, tpu.core_type = #tpu.core_type<tc>, window_params = [{transform_indices = @transform_0, window_bounds = array<i64: 64, 32>}, {pipeline_mode = #tpu.pipeline_mode<synchronous>, transform_indices = @transform_1, window_bounds = array<i64: 2, 32, 32>}, {pipeline_mode = #tpu.pipeline_mode<synchronous>, transform_indices = @transform_2, window_bounds = array<i64: 2, 1, 32>}, {pipeline_mode = #tpu.pipeline_mode<synchronous>, transform_indices = @transform_3, window_bounds = array<i64: 2, 1, 1>}, {pipeline_mode = #tpu.pipeline_mode<synchronous>, transform_indices = @transform_4, window_bounds = array<i64: 1, 32>}, {pipeline_mode = #tpu.pipeline_mode<synchronous>, transform_indices = @transform_5, window_bounds = array<i64: 1, 1>}, {transform_indices = @transform_6, window_bounds = array<i64: 8, 8>}]} {
    %c0 = arith.constant 0 : index
    %c0_0 = arith.constant 0 : index
    %0 = vector.load %arg1[%c0, %c0_0] : memref<64x32xf32, #tpu.memory_space<vmem>>, vector<64x32xf32>
    %1 = arith.mulf %0, %0 : vector<64x32xf32>
    %cst = arith.constant dense<0.000000e+00> : vector<64xf32>
    %2 = vector.multi_reduction <add>, %1, %cst [1] : vector<64x32xf32> to vector<64xf32>
    %3 = vector.shape_cast %2 : vector<64xf32> to vector<64x1xf32>
    %4 = math.sqrt %3 : vector<64x1xf32>
    %cst_1 = arith.constant 0.999989986 : f32
    %5 = vector.broadcast %cst_1 : f32 to vector<64x1xf32>
    %6 = arith.cmpf ogt, %4, %5 : vector<64x1xf32>
    %cst_2 = arith.constant 1.000000e-15 : f32
    %7 = vector.broadcast %cst_2 : f32 to vector<64x1xf32>
    %8 = arith.maximumf %4, %7 : vector<64x1xf32>
    %cst_3 = arith.constant 0.999989986 : f32
    %9 = vector.broadcast %cst_3 : f32 to vector<64x1xf32>
    %10 = arith.divf %9, %8 : vector<64x1xf32>
    %cst_4 = arith.constant 1.000000e+00 : f32
    %11 = vector.broadcast %cst_4 : f32 to vector<64x1xf32>
    %12 = arith.select %6, %10, %11 : vector<64x1xi1>, vector<64x1xf32>
    %13 = vector.broadcast %12 : vector<64x1xf32> to vector<64x32xf32>
    %14 = arith.mulf %0, %13 : vector<64x32xf32>
    %cst_5 = arith.constant 0.999989986 : f32
    %15 = vector.broadcast %cst_5 : f32 to vector<64x1xf32>
    %16 = arith.minimumf %4, %15 : vector<64x1xf32>
    %17 = math.tanh %16 : vector<64x1xf32>
    %cst_6 = arith.constant 1.000000e-15 : f32
    %18 = vector.broadcast %cst_6 : f32 to vector<64x1xf32>
    %19 = arith.maximumf %16, %18 : vector<64x1xf32>
    %20 = arith.divf %17, %19 : vector<64x1xf32>
    %21 = vector.broadcast %20 : vector<64x1xf32> to vector<64x32xf32>
    %22 = arith.mulf %14, %21 : vector<64x32xf32>
    %c0_7 = arith.constant 0 : index
    %c0_8 = arith.constant 0 : index
    %c0_9 = arith.constant 0 : index
    %23 = vector.load %arg2[%c0_7, %c0_8, %c0_9] : memref<2x32x32xbf16, #tpu.memory_space<vmem>>, vector<1x32x32xbf16>
    %24 = vector.shape_cast %23 : vector<1x32x32xbf16> to vector<32x32xbf16>
    %c0_10 = arith.constant 0 : index
    %c0_11 = arith.constant 0 : index
    %c0_12 = arith.constant 0 : index
    %25 = vector.load %arg3[%c0_10, %c0_11, %c0_12] : memref<2x1x32xf32, #tpu.memory_space<vmem>>, vector<1x1x32xf32>
    %26 = vector.shape_cast %25 : vector<1x1x32xf32> to vector<1x32xf32>
    %c0_13 = arith.constant 0 : index
    %c0_14 = arith.constant 0 : index
    %c0_15 = arith.constant 0 : index
    %27 = vector.load %arg4[%c0_13, %c0_14, %c0_15] : memref<2x1x1xf32, #tpu.memory_space<vmem>>, vector<1x1x1xf32>
    %28 = vector.shape_cast %27 : vector<1x1x1xf32> to vector<1x1xf32>
    %cst_16 = arith.constant 1.000000e-15 : f32
    %29 = vector.broadcast %cst_16 : f32 to vector<64x1xf32>
    %30 = arith.maximumf %17, %29 : vector<64x1xf32>
    %31 = arith.truncf %22 : vector<64x32xf32> to vector<64x32xbf16>
    %cst_17 = arith.constant dense<0.000000e+00> : vector<64x32xf32>
    %32 = tpu.matmul %31, %24, %cst_17 {dimension_numbers = #tpu.dot_dimension_numbers<[1], [0], [0], [1], [0, 0, 1, 1], [], []>} : vector<64x32xbf16>, vector<32x32xbf16>, vector<64x32xf32> -> vector<64x32xf32>
    %33 = arith.mulf %32, %32 : vector<64x32xf32>
    %cst_18 = arith.constant dense<0.000000e+00> : vector<64xf32>
    %34 = vector.multi_reduction <add>, %33, %cst_18 [1] : vector<64x32xf32> to vector<64xf32>
    %35 = vector.shape_cast %34 : vector<64xf32> to vector<64x1xf32>
    %36 = math.sqrt %35 : vector<64x1xf32>
    %cst_19 = arith.constant 1.000000e-15 : f32
    %37 = vector.broadcast %cst_19 : f32 to vector<64x1xf32>
    %38 = arith.maximumf %36, %37 : vector<64x1xf32>
    %39 = arith.divf %38, %30 : vector<64x1xf32>
    %cst_20 = arith.constant -0.99999988 : f32
    %cst_21 = arith.constant 0.99999988 : f32
    %40 = vector.broadcast %cst_20 : f32 to vector<64x1xf32>
    %41 = arith.maximumf %40, %30 : vector<64x1xf32>
    %42 = vector.broadcast %cst_21 : f32 to vector<64x1xf32>
    %43 = arith.minimumf %42, %41 : vector<64x1xf32>
    %cst_22 = arith.constant 1.000000e+00 : f32
    %44 = vector.broadcast %cst_22 : f32 to vector<64x1xf32>
    %45 = arith.addf %44, %43 : vector<64x1xf32>
    %cst_23 = arith.constant 1.000000e+00 : f32
    %46 = vector.broadcast %cst_23 : f32 to vector<64x1xf32>
    %47 = arith.subf %46, %43 : vector<64x1xf32>
    %48 = arith.divf %45, %47 : vector<64x1xf32>
    %49 = math.log %48 : vector<64x1xf32>
    %cst_24 = arith.constant 5.000000e-01 : f32
    %50 = vector.broadcast %cst_24 : f32 to vector<64x1xf32>
    %51 = arith.mulf %50, %49 : vector<64x1xf32>
    %52 = arith.mulf %39, %51 : vector<64x1xf32>
    %53 = math.tanh %52 : vector<64x1xf32>
    %cst_25 = arith.constant 0.000000e+00 : f32
    %54 = vector.broadcast %cst_25 : f32 to vector<64x1xf32>
    %55 = arith.cmpf oeq, %36, %54 : vector<64x1xf32>
    %56 = arith.divf %53, %38 : vector<64x1xf32>
    %cst_26 = arith.constant 0.000000e+00 : f32
    %57 = vector.broadcast %cst_26 : f32 to vector<64x1xf32>
    %58 = arith.select %55, %57, %56 : vector<64x1xi1>, vector<64x1xf32>
    %59 = vector.broadcast %58 : vector<64x1xf32> to vector<64x32xf32>
    %60 = arith.mulf %59, %32 : vector<64x32xf32>
    %cst_27 = arith.constant 0.000000e+00 : f32
    %61 = vector.broadcast %cst_27 : f32 to vector<64x1xf32>
    %62 = arith.cmpf oeq, %36, %61 : vector<64x1xf32>
    %cst_28 = arith.constant 0.000000e+00 : f32
    %63 = vector.broadcast %cst_28 : f32 to vector<64x1xf32>
    %64 = arith.select %62, %63, %53 : vector<64x1xi1>, vector<64x1xf32>
    %65 = vector.broadcast %26 : vector<1x32xf32> to vector<64x32xf32>
    %66 = arith.mulf %60, %65 : vector<64x32xf32>
    %cst_29 = arith.constant dense<0.000000e+00> : vector<64xf32>
    %67 = vector.multi_reduction <add>, %66, %cst_29 [1] : vector<64x32xf32> to vector<64xf32>
    %68 = vector.shape_cast %67 : vector<64xf32> to vector<64x1xf32>
    %69 = arith.mulf %64, %64 : vector<64x1xf32>
    %cst_30 = arith.constant 2.000000e+00 : f32
    %70 = vector.broadcast %cst_30 : f32 to vector<64x1xf32>
    %71 = arith.mulf %70, %68 : vector<64x1xf32>
    %cst_31 = arith.constant 1.000000e+00 : f32
    %72 = vector.broadcast %cst_31 : f32 to vector<64x1xf32>
    %73 = arith.addf %72, %71 : vector<64x1xf32>
    %74 = vector.broadcast %28 : vector<1x1xf32> to vector<64x1xf32>
    %75 = arith.addf %73, %74 : vector<64x1xf32>
    %76 = vector.broadcast %75 : vector<64x1xf32> to vector<64x32xf32>
    %77 = arith.mulf %76, %60 : vector<64x32xf32>
    %cst_32 = arith.constant 1.000000e+00 : f32
    %78 = vector.broadcast %cst_32 : f32 to vector<64x1xf32>
    %79 = arith.subf %78, %69 : vector<64x1xf32>
    %80 = vector.broadcast %79 : vector<64x1xf32> to vector<64x32xf32>
    %81 = vector.broadcast %26 : vector<1x32xf32> to vector<64x32xf32>
    %82 = arith.mulf %80, %81 : vector<64x32xf32>
    %83 = arith.addf %77, %82 : vector<64x32xf32>
    %cst_33 = arith.constant 2.000000e+00 : f32
    %84 = vector.broadcast %cst_33 : f32 to vector<64x1xf32>
    %85 = arith.mulf %84, %68 : vector<64x1xf32>
    %cst_34 = arith.constant 1.000000e+00 : f32
    %86 = vector.broadcast %cst_34 : f32 to vector<64x1xf32>
    %87 = arith.addf %86, %85 : vector<64x1xf32>
    %88 = vector.broadcast %28 : vector<1x1xf32> to vector<64x1xf32>
    %89 = arith.mulf %69, %88 : vector<64x1xf32>
    %90 = arith.addf %87, %89 : vector<64x1xf32>
    %cst_35 = arith.constant 1.000000e-15 : f32
    %91 = vector.broadcast %cst_35 : f32 to vector<64x1xf32>
    %92 = arith.maximumf %90, %91 : vector<64x1xf32>
    %cst_36 = arith.constant 1.000000e+00 : f32
    %93 = vector.broadcast %cst_36 : f32 to vector<64x1xf32>
    %94 = arith.divf %93, %92 : vector<64x1xf32>
    %95 = vector.broadcast %94 : vector<64x1xf32> to vector<64x32xf32>
    %96 = arith.mulf %83, %95 : vector<64x32xf32>
    %97 = arith.mulf %96, %96 : vector<64x32xf32>
    %cst_37 = arith.constant dense<0.000000e+00> : vector<64xf32>
    %98 = vector.multi_reduction <add>, %97, %cst_37 [1] : vector<64x32xf32> to vector<64xf32>
    %99 = vector.shape_cast %98 : vector<64xf32> to vector<64x1xf32>
    %100 = math.sqrt %99 : vector<64x1xf32>
    %cst_38 = arith.constant -0.99999988 : f32
    %cst_39 = arith.constant 0.99999988 : f32
    %101 = vector.broadcast %cst_38 : f32 to vector<64x1xf32>
    %102 = arith.maximumf %101, %100 : vector<64x1xf32>
    %103 = vector.broadcast %cst_39 : f32 to vector<64x1xf32>
    %104 = arith.minimumf %103, %102 : vector<64x1xf32>
    %cst_40 = arith.constant 1.000000e+00 : f32
    %105 = vector.broadcast %cst_40 : f32 to vector<64x1xf32>
    %106 = arith.addf %105, %104 : vector<64x1xf32>
    %cst_41 = arith.constant 1.000000e+00 : f32
    %107 = vector.broadcast %cst_41 : f32 to vector<64x1xf32>
    %108 = arith.subf %107, %104 : vector<64x1xf32>
    %109 = arith.divf %106, %108 : vector<64x1xf32>
    %110 = math.log %109 : vector<64x1xf32>
    %cst_42 = arith.constant 5.000000e-01 : f32
    %111 = vector.broadcast %cst_42 : f32 to vector<64x1xf32>
    %112 = arith.mulf %111, %110 : vector<64x1xf32>
    %cst_43 = arith.constant 1.000000e-15 : f32
    %113 = vector.broadcast %cst_43 : f32 to vector<64x1xf32>
    %114 = arith.maximumf %100, %113 : vector<64x1xf32>
    %115 = arith.divf %112, %114 : vector<64x1xf32>
    %116 = vector.broadcast %115 : vector<64x1xf32> to vector<64x32xf32>
    %117 = arith.mulf %96, %116 : vector<64x32xf32>
    %118 = math.tanh %117 : vector<64x32xf32>
    %119 = arith.mulf %118, %118 : vector<64x32xf32>
    %cst_44 = arith.constant dense<0.000000e+00> : vector<64xf32>
    %120 = vector.multi_reduction <add>, %119, %cst_44 [1] : vector<64x32xf32> to vector<64xf32>
    %121 = vector.shape_cast %120 : vector<64xf32> to vector<64x1xf32>
    %122 = math.sqrt %121 : vector<64x1xf32>
    %123 = math.tanh %122 : vector<64x1xf32>
    %cst_45 = arith.constant 1.000000e-15 : f32
    %124 = vector.broadcast %cst_45 : f32 to vector<64x1xf32>
    %125 = arith.maximumf %122, %124 : vector<64x1xf32>
    %126 = arith.divf %123, %125 : vector<64x1xf32>
    %127 = vector.broadcast %126 : vector<64x1xf32> to vector<64x32xf32>
    %128 = arith.mulf %118, %127 : vector<64x32xf32>
    %cst_46 = arith.constant 0.999989986 : f32
    %129 = vector.broadcast %cst_46 : f32 to vector<64x1xf32>
    %130 = arith.cmpf ogt, %123, %129 : vector<64x1xf32>
    %cst_47 = arith.constant 1.000000e-15 : f32
    %131 = vector.broadcast %cst_47 : f32 to vector<64x1xf32>
    %132 = arith.maximumf %123, %131 : vector<64x1xf32>
    %cst_48 = arith.constant 0.999989986 : f32
    %133 = vector.broadcast %cst_48 : f32 to vector<64x1xf32>
    %134 = arith.divf %133, %132 : vector<64x1xf32>
    %cst_49 = arith.constant 1.000000e+00 : f32
    %135 = vector.broadcast %cst_49 : f32 to vector<64x1xf32>
    %136 = arith.select %130, %134, %135 : vector<64x1xi1>, vector<64x1xf32>
    %137 = vector.broadcast %136 : vector<64x1xf32> to vector<64x32xf32>
    %138 = arith.mulf %128, %137 : vector<64x32xf32>
    %cst_50 = arith.constant 0.999989986 : f32
    %139 = vector.broadcast %cst_50 : f32 to vector<64x1xf32>
    %140 = arith.minimumf %123, %139 : vector<64x1xf32>
    %c1 = arith.constant 1 : index
    %c0_51 = arith.constant 0 : index
    %c0_52 = arith.constant 0 : index
    %141 = vector.load %arg2[%c1, %c0_51, %c0_52] : memref<2x32x32xbf16, #tpu.memory_space<vmem>>, vector<1x32x32xbf16>
    %142 = vector.shape_cast %141 : vector<1x32x32xbf16> to vector<32x32xbf16>
    %c1_53 = arith.constant 1 : index
    %c0_54 = arith.constant 0 : index
    %c0_55 = arith.constant 0 : index
    %143 = vector.load %arg3[%c1_53, %c0_54, %c0_55] : memref<2x1x32xf32, #tpu.memory_space<vmem>>, vector<1x1x32xf32>
    %144 = vector.shape_cast %143 : vector<1x1x32xf32> to vector<1x32xf32>
    %c1_56 = arith.constant 1 : index
    %c0_57 = arith.constant 0 : index
    %c0_58 = arith.constant 0 : index
    %145 = vector.load %arg4[%c1_56, %c0_57, %c0_58] : memref<2x1x1xf32, #tpu.memory_space<vmem>>, vector<1x1x1xf32>
    %146 = vector.shape_cast %145 : vector<1x1x1xf32> to vector<1x1xf32>
    %cst_59 = arith.constant 1.000000e-15 : f32
    %147 = vector.broadcast %cst_59 : f32 to vector<64x1xf32>
    %148 = arith.maximumf %140, %147 : vector<64x1xf32>
    %149 = arith.truncf %138 : vector<64x32xf32> to vector<64x32xbf16>
    %cst_60 = arith.constant dense<0.000000e+00> : vector<64x32xf32>
    %150 = tpu.matmul %149, %142, %cst_60 {dimension_numbers = #tpu.dot_dimension_numbers<[1], [0], [0], [1], [0, 0, 1, 1], [], []>} : vector<64x32xbf16>, vector<32x32xbf16>, vector<64x32xf32> -> vector<64x32xf32>
    %151 = arith.mulf %150, %150 : vector<64x32xf32>
    %cst_61 = arith.constant dense<0.000000e+00> : vector<64xf32>
    %152 = vector.multi_reduction <add>, %151, %cst_61 [1] : vector<64x32xf32> to vector<64xf32>
    %153 = vector.shape_cast %152 : vector<64xf32> to vector<64x1xf32>
    %154 = math.sqrt %153 : vector<64x1xf32>
    %cst_62 = arith.constant 1.000000e-15 : f32
    %155 = vector.broadcast %cst_62 : f32 to vector<64x1xf32>
    %156 = arith.maximumf %154, %155 : vector<64x1xf32>
    %157 = arith.divf %156, %148 : vector<64x1xf32>
    %cst_63 = arith.constant -0.99999988 : f32
    %cst_64 = arith.constant 0.99999988 : f32
    %158 = vector.broadcast %cst_63 : f32 to vector<64x1xf32>
    %159 = arith.maximumf %158, %148 : vector<64x1xf32>
    %160 = vector.broadcast %cst_64 : f32 to vector<64x1xf32>
    %161 = arith.minimumf %160, %159 : vector<64x1xf32>
    %cst_65 = arith.constant 1.000000e+00 : f32
    %162 = vector.broadcast %cst_65 : f32 to vector<64x1xf32>
    %163 = arith.addf %162, %161 : vector<64x1xf32>
    %cst_66 = arith.constant 1.000000e+00 : f32
    %164 = vector.broadcast %cst_66 : f32 to vector<64x1xf32>
    %165 = arith.subf %164, %161 : vector<64x1xf32>
    %166 = arith.divf %163, %165 : vector<64x1xf32>
    %167 = math.log %166 : vector<64x1xf32>
    %cst_67 = arith.constant 5.000000e-01 : f32
    %168 = vector.broadcast %cst_67 : f32 to vector<64x1xf32>
    %169 = arith.mulf %168, %167 : vector<64x1xf32>
    %170 = arith.mulf %157, %169 : vector<64x1xf32>
    %171 = math.tanh %170 : vector<64x1xf32>
    %cst_68 = arith.constant 0.000000e+00 : f32
    %172 = vector.broadcast %cst_68 : f32 to vector<64x1xf32>
    %173 = arith.cmpf oeq, %154, %172 : vector<64x1xf32>
    %174 = arith.divf %171, %156 : vector<64x1xf32>
    %cst_69 = arith.constant 0.000000e+00 : f32
    %175 = vector.broadcast %cst_69 : f32 to vector<64x1xf32>
    %176 = arith.select %173, %175, %174 : vector<64x1xi1>, vector<64x1xf32>
    %177 = vector.broadcast %176 : vector<64x1xf32> to vector<64x32xf32>
    %178 = arith.mulf %177, %150 : vector<64x32xf32>
    %cst_70 = arith.constant 0.000000e+00 : f32
    %179 = vector.broadcast %cst_70 : f32 to vector<64x1xf32>
    %180 = arith.cmpf oeq, %154, %179 : vector<64x1xf32>
    %cst_71 = arith.constant 0.000000e+00 : f32
    %181 = vector.broadcast %cst_71 : f32 to vector<64x1xf32>
    %182 = arith.select %180, %181, %171 : vector<64x1xi1>, vector<64x1xf32>
    %183 = vector.broadcast %144 : vector<1x32xf32> to vector<64x32xf32>
    %184 = arith.mulf %178, %183 : vector<64x32xf32>
    %cst_72 = arith.constant dense<0.000000e+00> : vector<64xf32>
    %185 = vector.multi_reduction <add>, %184, %cst_72 [1] : vector<64x32xf32> to vector<64xf32>
    %186 = vector.shape_cast %185 : vector<64xf32> to vector<64x1xf32>
    %187 = arith.mulf %182, %182 : vector<64x1xf32>
    %cst_73 = arith.constant 2.000000e+00 : f32
    %188 = vector.broadcast %cst_73 : f32 to vector<64x1xf32>
    %189 = arith.mulf %188, %186 : vector<64x1xf32>
    %cst_74 = arith.constant 1.000000e+00 : f32
    %190 = vector.broadcast %cst_74 : f32 to vector<64x1xf32>
    %191 = arith.addf %190, %189 : vector<64x1xf32>
    %192 = vector.broadcast %146 : vector<1x1xf32> to vector<64x1xf32>
    %193 = arith.addf %191, %192 : vector<64x1xf32>
    %194 = vector.broadcast %193 : vector<64x1xf32> to vector<64x32xf32>
    %195 = arith.mulf %194, %178 : vector<64x32xf32>
    %cst_75 = arith.constant 1.000000e+00 : f32
    %196 = vector.broadcast %cst_75 : f32 to vector<64x1xf32>
    %197 = arith.subf %196, %187 : vector<64x1xf32>
    %198 = vector.broadcast %197 : vector<64x1xf32> to vector<64x32xf32>
    %199 = vector.broadcast %144 : vector<1x32xf32> to vector<64x32xf32>
    %200 = arith.mulf %198, %199 : vector<64x32xf32>
    %201 = arith.addf %195, %200 : vector<64x32xf32>
    %cst_76 = arith.constant 2.000000e+00 : f32
    %202 = vector.broadcast %cst_76 : f32 to vector<64x1xf32>
    %203 = arith.mulf %202, %186 : vector<64x1xf32>
    %cst_77 = arith.constant 1.000000e+00 : f32
    %204 = vector.broadcast %cst_77 : f32 to vector<64x1xf32>
    %205 = arith.addf %204, %203 : vector<64x1xf32>
    %206 = vector.broadcast %146 : vector<1x1xf32> to vector<64x1xf32>
    %207 = arith.mulf %187, %206 : vector<64x1xf32>
    %208 = arith.addf %205, %207 : vector<64x1xf32>
    %cst_78 = arith.constant 1.000000e-15 : f32
    %209 = vector.broadcast %cst_78 : f32 to vector<64x1xf32>
    %210 = arith.maximumf %208, %209 : vector<64x1xf32>
    %cst_79 = arith.constant 1.000000e+00 : f32
    %211 = vector.broadcast %cst_79 : f32 to vector<64x1xf32>
    %212 = arith.divf %211, %210 : vector<64x1xf32>
    %213 = vector.broadcast %212 : vector<64x1xf32> to vector<64x32xf32>
    %214 = arith.mulf %201, %213 : vector<64x32xf32>
    %215 = arith.mulf %214, %214 : vector<64x32xf32>
    %cst_80 = arith.constant dense<0.000000e+00> : vector<64xf32>
    %216 = vector.multi_reduction <add>, %215, %cst_80 [1] : vector<64x32xf32> to vector<64xf32>
    %217 = vector.shape_cast %216 : vector<64xf32> to vector<64x1xf32>
    %218 = math.sqrt %217 : vector<64x1xf32>
    %cst_81 = arith.constant -0.99999988 : f32
    %cst_82 = arith.constant 0.99999988 : f32
    %219 = vector.broadcast %cst_81 : f32 to vector<64x1xf32>
    %220 = arith.maximumf %219, %218 : vector<64x1xf32>
    %221 = vector.broadcast %cst_82 : f32 to vector<64x1xf32>
    %222 = arith.minimumf %221, %220 : vector<64x1xf32>
    %cst_83 = arith.constant 1.000000e+00 : f32
    %223 = vector.broadcast %cst_83 : f32 to vector<64x1xf32>
    %224 = arith.addf %223, %222 : vector<64x1xf32>
    %cst_84 = arith.constant 1.000000e+00 : f32
    %225 = vector.broadcast %cst_84 : f32 to vector<64x1xf32>
    %226 = arith.subf %225, %222 : vector<64x1xf32>
    %227 = arith.divf %224, %226 : vector<64x1xf32>
    %228 = math.log %227 : vector<64x1xf32>
    %cst_85 = arith.constant 5.000000e-01 : f32
    %229 = vector.broadcast %cst_85 : f32 to vector<64x1xf32>
    %230 = arith.mulf %229, %228 : vector<64x1xf32>
    %cst_86 = arith.constant 1.000000e-15 : f32
    %231 = vector.broadcast %cst_86 : f32 to vector<64x1xf32>
    %232 = arith.maximumf %218, %231 : vector<64x1xf32>
    %233 = arith.divf %230, %232 : vector<64x1xf32>
    %234 = vector.broadcast %233 : vector<64x1xf32> to vector<64x32xf32>
    %235 = arith.mulf %214, %234 : vector<64x32xf32>
    %236 = math.tanh %235 : vector<64x32xf32>
    %237 = arith.mulf %236, %236 : vector<64x32xf32>
    %cst_87 = arith.constant dense<0.000000e+00> : vector<64xf32>
    %238 = vector.multi_reduction <add>, %237, %cst_87 [1] : vector<64x32xf32> to vector<64xf32>
    %239 = vector.shape_cast %238 : vector<64xf32> to vector<64x1xf32>
    %240 = math.sqrt %239 : vector<64x1xf32>
    %241 = math.tanh %240 : vector<64x1xf32>
    %cst_88 = arith.constant 1.000000e-15 : f32
    %242 = vector.broadcast %cst_88 : f32 to vector<64x1xf32>
    %243 = arith.maximumf %240, %242 : vector<64x1xf32>
    %244 = arith.divf %241, %243 : vector<64x1xf32>
    %245 = vector.broadcast %244 : vector<64x1xf32> to vector<64x32xf32>
    %246 = arith.mulf %236, %245 : vector<64x32xf32>
    %cst_89 = arith.constant 0.999989986 : f32
    %247 = vector.broadcast %cst_89 : f32 to vector<64x1xf32>
    %248 = arith.cmpf ogt, %241, %247 : vector<64x1xf32>
    %cst_90 = arith.constant 1.000000e-15 : f32
    %249 = vector.broadcast %cst_90 : f32 to vector<64x1xf32>
    %250 = arith.maximumf %241, %249 : vector<64x1xf32>
    %cst_91 = arith.constant 0.999989986 : f32
    %251 = vector.broadcast %cst_91 : f32 to vector<64x1xf32>
    %252 = arith.divf %251, %250 : vector<64x1xf32>
    %cst_92 = arith.constant 1.000000e+00 : f32
    %253 = vector.broadcast %cst_92 : f32 to vector<64x1xf32>
    %254 = arith.select %248, %252, %253 : vector<64x1xi1>, vector<64x1xf32>
    %255 = vector.broadcast %254 : vector<64x1xf32> to vector<64x32xf32>
    %256 = arith.mulf %246, %255 : vector<64x32xf32>
    %257 = vector.shape_cast %256 : vector<64x32xf32> to vector<8x8x32xf32>
    %258 = vector.extract_strided_slice %257 {offsets = [0, 0, 0], sizes = [8, 1, 32], strides = [1, 1, 1]} : vector<8x8x32xf32> to vector<8x1x32xf32>
    %c0_93 = arith.constant 0 : index
    %c0_94 = arith.constant 0 : index
    %259 = vector.load %arg5[%c0_93, %c0_94] : memref<1x32xf32, #tpu.memory_space<vmem>>, vector<1x32xf32>
    %c0_95 = arith.constant 0 : index
    %c0_96 = arith.constant 0 : index
    %260 = vector.load %arg6[%c0_95, %c0_96] : memref<1x1xf32, #tpu.memory_space<vmem>>, vector<1x1xf32>
    %261 = arith.mulf %258, %258 : vector<8x1x32xf32>
    %cst_97 = arith.constant dense<0.000000e+00> : vector<8x1xf32>
    %262 = vector.multi_reduction <add>, %261, %cst_97 [2] : vector<8x1x32xf32> to vector<8x1xf32>
    %263 = vector.shape_cast %262 : vector<8x1xf32> to vector<8x1x1xf32>
    %264 = vector.shape_cast %259 : vector<1x32xf32> to vector<1x1x32xf32>
    %265 = vector.broadcast %264 : vector<1x1x32xf32> to vector<8x1x32xf32>
    %266 = arith.mulf %258, %265 : vector<8x1x32xf32>
    %cst_98 = arith.constant dense<0.000000e+00> : vector<8x1xf32>
    %267 = vector.multi_reduction <add>, %266, %cst_98 [2] : vector<8x1x32xf32> to vector<8x1xf32>
    %268 = vector.shape_cast %267 : vector<8x1xf32> to vector<8x1x1xf32>
    %cst_99 = arith.constant 2.000000e+00 : f32
    %269 = vector.broadcast %cst_99 : f32 to vector<8x1x1xf32>
    %270 = arith.mulf %269, %268 : vector<8x1x1xf32>
    %cst_100 = arith.constant 1.000000e+00 : f32
    %271 = vector.broadcast %cst_100 : f32 to vector<8x1x1xf32>
    %272 = arith.addf %271, %270 : vector<8x1x1xf32>
    %273 = vector.shape_cast %260 : vector<1x1xf32> to vector<1x1x1xf32>
    %274 = vector.broadcast %273 : vector<1x1x1xf32> to vector<8x1x1xf32>
    %275 = arith.addf %272, %274 : vector<8x1x1xf32>
    %276 = vector.broadcast %275 : vector<8x1x1xf32> to vector<8x1x32xf32>
    %277 = arith.mulf %276, %258 : vector<8x1x32xf32>
    %cst_101 = arith.constant 1.000000e+00 : f32
    %278 = vector.broadcast %cst_101 : f32 to vector<8x1x1xf32>
    %279 = arith.subf %278, %263 : vector<8x1x1xf32>
    %280 = vector.shape_cast %259 : vector<1x32xf32> to vector<1x1x32xf32>
    %281 = vector.broadcast %279 : vector<8x1x1xf32> to vector<8x1x32xf32>
    %282 = vector.broadcast %280 : vector<1x1x32xf32> to vector<8x1x32xf32>
    %283 = arith.mulf %281, %282 : vector<8x1x32xf32>
    %284 = arith.addf %277, %283 : vector<8x1x32xf32>
    %cst_102 = arith.constant 2.000000e+00 : f32
    %285 = vector.broadcast %cst_102 : f32 to vector<8x1x1xf32>
    %286 = arith.mulf %285, %268 : vector<8x1x1xf32>
    %cst_103 = arith.constant 1.000000e+00 : f32
    %287 = vector.broadcast %cst_103 : f32 to vector<8x1x1xf32>
    %288 = arith.addf %287, %286 : vector<8x1x1xf32>
    %289 = vector.shape_cast %260 : vector<1x1xf32> to vector<1x1x1xf32>
    %290 = vector.broadcast %289 : vector<1x1x1xf32> to vector<8x1x1xf32>
    %291 = arith.mulf %263, %290 : vector<8x1x1xf32>
    %292 = arith.addf %288, %291 : vector<8x1x1xf32>
    %cst_104 = arith.constant 1.000000e-15 : f32
    %293 = vector.broadcast %cst_104 : f32 to vector<8x1x1xf32>
    %294 = arith.maximumf %292, %293 : vector<8x1x1xf32>
    %cst_105 = arith.constant 1.000000e+00 : f32
    %295 = vector.broadcast %cst_105 : f32 to vector<8x1x1xf32>
    %296 = arith.divf %295, %294 : vector<8x1x1xf32>
    %297 = vector.broadcast %296 : vector<8x1x1xf32> to vector<8x1x32xf32>
    %298 = arith.mulf %284, %297 : vector<8x1x32xf32>
    %299 = arith.mulf %298, %298 : vector<8x1x32xf32>
    %cst_106 = arith.constant dense<0.000000e+00> : vector<8x1xf32>
    %300 = vector.multi_reduction <add>, %299, %cst_106 [2] : vector<8x1x32xf32> to vector<8x1xf32>
    %301 = arith.mulf %257, %257 : vector<8x8x32xf32>
    %cst_107 = arith.constant dense<0.000000e+00> : vector<8x8xf32>
    %302 = vector.multi_reduction <add>, %301, %cst_107 [2] : vector<8x8x32xf32> to vector<8x8xf32>
    %303 = vector.broadcast %298 : vector<8x1x32xf32> to vector<8x8x32xf32>
    %304 = arith.subf %303, %257 : vector<8x8x32xf32>
    %305 = arith.mulf %304, %304 : vector<8x8x32xf32>
    %cst_108 = arith.constant dense<0.000000e+00> : vector<8x8xf32>
    %306 = vector.multi_reduction <add>, %305, %cst_108 [2] : vector<8x8x32xf32> to vector<8x8xf32>
    %cst_109 = arith.constant 1.000000e+00 : f32
    %307 = vector.broadcast %cst_109 : f32 to vector<8x1xf32>
    %308 = arith.subf %307, %300 : vector<8x1xf32>
    %cst_110 = arith.constant 1.000000e+00 : f32
    %309 = vector.broadcast %cst_110 : f32 to vector<8x8xf32>
    %310 = arith.subf %309, %302 : vector<8x8xf32>
    %311 = vector.broadcast %308 : vector<8x1xf32> to vector<8x8xf32>
    %312 = arith.mulf %311, %310 : vector<8x8xf32>
    %cst_111 = arith.constant 1.000000e-15 : f32
    %313 = vector.broadcast %cst_111 : f32 to vector<8x8xf32>
    %314 = arith.maximumf %312, %313 : vector<8x8xf32>
    %cst_112 = arith.constant 2.000000e+00 : f32
    %315 = vector.broadcast %cst_112 : f32 to vector<8x8xf32>
    %316 = arith.mulf %315, %306 : vector<8x8xf32>
    %317 = tpu.reciprocal %314 {approx = true} : vector<8x8xf32> -> vector<8x8xf32>
    %318 = arith.mulf %316, %317 : vector<8x8xf32>
    %cst_113 = arith.constant 1.000000e-07 : f32
    %319 = vector.broadcast %cst_113 : f32 to vector<8x8xf32>
    %320 = arith.maximumf %318, %319 : vector<8x8xf32>
    %cst_114 = arith.constant 1.000000e+00 : f32
    %321 = vector.broadcast %cst_114 : f32 to vector<8x8xf32>
    %322 = arith.addf %321, %320 : vector<8x8xf32>
    %cst_115 = arith.constant 2.000000e+00 : f32
    %323 = vector.broadcast %cst_115 : f32 to vector<8x8xf32>
    %324 = arith.addf %320, %323 : vector<8x8xf32>
    %325 = arith.mulf %320, %324 : vector<8x8xf32>
    %326 = math.sqrt %325 : vector<8x8xf32>
    %327 = arith.addf %322, %326 : vector<8x8xf32>
    %328 = math.log %327 : vector<8x8xf32>
    %c0_116 = arith.constant 0 : index
    %c0_117 = arith.constant 0 : index
    %329 = vector.load %arg7[%c0_116, %c0_117] : memref<8x8xf32, #tpu.memory_space<vmem>>, vector<8x8xf32>
    tpu.vector_store %arg7[%c0_116, %c0_117], %328 {strides = array<i32>} : memref<8x8xf32, #tpu.memory_space<vmem>>, vector<8x8xf32>,
    return
  }
  func.func @transform_0(%arg0: i32) -> (i32, i32) {
    %c0_i32 = arith.constant 0 : i32
    %c0_i32_0 = arith.constant 0 : i32
    return %arg0, %c0_i32 : i32, i32
  }
  func.func @transform_1(%arg0: i32) -> (i32, i32, i32) {
    %c0_i32 = arith.constant 0 : i32
    %c0_i32_0 = arith.constant 0 : i32
    %c0_i32_1 = arith.constant 0 : i32
    %c0_i32_2 = arith.constant 0 : i32
    return %c0_i32, %c0_i32_0, %c0_i32_1 : i32, i32, i32
  }
  func.func @transform_2(%arg0: i32) -> (i32, i32, i32) {
    %c0_i32 = arith.constant 0 : i32
    %c0_i32_0 = arith.constant 0 : i32
    %c0_i32_1 = arith.constant 0 : i32
    %c0_i32_2 = arith.constant 0 : i32
    return %c0_i32, %c0_i32_0, %c0_i32_1 : i32, i32, i32
  }
  func.func @transform_3(%arg0: i32) -> (i32, i32, i32) {
    %c0_i32 = arith.constant 0 : i32
    %c0_i32_0 = arith.constant 0 : i32
    %c0_i32_1 = arith.constant 0 : i32
    %c0_i32_2 = arith.constant 0 : i32
    return %c0_i32, %c0_i32_0, %c0_i32_1 : i32, i32, i32
  }
  func.func @transform_4(%arg0: i32) -> (i32, i32) {
    %c0_i32 = arith.constant 0 : i32
    %c0_i32_0 = arith.constant 0 : i32
    %c0_i32_1 = arith.constant 0 : i32
    return %c0_i32, %c0_i32_0 : i32, i32
  }
  func.func @transform_5(%arg0: i32) -> (i32, i32) {
    %c0_i32 = arith.constant 0 : i32
    %c0_i32_0 = arith.constant 0 : i32
    %c0_i32_1 = arith.constant 0 : i32
    return %c0_i32, %c0_i32_0 : i32, i32
  }
  func.func @transform_6(%arg0: i32) -> (i32, i32) {
    %c0_i32 = arith.constant 0 : i32
    %c0_i32_0 = arith.constant 0 : i32
    return %arg0, %c0_i32 : i32, i32
  }
}

</mosaic_0001>

<llo_original>
// kernel: tpu_custom_call.1
$region0: #{tpu_custom_call.1}
  #allocation0 [shape = 'u32[]', space=smem, size = 0x4, offset = 0x4, fixed_abs, tag = 'smem constant byte address 0x4 - core index']
  #allocation1 [shape = 'u32[144,128]{1,0:T(1,128)}', space=vmem, size = 0x12000, scoped, tag = 'internal scratch']
  #allocation2 [shape = 'f32[1,1]{1,0:T(1,128)S(1)}', space=vmem, size = 0x200, scoped, tag = 'scoped memory for tpu_custom_call.1']
  %s0 = inlined_call_operand.vmem [shape: f32[64,32], index: 0, kind: input, shape index: {}]
  %s1 = inlined_call_operand.vmem [shape: bf16[2,32,32], index: 1, kind: input, shape index: {}]
  %s2 = inlined_call_operand.vmem [shape: f32[2,1,32], index: 2, kind: input, shape index: {}]
  %s3 = inlined_call_operand.vmem [shape: f32[2,1,1], index: 3, kind: input, shape index: {}]
  %s4 = inlined_call_operand.vmem [shape: f32[1,32], index: 4, kind: input, shape index: {}]
  %s5 = inlined_call_operand.<no memory space> [shape: f32[1,1], index: 5, kind: input, shape index: {}]
  %s6 = inlined_call_operand.hbm [shape: f32[8,8], index: 6, kind: output, shape index: {}]
  %s7 = sld [smem:[#allocation0]]
  $region34: #{tpu_custom_call.1} parent=0
    _
  %s9 = ssub.s32 1, %s7
  %s10 = scalar_select 0, %s9, %s7
  %v11 = vstv %s5
  %12 = vst [vmem:[#allocation2] sm:$0x1] %v11
  $region1: #{tpu_custom_call.1} parent=0
    #allocation3 [shape = 'u8[4096]{0}', space=vmem, size = 0x1000, scoped, tag = 'output window, operand 0, single buffered']
    #allocation4 [shape = 's32[1]{0}', space=sflag, size = 0x4, scoped, tag = 'scoped memory for tpu_custom_call.1']
    %13 = vsyncpa [#allocation4], 0
    // Predicated region
    $region2: #{tpu_custom_call.1} parent=1 // pred_check
      _
    $region3: #{tpu_custom_call.1} parent=1 // pred_check_branch
      %15 = sbr.rel (0) target = $region5
    $region4: #{tpu_custom_call.1} parent=1 // pred_region
      _
    $region5: #{tpu_custom_call.1} parent=1 // pred_fallthru
      _
    // Predicated region
    $region6: #{tpu_custom_call.1} parent=1 // pred_check
      _
    $region7: #{tpu_custom_call.1} parent=1 // pred_check_branch
      %17 = sbr.rel (0) target = $region9
    $region8: #{tpu_custom_call.1} parent=1 // pred_region
      _
    $region9: #{tpu_custom_call.1} parent=1 // pred_fallthru
      _
    // Predicated region
    $region10: #{tpu_custom_call.1} parent=1 // pred_check
      _
    $region11: #{tpu_custom_call.1} parent=1 // pred_check_branch
      %19 = sbr.rel (0) target = $region13
    $region12: #{tpu_custom_call.1} parent=1 // pred_region
      _
    $region13: #{tpu_custom_call.1} parent=1 // pred_fallthru
      _
    // Predicated region
    $region14: #{tpu_custom_call.1} parent=1 // pred_check
      _
    $region15: #{tpu_custom_call.1} parent=1 // pred_check_branch
      %21 = sbr.rel (0) target = $region17
    $region16: #{tpu_custom_call.1} parent=1 // pred_region
      _
    $region17: #{tpu_custom_call.1} parent=1 // pred_fallthru
      _
    // Predicated region
    $region18: #{tpu_custom_call.1} parent=1 // pred_check
      _
    $region19: #{tpu_custom_call.1} parent=1 // pred_check_branch
      %23 = sbr.rel (0) target = $region21
    $region20: #{tpu_custom_call.1} parent=1 // pred_region
      _
    $region21: #{tpu_custom_call.1} parent=1 // pred_fallthru
      _
    // Predicated region
    $region22: #{tpu_custom_call.1} parent=1 // pred_check
      _
    $region23: #{tpu_custom_call.1} parent=1 // pred_check_branch
      %25 = sbr.rel (0) target = $region25
    $region24: #{tpu_custom_call.1} parent=1 // pred_region
      _
    $region25: #{tpu_custom_call.1} parent=1 // pred_fallthru
      _
    %v27 = vld [vmem:[%s0] sm:$0xff]
    %v28 = vld [vmem:[%s0 + $0x8] sm:$0xff]
    %v29 = vld [vmem:[%s0 + $0x10] sm:$0xff]
    %v30 = vld [vmem:[%s0 + $0x18] sm:$0xff]
    %v31 = vld [vmem:[%s0 + $0x20] sm:$0xff]
    %v32 = vld [vmem:[%s0 + $0x28] sm:$0xff]
    %v33 = vld [vmem:[%s0 + $0x30] sm:$0xff]
    %v34 = vld [vmem:[%s0 + $0x38] sm:$0xff]
    %v35 = vmul.f32 %v27, %v27
    %v36 = vmul.f32 %v28, %v28
    %v37 = vmul.f32 %v29, %v29
    %v38 = vmul.f32 %v30, %v30
    %v39 = vmul.f32 %v31, %v31
    %v40 = vmul.f32 %v32, %v32
    %v41 = vmul.f32 %v33, %v33
    %v42 = vmul.f32 %v34, %v34
    %vm43 = vcmask 261120
    %v44 = vsel %vm43, %v35, 0.0
    %45 = vadd.xlane.f32.xlu0 %v44
    %v46 = vpop.xlane.xlu0 %45
    %v47 = vsel %vm43, %v36, 0.0
    %48 = vadd.xlane.f32.xlu0 %v47
    %v49 = vpop.xlane.xlu0 %48
    %v50 = vsel %vm43, %v37, 0.0
    %51 = vadd.xlane.f32.xlu0 %v50
    %v52 = vpop.xlane.xlu0 %51
    %v53 = vsel %vm43, %v38, 0.0
    %54 = vadd.xlane.f32.xlu0 %v53
    %v55 = vpop.xlane.xlu0 %54
    %v56 = vsel %vm43, %v39, 0.0
    %57 = vadd.xlane.f32.xlu0 %v56
    %v58 = vpop.xlane.xlu0 %57
    %v59 = vsel %vm43, %v40, 0.0
    %60 = vadd.xlane.f32.xlu0 %v59
    %v61 = vpop.xlane.xlu0 %60
    %v62 = vsel %vm43, %v41, 0.0
    %63 = vadd.xlane.f32.xlu0 %v62
    %v64 = vpop.xlane.xlu0 %63
    %v65 = vsel %vm43, %v42, 0.0
    %66 = vadd.xlane.f32.xlu0 %v65
    %v67 = vpop.xlane.xlu0 %66
    %v68 = vrsqrt.pop %v46
    %v69 = vmul.f32 %v46, %v68
    %vm70 = vcmp.eq.f32.partialorder %v46, inf
    %v71 = vsel %vm70, %v46, %v69
    %vm72 = vcmp.eq.f32.partialorder %v46, 0.0
    %v73 = vand.u32 %v46, 2147483648
    %v74 = vsel %vm72, %v73, %v71
    %v75 = vrsqrt.pop %v49
    %v76 = vmul.f32 %v49, %v75
    %vm77 = vcmp.eq.f32.partialorder %v49, inf
    %v78 = vsel %vm77, %v49, %v76
    %vm79 = vcmp.eq.f32.partialorder %v49, 0.0
    %v80 = vand.u32 %v49, 2147483648
    %v81 = vsel %vm79, %v80, %v78
    %v82 = vrsqrt.pop %v52
    %v83 = vmul.f32 %v52, %v82
    %vm84 = vcmp.eq.f32.partialorder %v52, inf
    %v85 = vsel %vm84, %v52, %v83
    %vm86 = vcmp.eq.f32.partialorder %v52, 0.0
    %v87 = vand.u32 %v52, 2147483648
    %v88 = vsel %vm86, %v87, %v85
    %v89 = vrsqrt.pop %v55
    %v90 = vmul.f32 %v55, %v89
    %vm91 = vcmp.eq.f32.partialorder %v55, inf
    %v92 = vsel %vm91, %v55, %v90
    %vm93 = vcmp.eq.f32.partialorder %v55, 0.0
    %v94 = vand.u32 %v55, 2147483648
    %v95 = vsel %vm93, %v94, %v92
    %v96 = vrsqrt.pop %v58
    %v97 = vmul.f32 %v58, %v96
    %vm98 = vcmp.eq.f32.partialorder %v58, inf
    %v99 = vsel %vm98, %v58, %v97
    %vm100 = vcmp.eq.f32.partialorder %v58, 0.0
    %v101 = vand.u32 %v58, 2147483648
    %v102 = vsel %vm100, %v101, %v99
    %v103 = vrsqrt.pop %v61
    %v104 = vmul.f32 %v61, %v103
    %vm105 = vcmp.eq.f32.partialorder %v61, inf
    %v106 = vsel %vm105, %v61, %v104
    %vm107 = vcmp.eq.f32.partialorder %v61, 0.0
    %v108 = vand.u32 %v61, 2147483648
    %v109 = vsel %vm107, %v108, %v106
    %v110 = vrsqrt.pop %v64
    %v111 = vmul.f32 %v64, %v110
    %vm112 = vcmp.eq.f32.partialorder %v64, inf
    %v113 = vsel %vm112, %v64, %v111
    %vm114 = vcmp.eq.f32.partialorder %v64, 0.0
    %v115 = vand.u32 %v64, 2147483648
    %v116 = vsel %vm114, %v115, %v113
    %v117 = vrsqrt.pop %v67
    %v118 = vmul.f32 %v67, %v117
    %vm119 = vcmp.eq.f32.partialorder %v67, inf
    %v120 = vsel %vm119, %v67, %v118
    %vm121 = vcmp.eq.f32.partialorder %v67, 0.0
    %v122 = vand.u32 %v67, 2147483648
    %v123 = vsel %vm121, %v122, %v120
    %vm124 = vcmp.gt.f32.partialorder %v74, 0.99999
    %vm125 = vcmp.gt.f32.partialorder %v81, 0.99999
    %vm126 = vcmp.gt.f32.partialorder %v88, 0.99999
    %vm127 = vcmp.gt.f32.partialorder %v95, 0.99999
    %vm128 = vcmp.gt.f32.partialorder %v102, 0.99999
    %vm129 = vcmp.gt.f32.partialorder %v109, 0.99999
    %vm130 = vcmp.gt.f32.partialorder %v116, 0.99999
    %vm131 = vcmp.gt.f32.partialorder %v123, 0.99999
    %v132 = vmax.f32 %v74, 1e-15
    %v133 = vmax.f32 %v81, 1e-15
    %v134 = vmax.f32 %v88, 1e-15
    %v135 = vmax.f32 %v95, 1e-15
    %v136 = vmax.f32 %v102, 1e-15
    %v137 = vmax.f32 %v109, 1e-15
    %v138 = vmax.f32 %v116, 1e-15
    %v139 = vmax.f32 %v123, 1e-15
    %v140 = vrcp.pop %v132
    %v141 = vmul.f32 0.99999, %v140
    %v142 = vrcp.pop %v133
    %v143 = vmul.f32 0.99999, %v142
    %v144 = vrcp.pop %v134
    %v145 = vmul.f32 0.99999, %v144
    %v146 = vrcp.pop %v135
    %v147 = vmul.f32 0.99999, %v146
    %v148 = vrcp.pop %v136
    %v149 = vmul.f32 0.99999, %v148
    %v150 = vrcp.pop %v137
    %v151 = vmul.f32 0.99999, %v150
    %v152 = vrcp.pop %v138
    %v153 = vmul.f32 0.99999, %v152
    %v154 = vrcp.pop %v139
    %v155 = vmul.f32 0.99999, %v154
    %v156 = vsel %vm124, %v141, 1.0
    %v157 = vsel %vm125, %v143, 1.0
    %v158 = vsel %vm126, %v145, 1.0
    %v159 = vsel %vm127, %v147, 1.0
    %v160 = vsel %vm128, %v149, 1.0
    %v161 = vsel %vm129, %v151, 1.0
    %v162 = vsel %vm130, %v153, 1.0
    %v163 = vsel %vm131, %v155, 1.0
    %v164 = vmul.f32 %v27, %v156
    %v165 = vmul.f32 %v28, %v157
    %v166 = vmul.f32 %v29, %v158
    %v167 = vmul.f32 %v30, %v159
    %v168 = vmul.f32 %v31, %v160
    %v169 = vmul.f32 %v32, %v161
    %v170 = vmul.f32 %v33, %v162
    %v171 = vmul.f32 %v34, %v163
    %v172 = vmin.f32 %v74, 0.99999
    %v173 = vmin.f32 %v81, 0.99999
    %v174 = vmin.f32 %v88, 0.99999
    %v175 = vmin.f32 %v95, 0.99999
    %v176 = vmin.f32 %v102, 0.99999
    %v177 = vmin.f32 %v109, 0.99999
    %v178 = vmin.f32 %v116, 0.99999
    %v179 = vmin.f32 %v123, 0.99999
    %v180 = vtanh.pop %v172
    %v181 = vtanh.pop %v173
    %v182 = vtanh.pop %v174
    %v183 = vtanh.pop %v175
    %v184 = vtanh.pop %v176
    %v185 = vtanh.pop %v177
    %v186 = vtanh.pop %v178
    %v187 = vtanh.pop %v179
    %v188 = vmax.f32 %v172, 1e-15
    %v189 = vmax.f32 %v173, 1e-15
    %v190 = vmax.f32 %v174, 1e-15
    %v191 = vmax.f32 %v175, 1e-15
    %v192 = vmax.f32 %v176, 1e-15
    %v193 = vmax.f32 %v177, 1e-15
    %v194 = vmax.f32 %v178, 1e-15
    %v195 = vmax.f32 %v179, 1e-15
    %v196 = vrcp.pop %v188
    %v197 = vmul.f32 %v180, %v196
    %v198 = vrcp.pop %v189
    %v199 = vmul.f32 %v181, %v198
    %v200 = vrcp.pop %v190
    %v201 = vmul.f32 %v182, %v200
    %v202 = vrcp.pop %v191
    %v203 = vmul.f32 %v183, %v202
    %v204 = vrcp.pop %v192
    %v205 = vmul.f32 %v184, %v204
    %v206 = vrcp.pop %v193
    %v207 = vmul.f32 %v185, %v206
    %v208 = vrcp.pop %v194
    %v209 = vmul.f32 %v186, %v208
    %v210 = vrcp.pop %v195
    %v211 = vmul.f32 %v187, %v210
    %v212 = vmul.f32 %v164, %v197
    %v213 = vmul.f32 %v165, %v199
    %v214 = vmul.f32 %v166, %v201
    %v215 = vmul.f32 %v167, %v203
    %v216 = vmul.f32 %v168, %v205
    %v217 = vmul.f32 %v169, %v207
    %v218 = vmul.f32 %v170, %v209
    %v219 = vmul.f32 %v171, %v211
    %v220 = vld [vmem:[%s1] sm:$0xf]
    %v221 = vld [vmem:[%s1 + $0x4] sm:$0xf]
    %v222 = vld [vmem:[%s1 + $0x8] sm:$0xf]
    %v223 = vld [vmem:[%s1 + $0xc] sm:$0xf]
    %v224 = vld [vmem:[%s2] sm:$0x1]
    %v225 = vld [vmem:[%s3] sm:$0x1]
    %v226 = vmax.f32 %v180, 1e-15
    %v227 = vmax.f32 %v181, 1e-15
    %v228 = vmax.f32 %v182, 1e-15
    %v229 = vmax.f32 %v183, 1e-15
    %v230 = vmax.f32 %v184, 1e-15
    %v231 = vmax.f32 %v185, 1e-15
    %v232 = vmax.f32 %v186, 1e-15
    %v233 = vmax.f32 %v187, 1e-15
    %v234 = vpack.c.bf16 %v213, %v212
    %v235 = vpack.c.bf16 %v215, %v214
    %v236 = vpack.c.bf16 %v217, %v216
    %v237 = vpack.c.bf16 %v219, %v218
    %v242 = vunpack.c.l.b16 %v220
    %v243 = vunpack.c.l.b16 %v221
    %v244 = vunpack.c.l.b16 %v222
    %v245 = vunpack.c.l.b16 %v223
    %v246 = vpack.c.b16 %v243, %v242
    %v247 = vpack.c.b16 %v245, %v244
    %v251 = vsel %vm43, %v234, 0
    %v254 = vsel %vm43, %v235, 0
    %v257 = vsel %vm43, %v236, 0
    %v260 = vsel %vm43, %v237, 0
    %262 = vmatprep.subr.bf16.mxu0 0
    %263 = vmatpush1.bf16.msra.mxu0 0
    %264 = vmatprep.subr.bf16.mxu0 0
    %265 = vmatpush1.bf16.msra.mxu0 0
    %266 = vmatprep.subr.bf16.mxu0 0
    %267 = vmatpush1.bf16.msra.mxu0 0
    %268 = vmatprep.subr.bf16.mxu0 0
    %269 = vmatpush1.bf16.msra.mxu0 0
    %270 = vmatprep.subr.bf16.mxu0 0
    %271 = vmatpush1.bf16.msra.mxu0 0
    %272 = vmatprep.subr.bf16.mxu0 0
    %273 = vmatpush1.bf16.msra.mxu0 0
    %274 = vmatprep.subr.bf16.mxu0 0
    %275 = vmatpush1.bf16.msra.mxu0 %v247
    %276 = vmatprep.subr.bf16.mxu0 0
    %277 = vmatpush1.bf16.msra.mxu0 %v246
    %278 = vmatprep.subr.bf16.mxu0 0
    %279 = vmatpush2.bf16.msra.mxu0 0
    %280 = vmatprep.subr.bf16.mxu0 0
    %281 = vmatpush2.bf16.msra.mxu0 0
    %282 = vmatprep.subr.bf16.mxu0 0
    %283 = vmatpush2.bf16.msra.mxu0 0
    %284 = vmatprep.subr.bf16.mxu0 0
    %285 = vmatpush2.bf16.msra.mxu0 0
    %286 = vmatprep.subr.bf16.mxu0 0
    %287 = vmatpush2.bf16.msra.mxu0 0
    %288 = vmatprep.subr.bf16.mxu0 0
    %289 = vmatpush2.bf16.msra.mxu0 0
    %290 = vmatprep.subr.bf16.mxu0 0
    %291 = vmatpush2.bf16.msra.mxu0 0
    %292 = vmatprep.subr.bf16.mxu0 0
    %293 = vmatpush2.bf16.msra.mxu0 0
    %294 = vmatprep.mubr.bf16.mxu0 0
    %295 = vmatmul.mubr.bf16.gmra.mxu0 %v251
    %v296 = vpop.f32.mrf.mxu0
    %v297 = vadd.f32 0.0, %v296
    %v298 = vpop.f32.mrf.mxu0
    %v299 = vpop.f32.mrf.mxu0
    %v300 = vadd.f32 0.0, %v299
    %v301 = vpop.f32.mrf.mxu0
    %302 = vmatprep.mubr.bf16.mxu0 0
    %303 = vmatmul.mubr.bf16.gmra.mxu0 %v254
    %v304 = vpop.f32.mrf.mxu0
    %v305 = vadd.f32 0.0, %v304
    %v306 = vpop.f32.mrf.mxu0
    %v307 = vpop.f32.mrf.mxu0
    %v308 = vadd.f32 0.0, %v307
    %v309 = vpop.f32.mrf.mxu0
    %310 = vmatprep.mubr.bf16.mxu0 0
    %311 = vmatmul.mubr.bf16.gmra.mxu0 %v257
    %v312 = vpop.f32.mrf.mxu0
    %v313 = vadd.f32 0.0, %v312
    %v314 = vpop.f32.mrf.mxu0
    %v315 = vpop.f32.mrf.mxu0
    %v316 = vadd.f32 0.0, %v315
    %v317 = vpop.f32.mrf.mxu0
    %318 = vmatprep.mubr.bf16.mxu0 0
    %319 = vmatmul.mubr.bf16.gmra.mxu0 %v260
    %v320 = vpop.f32.mrf.mxu0
    %v321 = vadd.f32 0.0, %v320
    %v322 = vpop.f32.mrf.mxu0
    %v323 = vpop.f32.mrf.mxu0
    %v324 = vadd.f32 0.0, %v323
    %v325 = vpop.f32.mrf.mxu0
    %326 = vdwg.mxu0
    %v327 = vmul.f32 %v297, %v297
    %v328 = vmul.f32 %v300, %v300
    %v329 = vmul.f32 %v305, %v305
    %v330 = vmul.f32 %v308, %v308
    %v331 = vmul.f32 %v313, %v313
    %v332 = vmul.f32 %v316, %v316
    %v333 = vmul.f32 %v321, %v321
    %v334 = vmul.f32 %v324, %v324
    %v335 = vsel %vm43, %v327, 0.0
    %336 = vadd.xlane.f32.xlu0 %v335
    %v337 = vpop.xlane.xlu0 %336
    %v338 = vsel %vm43, %v328, 0.0
    %339 = vadd.xlane.f32.xlu0 %v338
    %v340 = vpop.xlane.xlu0 %339
    %v341 = vsel %vm43, %v329, 0.0
    %342 = vadd.xlane.f32.xlu0 %v341
    %v343 = vpop.xlane.xlu0 %342
    %v344 = vsel %vm43, %v330, 0.0
    %345 = vadd.xlane.f32.xlu0 %v344
    %v346 = vpop.xlane.xlu0 %345
    %v347 = vsel %vm43, %v331, 0.0
    %348 = vadd.xlane.f32.xlu0 %v347
    %v349 = vpop.xlane.xlu0 %348
    %v350 = vsel %vm43, %v332, 0.0
    %351 = vadd.xlane.f32.xlu0 %v350
    %v352 = vpop.xlane.xlu0 %351
    %v353 = vsel %vm43, %v333, 0.0
    %354 = vadd.xlane.f32.xlu0 %v353
    %v355 = vpop.xlane.xlu0 %354
    %v356 = vsel %vm43, %v334, 0.0
    %357 = vadd.xlane.f32.xlu0 %v356
    %v358 = vpop.xlane.xlu0 %357
    %v359 = vrsqrt.pop %v337
    %v360 = vmul.f32 %v337, %v359
    %vm361 = vcmp.eq.f32.partialorder %v337, inf
    %v362 = vsel %vm361, %v337, %v360
    %vm363 = vcmp.eq.f32.partialorder %v337, 0.0
    %v364 = vand.u32 %v337, 2147483648
    %v365 = vsel %vm363, %v364, %v362
    %v366 = vrsqrt.pop %v340
    %v367 = vmul.f32 %v340, %v366
    %vm368 = vcmp.eq.f32.partialorder %v340, inf
    %v369 = vsel %vm368, %v340, %v367
    %vm370 = vcmp.eq.f32.partialorder %v340, 0.0
    %v371 = vand.u32 %v340, 2147483648
    %v372 = vsel %vm370, %v371, %v369
    %v373 = vrsqrt.pop %v343
    %v374 = vmul.f32 %v343, %v373
    %vm375 = vcmp.eq.f32.partialorder %v343, inf
    %v376 = vsel %vm375, %v343, %v374
    %vm377 = vcmp.eq.f32.partialorder %v343, 0.0
    %v378 = vand.u32 %v343, 2147483648
    %v379 = vsel %vm377, %v378, %v376
    %v380 = vrsqrt.pop %v346
    %v381 = vmul.f32 %v346, %v380
    %vm382 = vcmp.eq.f32.partialorder %v346, inf
    %v383 = vsel %vm382, %v346, %v381
    %vm384 = vcmp.eq.f32.partialorder %v346, 0.0
    %v385 = vand.u32 %v346, 2147483648
    %v386 = vsel %vm384, %v385, %v383
    %v387 = vrsqrt.pop %v349
    %v388 = vmul.f32 %v349, %v387
    %vm389 = vcmp.eq.f32.partialorder %v349, inf
    %v390 = vsel %vm389, %v349, %v388
    %vm391 = vcmp.eq.f32.partialorder %v349, 0.0
    %v392 = vand.u32 %v349, 2147483648
    %v393 = vsel %vm391, %v392, %v390
    %v394 = vrsqrt.pop %v352
    %v395 = vmul.f32 %v352, %v394
    %vm396 = vcmp.eq.f32.partialorder %v352, inf
    %v397 = vsel %vm396, %v352, %v395
    %vm398 = vcmp.eq.f32.partialorder %v352, 0.0
    %v399 = vand.u32 %v352, 2147483648
    %v400 = vsel %vm398, %v399, %v397
    %v401 = vrsqrt.pop %v355
    %v402 = vmul.f32 %v355, %v401
    %vm403 = vcmp.eq.f32.partialorder %v355, inf
    %v404 = vsel %vm403, %v355, %v402
    %vm405 = vcmp.eq.f32.partialorder %v355, 0.0
    %v406 = vand.u32 %v355, 2147483648
    %v407 = vsel %vm405, %v406, %v404
    %v408 = vrsqrt.pop %v358
    %v409 = vmul.f32 %v358, %v408
    %vm410 = vcmp.eq.f32.partialorder %v358, inf
    %v411 = vsel %vm410, %v358, %v409
    %vm412 = vcmp.eq.f32.partialorder %v358, 0.0
    %v413 = vand.u32 %v358, 2147483648
    %v414 = vsel %vm412, %v413, %v411
    %v415 = vmax.f32 %v365, 1e-15
    %v416 = vmax.f32 %v372, 1e-15
    %v417 = vmax.f32 %v379, 1e-15
    %v418 = vmax.f32 %v386, 1e-15
    %v419 = vmax.f32 %v393, 1e-15
    %v420 = vmax.f32 %v400, 1e-15
    %v421 = vmax.f32 %v407, 1e-15
    %v422 = vmax.f32 %v414, 1e-15
    %v423 = vrcp.pop %v226
    %v424 = vmul.f32 %v415, %v423
    %v425 = vrcp.pop %v227
    %v426 = vmul.f32 %v416, %v425
    %v427 = vrcp.pop %v228
    %v428 = vmul.f32 %v417, %v427
    %v429 = vrcp.pop %v229
    %v430 = vmul.f32 %v418, %v429
    %v431 = vrcp.pop %v230
    %v432 = vmul.f32 %v419, %v431
    %v433 = vrcp.pop %v231
    %v434 = vmul.f32 %v420, %v433
    %v435 = vrcp.pop %v232
    %v436 = vmul.f32 %v421, %v435
    %v437 = vrcp.pop %v233
    %v438 = vmul.f32 %v422, %v437
    %v439 = vmax.f32 %v226, -0.9999999
    %v440 = vmax.f32 %v227, -0.9999999
    %v441 = vmax.f32 %v228, -0.9999999
    %v442 = vmax.f32 %v229, -0.9999999
    %v443 = vmax.f32 %v230, -0.9999999
    %v444 = vmax.f32 %v231, -0.9999999
    %v445 = vmax.f32 %v232, -0.9999999
    %v446 = vmax.f32 %v233, -0.9999999
    %v447 = vmin.f32 %v439, 0.9999999
    %v448 = vmin.f32 %v440, 0.9999999
    %v449 = vmin.f32 %v441, 0.9999999
    %v450 = vmin.f32 %v442, 0.9999999
    %v451 = vmin.f32 %v443, 0.9999999
    %v452 = vmin.f32 %v444, 0.9999999
    %v453 = vmin.f32 %v445, 0.9999999
    %v454 = vmin.f32 %v446, 0.9999999
    %v455 = vadd.f32 %v447, 1.0
    %v456 = vadd.f32 %v448, 1.0
    %v457 = vadd.f32 %v449, 1.0
    %v458 = vadd.f32 %v450, 1.0
    %v459 = vadd.f32 %v451, 1.0
    %v460 = vadd.f32 %v452, 1.0
    %v461 = vadd.f32 %v453, 1.0
    %v462 = vadd.f32 %v454, 1.0
    %v463 = vsub.f32 1.0, %v447
    %v464 = vsub.f32 1.0, %v448
    %v465 = vsub.f32 1.0, %v449
    %v466 = vsub.f32 1.0, %v450
    %v467 = vsub.f32 1.0, %v451
    %v468 = vsub.f32 1.0, %v452
    %v469 = vsub.f32 1.0, %v453
    %v470 = vsub.f32 1.0, %v454
    %v471 = vrcp.pop %v463
    %v472 = vmul.f32 %v455, %v471
    %v473 = vrcp.pop %v464
    %v474 = vmul.f32 %v456, %v473
    %v475 = vrcp.pop %v465
    %v476 = vmul.f32 %v457, %v475
    %v477 = vrcp.pop %v466
    %v478 = vmul.f32 %v458, %v477
    %v479 = vrcp.pop %v467
    %v480 = vmul.f32 %v459, %v479
    %v481 = vrcp.pop %v468
    %v482 = vmul.f32 %v460, %v481
    %v483 = vrcp.pop %v469
    %v484 = vmul.f32 %v461, %v483
    %v485 = vrcp.pop %v470
    %v486 = vmul.f32 %v462, %v485
    %v487 = vlog2.pop %v472
    %v488 = vmul.f32 %v487, 0.6931472
    %v489 = vlog2.pop %v474
    %v490 = vmul.f32 %v489, 0.6931472
    %v491 = vlog2.pop %v476
    %v492 = vmul.f32 %v491, 0.6931472
    %v493 = vlog2.pop %v478
    %v494 = vmul.f32 %v493, 0.6931472
    %v495 = vlog2.pop %v480
    %v496 = vmul.f32 %v495, 0.6931472
    %v497 = vlog2.pop %v482
    %v498 = vmul.f32 %v497, 0.6931472
    %v499 = vlog2.pop %v484
    %v500 = vmul.f32 %v499, 0.6931472
    %v501 = vlog2.pop %v486
    %v502 = vmul.f32 %v501, 0.6931472
    %v503 = vmul.f32 %v488, 0.5
    %v504 = vmul.f32 %v490, 0.5
    %v505 = vmul.f32 %v492, 0.5
    %v506 = vmul.f32 %v494, 0.5
    %v507 = vmul.f32 %v496, 0.5
    %v508 = vmul.f32 %v498, 0.5
    %v509 = vmul.f32 %v500, 0.5
    %v510 = vmul.f32 %v502, 0.5
    %v511 = vmul.f32 %v424, %v503
    %v512 = vmul.f32 %v426, %v504
    %v513 = vmul.f32 %v428, %v505
    %v514 = vmul.f32 %v430, %v506
    %v515 = vmul.f32 %v432, %v507
    %v516 = vmul.f32 %v434, %v508
    %v517 = vmul.f32 %v436, %v509
    %v518 = vmul.f32 %v438, %v510
    %v519 = vtanh.pop %v511
    %v520 = vtanh.pop %v512
    %v521 = vtanh.pop %v513
    %v522 = vtanh.pop %v514
    %v523 = vtanh.pop %v515
    %v524 = vtanh.pop %v516
    %v525 = vtanh.pop %v517
    %v526 = vtanh.pop %v518
    %vm527 = vcmp.eq.f32.partialorder %v365, 0.0
    %vm528 = vcmp.eq.f32.partialorder %v372, 0.0
    %vm529 = vcmp.eq.f32.partialorder %v379, 0.0
    %vm530 = vcmp.eq.f32.partialorder %v386, 0.0
    %vm531 = vcmp.eq.f32.partialorder %v393, 0.0
    %vm532 = vcmp.eq.f32.partialorder %v400, 0.0
    %vm533 = vcmp.eq.f32.partialorder %v407, 0.0
    %vm534 = vcmp.eq.f32.partialorder %v414, 0.0
    %v535 = vrcp.pop %v415
    %v536 = vmul.f32 %v519, %v535
    %v537 = vrcp.pop %v416
    %v538 = vmul.f32 %v520, %v537
    %v539 = vrcp.pop %v417
    %v540 = vmul.f32 %v521, %v539
    %v541 = vrcp.pop %v418
    %v542 = vmul.f32 %v522, %v541
    %v543 = vrcp.pop %v419
    %v544 = vmul.f32 %v523, %v543
    %v545 = vrcp.pop %v420
    %v546 = vmul.f32 %v524, %v545
    %v547 = vrcp.pop %v421
    %v548 = vmul.f32 %v525, %v547
    %v549 = vrcp.pop %v422
    %v550 = vmul.f32 %v526, %v549
    %v551 = vsel %vm527, 0.0, %v536
    %v552 = vsel %vm528, 0.0, %v538
    %v553 = vsel %vm529, 0.0, %v540
    %v554 = vsel %vm530, 0.0, %v542
    %v555 = vsel %vm531, 0.0, %v544
    %v556 = vsel %vm532, 0.0, %v546
    %v557 = vsel %vm533, 0.0, %v548
    %v558 = vsel %vm534, 0.0, %v550
    %v559 = vmul.f32 %v551, %v297
    %v560 = vmul.f32 %v552, %v300
    %v561 = vmul.f32 %v553, %v305
    %v562 = vmul.f32 %v554, %v308
    %v563 = vmul.f32 %v555, %v313
    %v564 = vmul.f32 %v556, %v316
    %v565 = vmul.f32 %v557, %v321
    %v566 = vmul.f32 %v558, %v324
    %v567 = vsel %vm527, 0.0, %v519
    %v568 = vsel %vm528, 0.0, %v520
    %v569 = vsel %vm529, 0.0, %v521
    %v570 = vsel %vm530, 0.0, %v522
    %v571 = vsel %vm531, 0.0, %v523
    %v572 = vsel %vm532, 0.0, %v524
    %v573 = vsel %vm533, 0.0, %v525
    %v574 = vsel %vm534, 0.0, %v526
    %v576 = vlaneseq
    %v577 = vshrl.u32 %v576, 7
    %v578 = vsub.s32 0, %v577
    %v579 = vrot.slane %v224, %v578
    %v581 = vmul.f32 %v559, %v579
    %v582 = vmul.f32 %v560, %v579
    %v583 = vmul.f32 %v561, %v579
    %v584 = vmul.f32 %v562, %v579
    %v585 = vmul.f32 %v563, %v579
    %v586 = vmul.f32 %v564, %v579
    %v587 = vmul.f32 %v565, %v579
    %v588 = vmul.f32 %v566, %v579
    %v589 = vsel %vm43, %v581, 0.0
    %590 = vadd.xlane.f32.xlu0 %v589
    %v591 = vpop.xlane.xlu0 %590
    %v592 = vsel %vm43, %v582, 0.0
    %593 = vadd.xlane.f32.xlu0 %v592
    %v594 = vpop.xlane.xlu0 %593
    %v595 = vsel %vm43, %v583, 0.0
    %596 = vadd.xlane.f32.xlu0 %v595
    %v597 = vpop.xlane.xlu0 %596
    %v598 = vsel %vm43, %v584, 0.0
    %599 = vadd.xlane.f32.xlu0 %v598
    %v600 = vpop.xlane.xlu0 %599
    %v601 = vsel %vm43, %v585, 0.0
    %602 = vadd.xlane.f32.xlu0 %v601
    %v603 = vpop.xlane.xlu0 %602
    %v604 = vsel %vm43, %v586, 0.0
    %605 = vadd.xlane.f32.xlu0 %v604
    %v606 = vpop.xlane.xlu0 %605
    %v607 = vsel %vm43, %v587, 0.0
    %608 = vadd.xlane.f32.xlu0 %v607
    %v609 = vpop.xlane.xlu0 %608
    %v610 = vsel %vm43, %v588, 0.0
    %611 = vadd.xlane.f32.xlu0 %v610
    %v612 = vpop.xlane.xlu0 %611
    %v613 = vmul.f32 %v567, %v567
    %v614 = vmul.f32 %v568, %v568
    %v615 = vmul.f32 %v569, %v569
    %v616 = vmul.f32 %v570, %v570
    %v617 = vmul.f32 %v571, %v571
    %v618 = vmul.f32 %v572, %v572
    %v619 = vmul.f32 %v573, %v573
    %v620 = vmul.f32 %v574, %v574
    %v621 = vmul.f32 %v591, 2.0
    %v622 = vmul.f32 %v594, 2.0
    %v623 = vmul.f32 %v597, 2.0
    %v624 = vmul.f32 %v600, 2.0
    %v625 = vmul.f32 %v603, 2.0
    %v626 = vmul.f32 %v606, 2.0
    %v627 = vmul.f32 %v609, 2.0
    %v628 = vmul.f32 %v612, 2.0
    %v629 = vadd.f32 %v621, 1.0
    %v630 = vadd.f32 %v622, 1.0
    %v631 = vadd.f32 %v623, 1.0
    %v632 = vadd.f32 %v624, 1.0
    %v633 = vadd.f32 %v625, 1.0
    %v634 = vadd.f32 %v626, 1.0
    %v635 = vadd.f32 %v627, 1.0
    %v636 = vadd.f32 %v628, 1.0
    %v638 = vlaneseq
    %v639 = vshrl.u32 %v638, 7
    %v640 = vsub.s32 0, %v639
    %v641 = vrot.slane %v225, %v640
    %v643 = vadd.f32 %v629, %v641
    %v644 = vadd.f32 %v630, %v641
    %v645 = vadd.f32 %v631, %v641
    %v646 = vadd.f32 %v632, %v641
    %v647 = vadd.f32 %v633, %v641
    %v648 = vadd.f32 %v634, %v641
    %v649 = vadd.f32 %v635, %v641
    %v650 = vadd.f32 %v636, %v641
    %652 = vset.pattern.permute.xlu0 0
    %653 = vperm.xlu0 %652, %v643
    %v654 = vpop.permute.xlu0 %653
    %657 = vset.pattern.permute.xlu0 0
    %658 = vperm.xlu0 %657, %v644
    %v659 = vpop.permute.xlu0 %658
    %662 = vset.pattern.permute.xlu0 0
    %663 = vperm.xlu0 %662, %v645
    %v664 = vpop.permute.xlu0 %663
    %667 = vset.pattern.permute.xlu0 0
    %668 = vperm.xlu0 %667, %v646
    %v669 = vpop.permute.xlu0 %668
    %672 = vset.pattern.permute.xlu0 0
    %673 = vperm.xlu0 %672, %v647
    %v674 = vpop.permute.xlu0 %673
    %677 = vset.pattern.permute.xlu0 0
    %678 = vperm.xlu0 %677, %v648
    %v679 = vpop.permute.xlu0 %678
    %682 = vset.pattern.permute.xlu0 0
    %683 = vperm.xlu0 %682, %v649
    %v684 = vpop.permute.xlu0 %683
    %687 = vset.pattern.permute.xlu0 0
    %688 = vperm.xlu0 %687, %v650
    %v689 = vpop.permute.xlu0 %688
    %v691 = vmul.f32 %v654, %v559
    %v692 = vmul.f32 %v659, %v560
    %v693 = vmul.f32 %v664, %v561
    %v694 = vmul.f32 %v669, %v562
    %v695 = vmul.f32 %v674, %v563
    %v696 = vmul.f32 %v679, %v564
    %v697 = vmul.f32 %v684, %v565
    %v698 = vmul.f32 %v689, %v566
    %v699 = vsub.f32 1.0, %v613
    %v700 = vsub.f32 1.0, %v614
    %v701 = vsub.f32 1.0, %v615
    %v702 = vsub.f32 1.0, %v616
    %v703 = vsub.f32 1.0, %v617
    %v704 = vsub.f32 1.0, %v618
    %v705 = vsub.f32 1.0, %v619
    %v706 = vsub.f32 1.0, %v620
    %v707 = vmul.f32 %v699, %v579
    %v708 = vmul.f32 %v700, %v579
    %v709 = vmul.f32 %v701, %v579
    %v710 = vmul.f32 %v702, %v579
    %v711 = vmul.f32 %v703, %v579
    %v712 = vmul.f32 %v704, %v579
    %v713 = vmul.f32 %v705, %v579
    %v714 = vmul.f32 %v706, %v579
    %v715 = vadd.f32 %v691, %v707
    %v716 = vadd.f32 %v692, %v708
    %v717 = vadd.f32 %v693, %v709
    %v718 = vadd.f32 %v694, %v710
    %v719 = vadd.f32 %v695, %v711
    %v720 = vadd.f32 %v696, %v712
    %v721 = vadd.f32 %v697, %v713
    %v722 = vadd.f32 %v698, %v714
    %v723 = vmul.f32 %v613, %v641
    %v724 = vmul.f32 %v614, %v641
    %v725 = vmul.f32 %v615, %v641
    %v726 = vmul.f32 %v616, %v641
    %v727 = vmul.f32 %v617, %v641
    %v728 = vmul.f32 %v618, %v641
    %v729 = vmul.f32 %v619, %v641
    %v730 = vmul.f32 %v620, %v641
    %v731 = vadd.f32 %v629, %v723
    %v732 = vadd.f32 %v630, %v724
    %v733 = vadd.f32 %v631, %v725
    %v734 = vadd.f32 %v632, %v726
    %v735 = vadd.f32 %v633, %v727
    %v736 = vadd.f32 %v634, %v728
    %v737 = vadd.f32 %v635, %v729
    %v738 = vadd.f32 %v636, %v730
    %v739 = vmax.f32 %v731, 1e-15
    %v740 = vmax.f32 %v732, 1e-15
    %v741 = vmax.f32 %v733, 1e-15
    %v742 = vmax.f32 %v734, 1e-15
    %v743 = vmax.f32 %v735, 1e-15
    %v744 = vmax.f32 %v736, 1e-15
    %v745 = vmax.f32 %v737, 1e-15
    %v746 = vmax.f32 %v738, 1e-15
    %v747 = vrcp.pop %v739
    %v748 = vmul.f32 1.0, %v747
    %v749 = vrcp.pop %v740
    %v750 = vmul.f32 1.0, %v749
    %v751 = vrcp.pop %v741
    %v752 = vmul.f32 1.0, %v751
    %v753 = vrcp.pop %v742
    %v754 = vmul.f32 1.0, %v753
    %v755 = vrcp.pop %v743
    %v756 = vmul.f32 1.0, %v755
    %v757 = vrcp.pop %v744
    %v758 = vmul.f32 1.0, %v757
    %v759 = vrcp.pop %v745
    %v760 = vmul.f32 1.0, %v759
    %v761 = vrcp.pop %v746
    %v762 = vmul.f32 1.0, %v761
    %764 = vset.pattern.permute.xlu0 0
    %765 = vperm.xlu0 %764, %v748
    %v766 = vpop.permute.xlu0 %765
    %769 = vset.pattern.permute.xlu0 0
    %770 = vperm.xlu0 %769, %v750
    %v771 = vpop.permute.xlu0 %770
    %774 = vset.pattern.permute.xlu0 0
    %775 = vperm.xlu0 %774, %v752
    %v776 = vpop.permute.xlu0 %775
    %779 = vset.pattern.permute.xlu0 0
    %780 = vperm.xlu0 %779, %v754
    %v781 = vpop.permute.xlu0 %780
    %784 = vset.pattern.permute.xlu0 0
    %785 = vperm.xlu0 %784, %v756
    %v786 = vpop.permute.xlu0 %785
    %789 = vset.pattern.permute.xlu0 0
    %790 = vperm.xlu0 %789, %v758
    %v791 = vpop.permute.xlu0 %790
    %794 = vset.pattern.permute.xlu0 0
    %795 = vperm.xlu0 %794, %v760
    %v796 = vpop.permute.xlu0 %795
    %799 = vset.pattern.permute.xlu0 0
    %800 = vperm.xlu0 %799, %v762
    %v801 = vpop.permute.xlu0 %800
    %v803 = vmul.f32 %v715, %v766
    %v804 = vmul.f32 %v716, %v771
    %v805 = vmul.f32 %v717, %v776
    %v806 = vmul.f32 %v718, %v781
    %v807 = vmul.f32 %v719, %v786
    %v808 = vmul.f32 %v720, %v791
    %v809 = vmul.f32 %v721, %v796
    %v810 = vmul.f32 %v722, %v801
    %v811 = vmul.f32 %v803, %v803
    %v812 = vmul.f32 %v804, %v804
    %v813 = vmul.f32 %v805, %v805
    %v814 = vmul.f32 %v806, %v806
    %v815 = vmul.f32 %v807, %v807
    %v816 = vmul.f32 %v808, %v808
    %v817 = vmul.f32 %v809, %v809
    %v818 = vmul.f32 %v810, %v810
    %v819 = vsel %vm43, %v811, 0.0
    %820 = vadd.xlane.f32.xlu0 %v819
    %v821 = vpop.xlane.xlu0 %820
    %v822 = vsel %vm43, %v812, 0.0
    %823 = vadd.xlane.f32.xlu0 %v822
    %v824 = vpop.xlane.xlu0 %823
    %v825 = vsel %vm43, %v813, 0.0
    %826 = vadd.xlane.f32.xlu0 %v825
    %v827 = vpop.xlane.xlu0 %826
    %v828 = vsel %vm43, %v814, 0.0
    %829 = vadd.xlane.f32.xlu0 %v828
    %v830 = vpop.xlane.xlu0 %829
    %v831 = vsel %vm43, %v815, 0.0
    %832 = vadd.xlane.f32.xlu0 %v831
    %v833 = vpop.xlane.xlu0 %832
    %v834 = vsel %vm43, %v816, 0.0
    %835 = vadd.xlane.f32.xlu0 %v834
    %v836 = vpop.xlane.xlu0 %835
    %v837 = vsel %vm43, %v817, 0.0
    %838 = vadd.xlane.f32.xlu0 %v837
    %v839 = vpop.xlane.xlu0 %838
    %v840 = vsel %vm43, %v818, 0.0
    %841 = vadd.xlane.f32.xlu0 %v840
    %v842 = vpop.xlane.xlu0 %841
    %v843 = vrsqrt.pop %v821
    %v844 = vmul.f32 %v821, %v843
    %vm845 = vcmp.eq.f32.partialorder %v821, inf
    %v846 = vsel %vm845, %v821, %v844
    %vm847 = vcmp.eq.f32.partialorder %v821, 0.0
    %v848 = vand.u32 %v821, 2147483648
    %v849 = vsel %vm847, %v848, %v846
    %v850 = vrsqrt.pop %v824
    %v851 = vmul.f32 %v824, %v850
    %vm852 = vcmp.eq.f32.partialorder %v824, inf
    %v853 = vsel %vm852, %v824, %v851
    %vm854 = vcmp.eq.f32.partialorder %v824, 0.0
    %v855 = vand.u32 %v824, 2147483648
    %v856 = vsel %vm854, %v855, %v853
    %v857 = vrsqrt.pop %v827
    %v858 = vmul.f32 %v827, %v857
    %vm859 = vcmp.eq.f32.partialorder %v827, inf
    %v860 = vsel %vm859, %v827, %v858
    %vm861 = vcmp.eq.f32.partialorder %v827, 0.0
    %v862 = vand.u32 %v827, 2147483648
    %v863 = vsel %vm861, %v862, %v860
    %v864 = vrsqrt.pop %v830
    %v865 = vmul.f32 %v830, %v864
    %vm866 = vcmp.eq.f32.partialorder %v830, inf
    %v867 = vsel %vm866, %v830, %v865
    %vm868 = vcmp.eq.f32.partialorder %v830, 0.0
    %v869 = vand.u32 %v830, 2147483648
    %v870 = vsel %vm868, %v869, %v867
    %v871 = vrsqrt.pop %v833
    %v872 = vmul.f32 %v833, %v871
    %vm873 = vcmp.eq.f32.partialorder %v833, inf
    %v874 = vsel %vm873, %v833, %v872
    %vm875 = vcmp.eq.f32.partialorder %v833, 0.0
    %v876 = vand.u32 %v833, 2147483648
    %v877 = vsel %vm875, %v876, %v874
    %v878 = vrsqrt.pop %v836
    %v879 = vmul.f32 %v836, %v878
    %vm880 = vcmp.eq.f32.partialorder %v836, inf
    %v881 = vsel %vm880, %v836, %v879
    %vm882 = vcmp.eq.f32.partialorder %v836, 0.0
    %v883 = vand.u32 %v836, 2147483648
    %v884 = vsel %vm882, %v883, %v881
    %v885 = vrsqrt.pop %v839
    %v886 = vmul.f32 %v839, %v885
    %vm887 = vcmp.eq.f32.partialorder %v839, inf
    %v888 = vsel %vm887, %v839, %v886
    %vm889 = vcmp.eq.f32.partialorder %v839, 0.0
    %v890 = vand.u32 %v839, 2147483648
    %v891 = vsel %vm889, %v890, %v888
    %v892 = vrsqrt.pop %v842
    %v893 = vmul.f32 %v842, %v892
    %vm894 = vcmp.eq.f32.partialorder %v842, inf
    %v895 = vsel %vm894, %v842, %v893
    %vm896 = vcmp.eq.f32.partialorder %v842, 0.0
    %v897 = vand.u32 %v842, 2147483648
    %v898 = vsel %vm896, %v897, %v895
    %v899 = vmax.f32 %v849, -0.9999999
    %v900 = vmax.f32 %v856, -0.9999999
    %v901 = vmax.f32 %v863, -0.9999999
    %v902 = vmax.f32 %v870, -0.9999999
    %v903 = vmax.f32 %v877, -0.9999999
    %v904 = vmax.f32 %v884, -0.9999999
    %v905 = vmax.f32 %v891, -0.9999999
    %v906 = vmax.f32 %v898, -0.9999999
    %v907 = vmin.f32 %v899, 0.9999999
    %v908 = vmin.f32 %v900, 0.9999999
    %v909 = vmin.f32 %v901, 0.9999999
    %v910 = vmin.f32 %v902, 0.9999999
    %v911 = vmin.f32 %v903, 0.9999999
    %v912 = vmin.f32 %v904, 0.9999999
    %v913 = vmin.f32 %v905, 0.9999999
    %v914 = vmin.f32 %v906, 0.9999999
    %v915 = vadd.f32 %v907, 1.0
    %v916 = vadd.f32 %v908, 1.0
    %v917 = vadd.f32 %v909, 1.0
    %v918 = vadd.f32 %v910, 1.0
    %v919 = vadd.f32 %v911, 1.0
    %v920 = vadd.f32 %v912, 1.0
    %v921 = vadd.f32 %v913, 1.0
    %v922 = vadd.f32 %v914, 1.0
    %v923 = vsub.f32 1.0, %v907
    %v924 = vsub.f32 1.0, %v908
    %v925 = vsub.f32 1.0, %v909
    %v926 = vsub.f32 1.0, %v910
    %v927 = vsub.f32 1.0, %v911
    %v928 = vsub.f32 1.0, %v912
    %v929 = vsub.f32 1.0, %v913
    %v930 = vsub.f32 1.0, %v914
    %v931 = vrcp.pop %v923
    %v932 = vmul.f32 %v915, %v931
    %v933 = vrcp.pop %v924
    %v934 = vmul.f32 %v916, %v933
    %v935 = vrcp.pop %v925
    %v936 = vmul.f32 %v917, %v935
    %v937 = vrcp.pop %v926
    %v938 = vmul.f32 %v918, %v937
    %v939 = vrcp.pop %v927
    %v940 = vmul.f32 %v919, %v939
    %v941 = vrcp.pop %v928
    %v942 = vmul.f32 %v920, %v941
    %v943 = vrcp.pop %v929
    %v944 = vmul.f32 %v921, %v943
    %v945 = vrcp.pop %v930
    %v946 = vmul.f32 %v922, %v945
    %v947 = vlog2.pop %v932
    %v948 = vmul.f32 %v947, 0.6931472
    %v949 = vlog2.pop %v934
    %v950 = vmul.f32 %v949, 0.6931472
    %v951 = vlog2.pop %v936
    %v952 = vmul.f32 %v951, 0.6931472
    %v953 = vlog2.pop %v938
    %v954 = vmul.f32 %v953, 0.6931472
    %v955 = vlog2.pop %v940
    %v956 = vmul.f32 %v955, 0.6931472
    %v957 = vlog2.pop %v942
    %v958 = vmul.f32 %v957, 0.6931472
    %v959 = vlog2.pop %v944
    %v960 = vmul.f32 %v959, 0.6931472
    %v961 = vlog2.pop %v946
    %v962 = vmul.f32 %v961, 0.6931472
    %v963 = vmul.f32 %v948, 0.5
    %v964 = vmul.f32 %v950, 0.5
    %v965 = vmul.f32 %v952, 0.5
    %v966 = vmul.f32 %v954, 0.5
    %v967 = vmul.f32 %v956, 0.5
    %v968 = vmul.f32 %v958, 0.5
    %v969 = vmul.f32 %v960, 0.5
    %v970 = vmul.f32 %v962, 0.5
    %v971 = vmax.f32 %v849, 1e-15
    %v972 = vmax.f32 %v856, 1e-15
    %v973 = vmax.f32 %v863, 1e-15
    %v974 = vmax.f32 %v870, 1e-15
    %v975 = vmax.f32 %v877, 1e-15
    %v976 = vmax.f32 %v884, 1e-15
    %v977 = vmax.f32 %v891, 1e-15
    %v978 = vmax.f32 %v898, 1e-15
    %v979 = vrcp.pop %v971
    %v980 = vmul.f32 %v963, %v979
    %v981 = vrcp.pop %v972
    %v982 = vmul.f32 %v964, %v981
    %v983 = vrcp.pop %v973
    %v984 = vmul.f32 %v965, %v983
    %v985 = vrcp.pop %v974
    %v986 = vmul.f32 %v966, %v985
    %v987 = vrcp.pop %v975
    %v988 = vmul.f32 %v967, %v987
    %v989 = vrcp.pop %v976
    %v990 = vmul.f32 %v968, %v989
    %v991 = vrcp.pop %v977
    %v992 = vmul.f32 %v969, %v991
    %v993 = vrcp.pop %v978
    %v994 = vmul.f32 %v970, %v993
    %v995 = vmul.f32 %v803, %v980
    %v996 = vmul.f32 %v804, %v982
    %v997 = vmul.f32 %v805, %v984
    %v998 = vmul.f32 %v806, %v986
    %v999 = vmul.f32 %v807, %v988
    %v1000 = vmul.f32 %v808, %v990
    %v1001 = vmul.f32 %v809, %v992
    %v1002 = vmul.f32 %v810, %v994
    %v1003 = vtanh.pop %v995
    %v1004 = vtanh.pop %v996
    %v1005 = vtanh.pop %v997
    %v1006 = vtanh.pop %v998
    %v1007 = vtanh.pop %v999
    %v1008 = vtanh.pop %v1000
    %v1009 = vtanh.pop %v1001
    %v1010 = vtanh.pop %v1002
    %v1011 = vmul.f32 %v1003, %v1003
    %v1012 = vmul.f32 %v1004, %v1004
    %v1013 = vmul.f32 %v1005, %v1005
    %v1014 = vmul.f32 %v1006, %v1006
    %v1015 = vmul.f32 %v1007, %v1007
    %v1016 = vmul.f32 %v1008, %v1008
    %v1017 = vmul.f32 %v1009, %v1009
    %v1018 = vmul.f32 %v1010, %v1010
    %v1019 = vsel %vm43, %v1011, 0.0
    %1020 = vadd.xlane.f32.xlu0 %v1019
    %v1021 = vpop.xlane.xlu0 %1020
    %v1022 = vsel %vm43, %v1012, 0.0
    %1023 = vadd.xlane.f32.xlu0 %v1022
    %v1024 = vpop.xlane.xlu0 %1023
    %v1025 = vsel %vm43, %v1013, 0.0
    %1026 = vadd.xlane.f32.xlu0 %v1025
    %v1027 = vpop.xlane.xlu0 %1026
    %v1028 = vsel %vm43, %v1014, 0.0
    %1029 = vadd.xlane.f32.xlu0 %v1028
    %v1030 = vpop.xlane.xlu0 %1029
    %v1031 = vsel %vm43, %v1015, 0.0
    %1032 = vadd.xlane.f32.xlu0 %v1031
    %v1033 = vpop.xlane.xlu0 %1032
    %v1034 = vsel %vm43, %v1016, 0.0
    %1035 = vadd.xlane.f32.xlu0 %v1034
    %v1036 = vpop.xlane.xlu0 %1035
    %v1037 = vsel %vm43, %v1017, 0.0
    %1038 = vadd.xlane.f32.xlu0 %v1037
    %v1039 = vpop.xlane.xlu0 %1038
    %v1040 = vsel %vm43, %v1018, 0.0
    %1041 = vadd.xlane.f32.xlu0 %v1040
    %v1042 = vpop.xlane.xlu0 %1041
    %v1043 = vrsqrt.pop %v1021
    %v1044 = vmul.f32 %v1021, %v1043
    %vm1045 = vcmp.eq.f32.partialorder %v1021, inf
    %v1046 = vsel %vm1045, %v1021, %v1044
    %vm1047 = vcmp.eq.f32.partialorder %v1021, 0.0
    %v1048 = vand.u32 %v1021, 2147483648
    %v1049 = vsel %vm1047, %v1048, %v1046
    %v1050 = vrsqrt.pop %v1024
    %v1051 = vmul.f32 %v1024, %v1050
    %vm1052 = vcmp.eq.f32.partialorder %v1024, inf
    %v1053 = vsel %vm1052, %v1024, %v1051
    %vm1054 = vcmp.eq.f32.partialorder %v1024, 0.0
    %v1055 = vand.u32 %v1024, 2147483648
    %v1056 = vsel %vm1054, %v1055, %v1053
    %v1057 = vrsqrt.pop %v1027
    %v1058 = vmul.f32 %v1027, %v1057
    %vm1059 = vcmp.eq.f32.partialorder %v1027, inf
    %v1060 = vsel %vm1059, %v1027, %v1058
    %vm1061 = vcmp.eq.f32.partialorder %v1027, 0.0
    %v1062 = vand.u32 %v1027, 2147483648
    %v1063 = vsel %vm1061, %v1062, %v1060
    %v1064 = vrsqrt.pop %v1030
    %v1065 = vmul.f32 %v1030, %v1064
    %vm1066 = vcmp.eq.f32.partialorder %v1030, inf
    %v1067 = vsel %vm1066, %v1030, %v1065
    %vm1068 = vcmp.eq.f32.partialorder %v1030, 0.0
    %v1069 = vand.u32 %v1030, 2147483648
    %v1070 = vsel %vm1068, %v1069, %v1067
    %v1071 = vrsqrt.pop %v1033
    %v1072 = vmul.f32 %v1033, %v1071
    %vm1073 = vcmp.eq.f32.partialorder %v1033, inf
    %v1074 = vsel %vm1073, %v1033, %v1072
    %vm1075 = vcmp.eq.f32.partialorder %v1033, 0.0
    %v1076 = vand.u32 %v1033, 2147483648
    %v1077 = vsel %vm1075, %v1076, %v1074
    %v1078 = vrsqrt.pop %v1036
    %v1079 = vmul.f32 %v1036, %v1078
    %vm1080 = vcmp.eq.f32.partialorder %v1036, inf
    %v1081 = vsel %vm1080, %v1036, %v1079
    %vm1082 = vcmp.eq.f32.partialorder %v1036, 0.0
    %v1083 = vand.u32 %v1036, 2147483648
    %v1084 = vsel %vm1082, %v1083, %v1081
    %v1085 = vrsqrt.pop %v1039
    %v1086 = vmul.f32 %v1039, %v1085
    %vm1087 = vcmp.eq.f32.partialorder %v1039, inf
    %v1088 = vsel %vm1087, %v1039, %v1086
    %vm1089 = vcmp.eq.f32.partialorder %v1039, 0.0
    %v1090 = vand.u32 %v1039, 2147483648
    %v1091 = vsel %vm1089, %v1090, %v1088
    %v1092 = vrsqrt.pop %v1042
    %v1093 = vmul.f32 %v1042, %v1092
    %vm1094 = vcmp.eq.f32.partialorder %v1042, inf
    %v1095 = vsel %vm1094, %v1042, %v1093
    %vm1096 = vcmp.eq.f32.partialorder %v1042, 0.0
    %v1097 = vand.u32 %v1042, 2147483648
    %v1098 = vsel %vm1096, %v1097, %v1095
    %v1099 = vtanh.pop %v1049
    %v1100 = vtanh.pop %v1056
    %v1101 = vtanh.pop %v1063
    %v1102 = vtanh.pop %v1070
    %v1103 = vtanh.pop %v1077
    %v1104 = vtanh.pop %v1084
    %v1105 = vtanh.pop %v1091
    %v1106 = vtanh.pop %v1098
    %v1107 = vmax.f32 %v1049, 1e-15
    %v1108 = vmax.f32 %v1056, 1e-15
    %v1109 = vmax.f32 %v1063, 1e-15
    %v1110 = vmax.f32 %v1070, 1e-15
    %v1111 = vmax.f32 %v1077, 1e-15
    %v1112 = vmax.f32 %v1084, 1e-15
    %v1113 = vmax.f32 %v1091, 1e-15
    %v1114 = vmax.f32 %v1098, 1e-15
    %v1115 = vrcp.pop %v1107
    %v1116 = vmul.f32 %v1099, %v1115
    %v1117 = vrcp.pop %v1108
    %v1118 = vmul.f32 %v1100, %v1117
    %v1119 = vrcp.pop %v1109
    %v1120 = vmul.f32 %v1101, %v1119
    %v1121 = vrcp.pop %v1110
    %v1122 = vmul.f32 %v1102, %v1121
    %v1123 = vrcp.pop %v1111
    %v1124 = vmul.f32 %v1103, %v1123
    %v1125 = vrcp.pop %v1112
    %v1126 = vmul.f32 %v1104, %v1125
    %v1127 = vrcp.pop %v1113
    %v1128 = vmul.f32 %v1105, %v1127
    %v1129 = vrcp.pop %v1114
    %v1130 = vmul.f32 %v1106, %v1129
    %v1131 = vmul.f32 %v1003, %v1116
    %v1132 = vmul.f32 %v1004, %v1118
    %v1133 = vmul.f32 %v1005, %v1120
    %v1134 = vmul.f32 %v1006, %v1122
    %v1135 = vmul.f32 %v1007, %v1124
    %v1136 = vmul.f32 %v1008, %v1126
    %v1137 = vmul.f32 %v1009, %v1128
    %v1138 = vmul.f32 %v1010, %v1130
    %vm1139 = vcmp.gt.f32.partialorder %v1099, 0.99999
    %vm1140 = vcmp.gt.f32.partialorder %v1100, 0.99999
    %vm1141 = vcmp.gt.f32.partialorder %v1101, 0.99999
    %vm1142 = vcmp.gt.f32.partialorder %v1102, 0.99999
    %vm1143 = vcmp.gt.f32.partialorder %v1103, 0.99999
    %vm1144 = vcmp.gt.f32.partialorder %v1104, 0.99999
    %vm1145 = vcmp.gt.f32.partialorder %v1105, 0.99999
    %vm1146 = vcmp.gt.f32.partialorder %v1106, 0.99999
    %v1147 = vmax.f32 %v1099, 1e-15
    %v1148 = vmax.f32 %v1100, 1e-15
    %v1149 = vmax.f32 %v1101, 1e-15
    %v1150 = vmax.f32 %v1102, 1e-15
    %v1151 = vmax.f32 %v1103, 1e-15
    %v1152 = vmax.f32 %v1104, 1e-15
    %v1153 = vmax.f32 %v1105, 1e-15
    %v1154 = vmax.f32 %v1106, 1e-15
    %v1155 = vrcp.pop %v1147
    %v1156 = vmul.f32 0.99999, %v1155
    %v1157 = vrcp.pop %v1148
    %v1158 = vmul.f32 0.99999, %v1157
    %v1159 = vrcp.pop %v1149
    %v1160 = vmul.f32 0.99999, %v1159
    %v1161 = vrcp.pop %v1150
    %v1162 = vmul.f32 0.99999, %v1161
    %v1163 = vrcp.pop %v1151
    %v1164 = vmul.f32 0.99999, %v1163
    %v1165 = vrcp.pop %v1152
    %v1166 = vmul.f32 0.99999, %v1165
    %v1167 = vrcp.pop %v1153
    %v1168 = vmul.f32 0.99999, %v1167
    %v1169 = vrcp.pop %v1154
    %v1170 = vmul.f32 0.99999, %v1169
    %v1171 = vsel %vm1139, %v1156, 1.0
    %v1172 = vsel %vm1140, %v1158, 1.0
    %v1173 = vsel %vm1141, %v1160, 1.0
    %v1174 = vsel %vm1142, %v1162, 1.0
    %v1175 = vsel %vm1143, %v1164, 1.0
    %v1176 = vsel %vm1144, %v1166, 1.0
    %v1177 = vsel %vm1145, %v1168, 1.0
    %v1178 = vsel %vm1146, %v1170, 1.0
    %v1179 = vmul.f32 %v1131, %v1171
    %v1180 = vmul.f32 %v1132, %v1172
    %v1181 = vmul.f32 %v1133, %v1173
    %v1182 = vmul.f32 %v1134, %v1174
    %v1183 = vmul.f32 %v1135, %v1175
    %v1184 = vmul.f32 %v1136, %v1176
    %v1185 = vmul.f32 %v1137, %v1177
    %v1186 = vmul.f32 %v1138, %v1178
    %v1187 = vmin.f32 %v1099, 0.99999
    %v1188 = vmin.f32 %v1100, 0.99999
    %v1189 = vmin.f32 %v1101, 0.99999
    %v1190 = vmin.f32 %v1102, 0.99999
    %v1191 = vmin.f32 %v1103, 0.99999
    %v1192 = vmin.f32 %v1104, 0.99999
    %v1193 = vmin.f32 %v1105, 0.99999
    %v1194 = vmin.f32 %v1106, 0.99999
    %s1195 = scalar_lea.vmem %s1, 16
    %v1196 = vld [vmem:[%s1195] sm:$0xf]
    %v1197 = vld [vmem:[%s1195 + $0x4] sm:$0xf]
    %v1198 = vld [vmem:[%s1195 + $0x8] sm:$0xf]
    %v1199 = vld [vmem:[%s1195 + $0xc] sm:$0xf]
    %s1200 = scalar_lea.vmem %s2, 1
    %v1201 = vld [vmem:[%s1200] sm:$0x1]
    %s1202 = scalar_lea.vmem %s3, 1
    %v1203 = vld [vmem:[%s1202] sm:$0x1]
    %v1204 = vmax.f32 %v1187, 1e-15
    %v1205 = vmax.f32 %v1188, 1e-15
    %v1206 = vmax.f32 %v1189, 1e-15
    %v1207 = vmax.f32 %v1190, 1e-15
    %v1208 = vmax.f32 %v1191, 1e-15
    %v1209 = vmax.f32 %v1192, 1e-15
    %v1210 = vmax.f32 %v1193, 1e-15
    %v1211 = vmax.f32 %v1194, 1e-15
    %v1212 = vpack.c.bf16 %v1180, %v1179
    %v1213 = vpack.c.bf16 %v1182, %v1181
    %v1214 = vpack.c.bf16 %v1184, %v1183
    %v1215 = vpack.c.bf16 %v1186, %v1185
    %v1220 = vunpack.c.l.b16 %v1196
    %v1221 = vunpack.c.l.b16 %v1197
    %v1222 = vunpack.c.l.b16 %v1198
    %v1223 = vunpack.c.l.b16 %v1199
    %v1224 = vpack.c.b16 %v1221, %v1220
    %v1225 = vpack.c.b16 %v1223, %v1222
    %v1229 = vsel %vm43, %v1212, 0
    %v1232 = vsel %vm43, %v1213, 0
    %v1235 = vsel %vm43, %v1214, 0
    %v1238 = vsel %vm43, %v1215, 0
    %1240 = vmatprep.subr.bf16.mxu0 0
    %1241 = vmatpush1.bf16.msra.mxu0 0
    %1242 = vmatprep.subr.bf16.mxu0 0
    %1243 = vmatpush1.bf16.msra.mxu0 0
    %1244 = vmatprep.subr.bf16.mxu0 0
    %1245 = vmatpush1.bf16.msra.mxu0 0
    %1246 = vmatprep.subr.bf16.mxu0 0
    %1247 = vmatpush1.bf16.msra.mxu0 0
    %1248 = vmatprep.subr.bf16.mxu0 0
    %1249 = vmatpush1.bf16.msra.mxu0 0
    %1250 = vmatprep.subr.bf16.mxu0 0
    %1251 = vmatpush1.bf16.msra.mxu0 0
    %1252 = vmatprep.subr.bf16.mxu0 0
    %1253 = vmatpush1.bf16.msra.mxu0 %v1225
    %1254 = vmatprep.subr.bf16.mxu0 0
    %1255 = vmatpush1.bf16.msra.mxu0 %v1224
    %1256 = vmatprep.subr.bf16.mxu0 0
    %1257 = vmatpush2.bf16.msra.mxu0 0
    %1258 = vmatprep.subr.bf16.mxu0 0
    %1259 = vmatpush2.bf16.msra.mxu0 0
    %1260 = vmatprep.subr.bf16.mxu0 0
    %1261 = vmatpush2.bf16.msra.mxu0 0
    %1262 = vmatprep.subr.bf16.mxu0 0
    %1263 = vmatpush2.bf16.msra.mxu0 0
    %1264 = vmatprep.subr.bf16.mxu0 0
    %1265 = vmatpush2.bf16.msra.mxu0 0
    %1266 = vmatprep.subr.bf16.mxu0 0
    %1267 = vmatpush2.bf16.msra.mxu0 0
    %1268 = vmatprep.subr.bf16.mxu0 0
    %1269 = vmatpush2.bf16.msra.mxu0 0
    %1270 = vmatprep.subr.bf16.mxu0 0
    %1271 = vmatpush2.bf16.msra.mxu0 0
    %1272 = vmatprep.mubr.bf16.mxu0 0
    %1273 = vmatmul.mubr.bf16.gmra.mxu0 %v1229
    %v1274 = vpop.f32.mrf.mxu0
    %v1275 = vadd.f32 0.0, %v1274
    %v1276 = vpop.f32.mrf.mxu0
    %v1277 = vpop.f32.mrf.mxu0
    %v1278 = vadd.f32 0.0, %v1277
    %v1279 = vpop.f32.mrf.mxu0
    %1280 = vmatprep.mubr.bf16.mxu0 0
    %1281 = vmatmul.mubr.bf16.gmra.mxu0 %v1232
    %v1282 = vpop.f32.mrf.mxu0
    %v1283 = vadd.f32 0.0, %v1282
    %v1284 = vpop.f32.mrf.mxu0
    %v1285 = vpop.f32.mrf.mxu0
    %v1286 = vadd.f32 0.0, %v1285
    %v1287 = vpop.f32.mrf.mxu0
    %1288 = vmatprep.mubr.bf16.mxu0 0
    %1289 = vmatmul.mubr.bf16.gmra.mxu0 %v1235
    %v1290 = vpop.f32.mrf.mxu0
    %v1291 = vadd.f32 0.0, %v1290
    %v1292 = vpop.f32.mrf.mxu0
    %v1293 = vpop.f32.mrf.mxu0
    %v1294 = vadd.f32 0.0, %v1293
    %v1295 = vpop.f32.mrf.mxu0
    %1296 = vmatprep.mubr.bf16.mxu0 0
    %1297 = vmatmul.mubr.bf16.gmra.mxu0 %v1238
    %v1298 = vpop.f32.mrf.mxu0
    %v1299 = vadd.f32 0.0, %v1298
    %v1300 = vpop.f32.mrf.mxu0
    %v1301 = vpop.f32.mrf.mxu0
    %v1302 = vadd.f32 0.0, %v1301
    %v1303 = vpop.f32.mrf.mxu0
    %1304 = vdwg.mxu0
    %v1305 = vmul.f32 %v1275, %v1275
    %v1306 = vmul.f32 %v1278, %v1278
    %v1307 = vmul.f32 %v1283, %v1283
    %v1308 = vmul.f32 %v1286, %v1286
    %v1309 = vmul.f32 %v1291, %v1291
    %v1310 = vmul.f32 %v1294, %v1294
    %v1311 = vmul.f32 %v1299, %v1299
    %v1312 = vmul.f32 %v1302, %v1302
    %v1313 = vsel %vm43, %v1305, 0.0
    %1314 = vadd.xlane.f32.xlu0 %v1313
    %v1315 = vpop.xlane.xlu0 %1314
    %v1316 = vsel %vm43, %v1306, 0.0
    %1317 = vadd.xlane.f32.xlu0 %v1316
    %v1318 = vpop.xlane.xlu0 %1317
    %v1319 = vsel %vm43, %v1307, 0.0
    %1320 = vadd.xlane.f32.xlu0 %v1319
    %v1321 = vpop.xlane.xlu0 %1320
    %v1322 = vsel %vm43, %v1308, 0.0
    %1323 = vadd.xlane.f32.xlu0 %v1322
    %v1324 = vpop.xlane.xlu0 %1323
    %v1325 = vsel %vm43, %v1309, 0.0
    %1326 = vadd.xlane.f32.xlu0 %v1325
    %v1327 = vpop.xlane.xlu0 %1326
    %v1328 = vsel %vm43, %v1310, 0.0
    %1329 = vadd.xlane.f32.xlu0 %v1328
    %v1330 = vpop.xlane.xlu0 %1329
    %v1331 = vsel %vm43, %v1311, 0.0
    %1332 = vadd.xlane.f32.xlu0 %v1331
    %v1333 = vpop.xlane.xlu0 %1332
    %v1334 = vsel %vm43, %v1312, 0.0
    %1335 = vadd.xlane.f32.xlu0 %v1334
    %v1336 = vpop.xlane.xlu0 %1335
    %v1337 = vrsqrt.pop %v1315
    %v1338 = vmul.f32 %v1315, %v1337
    %vm1339 = vcmp.eq.f32.partialorder %v1315, inf
    %v1340 = vsel %vm1339, %v1315, %v1338
    %vm1341 = vcmp.eq.f32.partialorder %v1315, 0.0
    %v1342 = vand.u32 %v1315, 2147483648
    %v1343 = vsel %vm1341, %v1342, %v1340
    %v1344 = vrsqrt.pop %v1318
    %v1345 = vmul.f32 %v1318, %v1344
    %vm1346 = vcmp.eq.f32.partialorder %v1318, inf
    %v1347 = vsel %vm1346, %v1318, %v1345
    %vm1348 = vcmp.eq.f32.partialorder %v1318, 0.0
    %v1349 = vand.u32 %v1318, 2147483648
    %v1350 = vsel %vm1348, %v1349, %v1347
    %v1351 = vrsqrt.pop %v1321
    %v1352 = vmul.f32 %v1321, %v1351
    %vm1353 = vcmp.eq.f32.partialorder %v1321, inf
    %v1354 = vsel %vm1353, %v1321, %v1352
    %vm1355 = vcmp.eq.f32.partialorder %v1321, 0.0
    %v1356 = vand.u32 %v1321, 2147483648
    %v1357 = vsel %vm1355, %v1356, %v1354
    %v1358 = vrsqrt.pop %v1324
    %v1359 = vmul.f32 %v1324, %v1358
    %vm1360 = vcmp.eq.f32.partialorder %v1324, inf
    %v1361 = vsel %vm1360, %v1324, %v1359
    %vm1362 = vcmp.eq.f32.partialorder %v1324, 0.0
    %v1363 = vand.u32 %v1324, 2147483648
    %v1364 = vsel %vm1362, %v1363, %v1361
    %v1365 = vrsqrt.pop %v1327
    %v1366 = vmul.f32 %v1327, %v1365
    %vm1367 = vcmp.eq.f32.partialorder %v1327, inf
    %v1368 = vsel %vm1367, %v1327, %v1366
    %vm1369 = vcmp.eq.f32.partialorder %v1327, 0.0
    %v1370 = vand.u32 %v1327, 2147483648
    %v1371 = vsel %vm1369, %v1370, %v1368
    %v1372 = vrsqrt.pop %v1330
    %v1373 = vmul.f32 %v1330, %v1372
    %vm1374 = vcmp.eq.f32.partialorder %v1330, inf
    %v1375 = vsel %vm1374, %v1330, %v1373
    %vm1376 = vcmp.eq.f32.partialorder %v1330, 0.0
    %v1377 = vand.u32 %v1330, 2147483648
    %v1378 = vsel %vm1376, %v1377, %v1375
    %v1379 = vrsqrt.pop %v1333
    %v1380 = vmul.f32 %v1333, %v1379
    %vm1381 = vcmp.eq.f32.partialorder %v1333, inf
    %v1382 = vsel %vm1381, %v1333, %v1380
    %vm1383 = vcmp.eq.f32.partialorder %v1333, 0.0
    %v1384 = vand.u32 %v1333, 2147483648
    %v1385 = vsel %vm1383, %v1384, %v1382
    %v1386 = vrsqrt.pop %v1336
    %v1387 = vmul.f32 %v1336, %v1386
    %vm1388 = vcmp.eq.f32.partialorder %v1336, inf
    %v1389 = vsel %vm1388, %v1336, %v1387
    %vm1390 = vcmp.eq.f32.partialorder %v1336, 0.0
    %v1391 = vand.u32 %v1336, 2147483648
    %v1392 = vsel %vm1390, %v1391, %v1389
    %v1393 = vmax.f32 %v1343, 1e-15
    %v1394 = vmax.f32 %v1350, 1e-15
    %v1395 = vmax.f32 %v1357, 1e-15
    %v1396 = vmax.f32 %v1364, 1e-15
    %v1397 = vmax.f32 %v1371, 1e-15
    %v1398 = vmax.f32 %v1378, 1e-15
    %v1399 = vmax.f32 %v1385, 1e-15
    %v1400 = vmax.f32 %v1392, 1e-15
    %v1401 = vrcp.pop %v1204
    %v1402 = vmul.f32 %v1393, %v1401
    %v1403 = vrcp.pop %v1205
    %v1404 = vmul.f32 %v1394, %v1403
    %v1405 = vrcp.pop %v1206
    %v1406 = vmul.f32 %v1395, %v1405
    %v1407 = vrcp.pop %v1207
    %v1408 = vmul.f32 %v1396, %v1407
    %v1409 = vrcp.pop %v1208
    %v1410 = vmul.f32 %v1397, %v1409
    %v1411 = vrcp.pop %v1209
    %v1412 = vmul.f32 %v1398, %v1411
    %v1413 = vrcp.pop %v1210
    %v1414 = vmul.f32 %v1399, %v1413
    %v1415 = vrcp.pop %v1211
    %v1416 = vmul.f32 %v1400, %v1415
    %v1417 = vmax.f32 %v1204, -0.9999999
    %v1418 = vmax.f32 %v1205, -0.9999999
    %v1419 = vmax.f32 %v1206, -0.9999999
    %v1420 = vmax.f32 %v1207, -0.9999999
    %v1421 = vmax.f32 %v1208, -0.9999999
    %v1422 = vmax.f32 %v1209, -0.9999999
    %v1423 = vmax.f32 %v1210, -0.9999999
    %v1424 = vmax.f32 %v1211, -0.9999999
    %v1425 = vmin.f32 %v1417, 0.9999999
    %v1426 = vmin.f32 %v1418, 0.9999999
    %v1427 = vmin.f32 %v1419, 0.9999999
    %v1428 = vmin.f32 %v1420, 0.9999999
    %v1429 = vmin.f32 %v1421, 0.9999999
    %v1430 = vmin.f32 %v1422, 0.9999999
    %v1431 = vmin.f32 %v1423, 0.9999999
    %v1432 = vmin.f32 %v1424, 0.9999999
    %v1433 = vadd.f32 %v1425, 1.0
    %v1434 = vadd.f32 %v1426, 1.0
    %v1435 = vadd.f32 %v1427, 1.0
    %v1436 = vadd.f32 %v1428, 1.0
    %v1437 = vadd.f32 %v1429, 1.0
    %v1438 = vadd.f32 %v1430, 1.0
    %v1439 = vadd.f32 %v1431, 1.0
    %v1440 = vadd.f32 %v1432, 1.0
    %v1441 = vsub.f32 1.0, %v1425
    %v1442 = vsub.f32 1.0, %v1426
    %v1443 = vsub.f32 1.0, %v1427
    %v1444 = vsub.f32 1.0, %v1428
    %v1445 = vsub.f32 1.0, %v1429
    %v1446 = vsub.f32 1.0, %v1430
    %v1447 = vsub.f32 1.0, %v1431
    %v1448 = vsub.f32 1.0, %v1432
    %v1449 = vrcp.pop %v1441
    %v1450 = vmul.f32 %v1433, %v1449
    %v1451 = vrcp.pop %v1442
    %v1452 = vmul.f32 %v1434, %v1451
    %v1453 = vrcp.pop %v1443
    %v1454 = vmul.f32 %v1435, %v1453
    %v1455 = vrcp.pop %v1444
    %v1456 = vmul.f32 %v1436, %v1455
    %v1457 = vrcp.pop %v1445
    %v1458 = vmul.f32 %v1437, %v1457
    %v1459 = vrcp.pop %v1446
    %v1460 = vmul.f32 %v1438, %v1459
    %v1461 = vrcp.pop %v1447
    %v1462 = vmul.f32 %v1439, %v1461
    %v1463 = vrcp.pop %v1448
    %v1464 = vmul.f32 %v1440, %v1463
    %v1465 = vlog2.pop %v1450
    %v1466 = vmul.f32 %v1465, 0.6931472
    %v1467 = vlog2.pop %v1452
    %v1468 = vmul.f32 %v1467, 0.6931472
    %v1469 = vlog2.pop %v1454
    %v1470 = vmul.f32 %v1469, 0.6931472
    %v1471 = vlog2.pop %v1456
    %v1472 = vmul.f32 %v1471, 0.6931472
    %v1473 = vlog2.pop %v1458
    %v1474 = vmul.f32 %v1473, 0.6931472
    %v1475 = vlog2.pop %v1460
    %v1476 = vmul.f32 %v1475, 0.6931472
    %v1477 = vlog2.pop %v1462
    %v1478 = vmul.f32 %v1477, 0.6931472
    %v1479 = vlog2.pop %v1464
    %v1480 = vmul.f32 %v1479, 0.6931472
    %v1481 = vmul.f32 %v1466, 0.5
    %v1482 = vmul.f32 %v1468, 0.5
    %v1483 = vmul.f32 %v1470, 0.5
    %v1484 = vmul.f32 %v1472, 0.5
    %v1485 = vmul.f32 %v1474, 0.5
    %v1486 = vmul.f32 %v1476, 0.5
    %v1487 = vmul.f32 %v1478, 0.5
    %v1488 = vmul.f32 %v1480, 0.5
    %v1489 = vmul.f32 %v1402, %v1481
    %v1490 = vmul.f32 %v1404, %v1482
    %v1491 = vmul.f32 %v1406, %v1483
    %v1492 = vmul.f32 %v1408, %v1484
    %v1493 = vmul.f32 %v1410, %v1485
    %v1494 = vmul.f32 %v1412, %v1486
    %v1495 = vmul.f32 %v1414, %v1487
    %v1496 = vmul.f32 %v1416, %v1488
    %v1497 = vtanh.pop %v1489
    %v1498 = vtanh.pop %v1490
    %v1499 = vtanh.pop %v1491
    %v1500 = vtanh.pop %v1492
    %v1501 = vtanh.pop %v1493
    %v1502 = vtanh.pop %v1494
    %v1503 = vtanh.pop %v1495
    %v1504 = vtanh.pop %v1496
    %vm1505 = vcmp.eq.f32.partialorder %v1343, 0.0
    %vm1506 = vcmp.eq.f32.partialorder %v1350, 0.0
    %vm1507 = vcmp.eq.f32.partialorder %v1357, 0.0
    %vm1508 = vcmp.eq.f32.partialorder %v1364, 0.0
    %vm1509 = vcmp.eq.f32.partialorder %v1371, 0.0
    %vm1510 = vcmp.eq.f32.partialorder %v1378, 0.0
    %vm1511 = vcmp.eq.f32.partialorder %v1385, 0.0
    %vm1512 = vcmp.eq.f32.partialorder %v1392, 0.0
    %v1513 = vrcp.pop %v1393
    %v1514 = vmul.f32 %v1497, %v1513
    %v1515 = vrcp.pop %v1394
    %v1516 = vmul.f32 %v1498, %v1515
    %v1517 = vrcp.pop %v1395
    %v1518 = vmul.f32 %v1499, %v1517
    %v1519 = vrcp.pop %v1396
    %v1520 = vmul.f32 %v1500, %v1519
    %v1521 = vrcp.pop %v1397
    %v1522 = vmul.f32 %v1501, %v1521
    %v1523 = vrcp.pop %v1398
    %v1524 = vmul.f32 %v1502, %v1523
    %v1525 = vrcp.pop %v1399
    %v1526 = vmul.f32 %v1503, %v1525
    %v1527 = vrcp.pop %v1400
    %v1528 = vmul.f32 %v1504, %v1527
    %v1529 = vsel %vm1505, 0.0, %v1514
    %v1530 = vsel %vm1506, 0.0, %v1516
    %v1531 = vsel %vm1507, 0.0, %v1518
    %v1532 = vsel %vm1508, 0.0, %v1520
    %v1533 = vsel %vm1509, 0.0, %v1522
    %v1534 = vsel %vm1510, 0.0, %v1524
    %v1535 = vsel %vm1511, 0.0, %v1526
    %v1536 = vsel %vm1512, 0.0, %v1528
    %v1537 = vmul.f32 %v1529, %v1275
    %v1538 = vmul.f32 %v1530, %v1278
    %v1539 = vmul.f32 %v1531, %v1283
    %v1540 = vmul.f32 %v1532, %v1286
    %v1541 = vmul.f32 %v1533, %v1291
    %v1542 = vmul.f32 %v1534, %v1294
    %v1543 = vmul.f32 %v1535, %v1299
    %v1544 = vmul.f32 %v1536, %v1302
    %v1545 = vsel %vm1505, 0.0, %v1497
    %v1546 = vsel %vm1506, 0.0, %v1498
    %v1547 = vsel %vm1507, 0.0, %v1499
    %v1548 = vsel %vm1508, 0.0, %v1500
    %v1549 = vsel %vm1509, 0.0, %v1501
    %v1550 = vsel %vm1510, 0.0, %v1502
    %v1551 = vsel %vm1511, 0.0, %v1503
    %v1552 = vsel %vm1512, 0.0, %v1504
    %v1554 = vlaneseq
    %v1555 = vshrl.u32 %v1554, 7
    %v1556 = vsub.s32 0, %v1555
    %v1557 = vrot.slane %v1201, %v1556
    %v1559 = vmul.f32 %v1537, %v1557
    %v1560 = vmul.f32 %v1538, %v1557
    %v1561 = vmul.f32 %v1539, %v1557
    %v1562 = vmul.f32 %v1540, %v1557
    %v1563 = vmul.f32 %v1541, %v1557
    %v1564 = vmul.f32 %v1542, %v1557
    %v1565 = vmul.f32 %v1543, %v1557
    %v1566 = vmul.f32 %v1544, %v1557
    %v1567 = vsel %vm43, %v1559, 0.0
    %1568 = vadd.xlane.f32.xlu0 %v1567
    %v1569 = vpop.xlane.xlu0 %1568
    %v1570 = vsel %vm43, %v1560, 0.0
    %1571 = vadd.xlane.f32.xlu0 %v1570
    %v1572 = vpop.xlane.xlu0 %1571
    %v1573 = vsel %vm43, %v1561, 0.0
    %1574 = vadd.xlane.f32.xlu0 %v1573
    %v1575 = vpop.xlane.xlu0 %1574
    %v1576 = vsel %vm43, %v1562, 0.0
    %1577 = vadd.xlane.f32.xlu0 %v1576
    %v1578 = vpop.xlane.xlu0 %1577
    %v1579 = vsel %vm43, %v1563, 0.0
    %1580 = vadd.xlane.f32.xlu0 %v1579
    %v1581 = vpop.xlane.xlu0 %1580
    %v1582 = vsel %vm43, %v1564, 0.0
    %1583 = vadd.xlane.f32.xlu0 %v1582
    %v1584 = vpop.xlane.xlu0 %1583
    %v1585 = vsel %vm43, %v1565, 0.0
    %1586 = vadd.xlane.f32.xlu0 %v1585
    %v1587 = vpop.xlane.xlu0 %1586
    %v1588 = vsel %vm43, %v1566, 0.0
    %1589 = vadd.xlane.f32.xlu0 %v1588
    %v1590 = vpop.xlane.xlu0 %1589
    %v1591 = vmul.f32 %v1545, %v1545
    %v1592 = vmul.f32 %v1546, %v1546
    %v1593 = vmul.f32 %v1547, %v1547
    %v1594 = vmul.f32 %v1548, %v1548
    %v1595 = vmul.f32 %v1549, %v1549
    %v1596 = vmul.f32 %v1550, %v1550
    %v1597 = vmul.f32 %v1551, %v1551
    %v1598 = vmul.f32 %v1552, %v1552
    %v1599 = vmul.f32 %v1569, 2.0
    %v1600 = vmul.f32 %v1572, 2.0
    %v1601 = vmul.f32 %v1575, 2.0
    %v1602 = vmul.f32 %v1578, 2.0
    %v1603 = vmul.f32 %v1581, 2.0
    %v1604 = vmul.f32 %v1584, 2.0
    %v1605 = vmul.f32 %v1587, 2.0
    %v1606 = vmul.f32 %v1590, 2.0
    %v1607 = vadd.f32 %v1599, 1.0
    %v1608 = vadd.f32 %v1600, 1.0
    %v1609 = vadd.f32 %v1601, 1.0
    %v1610 = vadd.f32 %v1602, 1.0
    %v1611 = vadd.f32 %v1603, 1.0
    %v1612 = vadd.f32 %v1604, 1.0
    %v1613 = vadd.f32 %v1605, 1.0
    %v1614 = vadd.f32 %v1606, 1.0
    %v1616 = vlaneseq
    %v1617 = vshrl.u32 %v1616, 7
    %v1618 = vsub.s32 0, %v1617
    %v1619 = vrot.slane %v1203, %v1618
    %v1621 = vadd.f32 %v1607, %v1619
    %v1622 = vadd.f32 %v1608, %v1619
    %v1623 = vadd.f32 %v1609, %v1619
    %v1624 = vadd.f32 %v1610, %v1619
    %v1625 = vadd.f32 %v1611, %v1619
    %v1626 = vadd.f32 %v1612, %v1619
    %v1627 = vadd.f32 %v1613, %v1619
    %v1628 = vadd.f32 %v1614, %v1619
    %1630 = vset.pattern.permute.xlu0 0
    %1631 = vperm.xlu0 %1630, %v1621
    %v1632 = vpop.permute.xlu0 %1631
    %1635 = vset.pattern.permute.xlu0 0
    %1636 = vperm.xlu0 %1635, %v1622
    %v1637 = vpop.permute.xlu0 %1636
    %1640 = vset.pattern.permute.xlu0 0
    %1641 = vperm.xlu0 %1640, %v1623
    %v1642 = vpop.permute.xlu0 %1641
    %1645 = vset.pattern.permute.xlu0 0
    %1646 = vperm.xlu0 %1645, %v1624
    %v1647 = vpop.permute.xlu0 %1646
    %1650 = vset.pattern.permute.xlu0 0
    %1651 = vperm.xlu0 %1650, %v1625
    %v1652 = vpop.permute.xlu0 %1651
    %1655 = vset.pattern.permute.xlu0 0
    %1656 = vperm.xlu0 %1655, %v1626
    %v1657 = vpop.permute.xlu0 %1656
    %1660 = vset.pattern.permute.xlu0 0
    %1661 = vperm.xlu0 %1660, %v1627
    %v1662 = vpop.permute.xlu0 %1661
    %1665 = vset.pattern.permute.xlu0 0
    %1666 = vperm.xlu0 %1665, %v1628
    %v1667 = vpop.permute.xlu0 %1666
    %v1669 = vmul.f32 %v1632, %v1537
    %v1670 = vmul.f32 %v1637, %v1538
    %v1671 = vmul.f32 %v1642, %v1539
    %v1672 = vmul.f32 %v1647, %v1540
    %v1673 = vmul.f32 %v1652, %v1541
    %v1674 = vmul.f32 %v1657, %v1542
    %v1675 = vmul.f32 %v1662, %v1543
    %v1676 = vmul.f32 %v1667, %v1544
    %v1677 = vsub.f32 1.0, %v1591
    %v1678 = vsub.f32 1.0, %v1592
    %v1679 = vsub.f32 1.0, %v1593
    %v1680 = vsub.f32 1.0, %v1594
    %v1681 = vsub.f32 1.0, %v1595
    %v1682 = vsub.f32 1.0, %v1596
    %v1683 = vsub.f32 1.0, %v1597
    %v1684 = vsub.f32 1.0, %v1598
    %v1685 = vmul.f32 %v1677, %v1557
    %v1686 = vmul.f32 %v1678, %v1557
    %v1687 = vmul.f32 %v1679, %v1557
    %v1688 = vmul.f32 %v1680, %v1557
    %v1689 = vmul.f32 %v1681, %v1557
    %v1690 = vmul.f32 %v1682, %v1557
    %v1691 = vmul.f32 %v1683, %v1557
    %v1692 = vmul.f32 %v1684, %v1557
    %v1693 = vadd.f32 %v1669, %v1685
    %v1694 = vadd.f32 %v1670, %v1686
    %v1695 = vadd.f32 %v1671, %v1687
    %v1696 = vadd.f32 %v1672, %v1688
    %v1697 = vadd.f32 %v1673, %v1689
    %v1698 = vadd.f32 %v1674, %v1690
    %v1699 = vadd.f32 %v1675, %v1691
    %v1700 = vadd.f32 %v1676, %v1692
    %v1701 = vmul.f32 %v1591, %v1619
    %v1702 = vmul.f32 %v1592, %v1619
    %v1703 = vmul.f32 %v1593, %v1619
    %v1704 = vmul.f32 %v1594, %v1619
    %v1705 = vmul.f32 %v1595, %v1619
    %v1706 = vmul.f32 %v1596, %v1619
    %v1707 = vmul.f32 %v1597, %v1619
    %v1708 = vmul.f32 %v1598, %v1619
    %v1709 = vadd.f32 %v1607, %v1701
    %v1710 = vadd.f32 %v1608, %v1702
    %v1711 = vadd.f32 %v1609, %v1703
    %v1712 = vadd.f32 %v1610, %v1704
    %v1713 = vadd.f32 %v1611, %v1705
    %v1714 = vadd.f32 %v1612, %v1706
    %v1715 = vadd.f32 %v1613, %v1707
    %v1716 = vadd.f32 %v1614, %v1708
    %v1717 = vmax.f32 %v1709, 1e-15
    %v1718 = vmax.f32 %v1710, 1e-15
    %v1719 = vmax.f32 %v1711, 1e-15
    %v1720 = vmax.f32 %v1712, 1e-15
    %v1721 = vmax.f32 %v1713, 1e-15
    %v1722 = vmax.f32 %v1714, 1e-15
    %v1723 = vmax.f32 %v1715, 1e-15
    %v1724 = vmax.f32 %v1716, 1e-15
    %v1725 = vrcp.pop %v1717
    %v1726 = vmul.f32 1.0, %v1725
    %v1727 = vrcp.pop %v1718
    %v1728 = vmul.f32 1.0, %v1727
    %v1729 = vrcp.pop %v1719
    %v1730 = vmul.f32 1.0, %v1729
    %v1731 = vrcp.pop %v1720
    %v1732 = vmul.f32 1.0, %v1731
    %v1733 = vrcp.pop %v1721
    %v1734 = vmul.f32 1.0, %v1733
    %v1735 = vrcp.pop %v1722
    %v1736 = vmul.f32 1.0, %v1735
    %v1737 = vrcp.pop %v1723
    %v1738 = vmul.f32 1.0, %v1737
    %v1739 = vrcp.pop %v1724
    %v1740 = vmul.f32 1.0, %v1739
    %1742 = vset.pattern.permute.xlu0 0
    %1743 = vperm.xlu0 %1742, %v1726
    %v1744 = vpop.permute.xlu0 %1743
    %1747 = vset.pattern.permute.xlu0 0
    %1748 = vperm.xlu0 %1747, %v1728
    %v1749 = vpop.permute.xlu0 %1748
    %1752 = vset.pattern.permute.xlu0 0
    %1753 = vperm.xlu0 %1752, %v1730
    %v1754 = vpop.permute.xlu0 %1753
    %1757 = vset.pattern.permute.xlu0 0
    %1758 = vperm.xlu0 %1757, %v1732
    %v1759 = vpop.permute.xlu0 %1758
    %1762 = vset.pattern.permute.xlu0 0
    %1763 = vperm.xlu0 %1762, %v1734
    %v1764 = vpop.permute.xlu0 %1763
    %1767 = vset.pattern.permute.xlu0 0
    %1768 = vperm.xlu0 %1767, %v1736
    %v1769 = vpop.permute.xlu0 %1768
    %1772 = vset.pattern.permute.xlu0 0
    %1773 = vperm.xlu0 %1772, %v1738
    %v1774 = vpop.permute.xlu0 %1773
    %1777 = vset.pattern.permute.xlu0 0
    %1778 = vperm.xlu0 %1777, %v1740
    %v1779 = vpop.permute.xlu0 %1778
    %v1781 = vmul.f32 %v1693, %v1744
    %v1782 = vmul.f32 %v1694, %v1749
    %v1783 = vmul.f32 %v1695, %v1754
    %v1784 = vmul.f32 %v1696, %v1759
    %v1785 = vmul.f32 %v1697, %v1764
    %v1786 = vmul.f32 %v1698, %v1769
    %v1787 = vmul.f32 %v1699, %v1774
    %v1788 = vmul.f32 %v1700, %v1779
    %v1789 = vmul.f32 %v1781, %v1781
    %v1790 = vmul.f32 %v1782, %v1782
    %v1791 = vmul.f32 %v1783, %v1783
    %v1792 = vmul.f32 %v1784, %v1784
    %v1793 = vmul.f32 %v1785, %v1785
    %v1794 = vmul.f32 %v1786, %v1786
    %v1795 = vmul.f32 %v1787, %v1787
    %v1796 = vmul.f32 %v1788, %v1788
    %v1797 = vsel %vm43, %v1789, 0.0
    %1798 = vadd.xlane.f32.xlu0 %v1797
    %v1799 = vpop.xlane.xlu0 %1798
    %v1800 = vsel %vm43, %v1790, 0.0
    %1801 = vadd.xlane.f32.xlu0 %v1800
    %v1802 = vpop.xlane.xlu0 %1801
    %v1803 = vsel %vm43, %v1791, 0.0
    %1804 = vadd.xlane.f32.xlu0 %v1803
    %v1805 = vpop.xlane.xlu0 %1804
    %v1806 = vsel %vm43, %v1792, 0.0
    %1807 = vadd.xlane.f32.xlu0 %v1806
    %v1808 = vpop.xlane.xlu0 %1807
    %v1809 = vsel %vm43, %v1793, 0.0
    %1810 = vadd.xlane.f32.xlu0 %v1809
    %v1811 = vpop.xlane.xlu0 %1810
    %v1812 = vsel %vm43, %v1794, 0.0
    %1813 = vadd.xlane.f32.xlu0 %v1812
    %v1814 = vpop.xlane.xlu0 %1813
    %v1815 = vsel %vm43, %v1795, 0.0
    %1816 = vadd.xlane.f32.xlu0 %v1815
    %v1817 = vpop.xlane.xlu0 %1816
    %v1818 = vsel %vm43, %v1796, 0.0
    %1819 = vadd.xlane.f32.xlu0 %v1818
    %v1820 = vpop.xlane.xlu0 %1819
    %v1821 = vrsqrt.pop %v1799
    %v1822 = vmul.f32 %v1799, %v1821
    %vm1823 = vcmp.eq.f32.partialorder %v1799, inf
    %v1824 = vsel %vm1823, %v1799, %v1822
    %vm1825 = vcmp.eq.f32.partialorder %v1799, 0.0
    %v1826 = vand.u32 %v1799, 2147483648
    %v1827 = vsel %vm1825, %v1826, %v1824
    %v1828 = vrsqrt.pop %v1802
    %v1829 = vmul.f32 %v1802, %v1828
    %vm1830 = vcmp.eq.f32.partialorder %v1802, inf
    %v1831 = vsel %vm1830, %v1802, %v1829
    %vm1832 = vcmp.eq.f32.partialorder %v1802, 0.0
    %v1833 = vand.u32 %v1802, 2147483648
    %v1834 = vsel %vm1832, %v1833, %v1831
    %v1835 = vrsqrt.pop %v1805
    %v1836 = vmul.f32 %v1805, %v1835
    %vm1837 = vcmp.eq.f32.partialorder %v1805, inf
    %v1838 = vsel %vm1837, %v1805, %v1836
    %vm1839 = vcmp.eq.f32.partialorder %v1805, 0.0
    %v1840 = vand.u32 %v1805, 2147483648
    %v1841 = vsel %vm1839, %v1840, %v1838
    %v1842 = vrsqrt.pop %v1808
    %v1843 = vmul.f32 %v1808, %v1842
    %vm1844 = vcmp.eq.f32.partialorder %v1808, inf
    %v1845 = vsel %vm1844, %v1808, %v1843
    %vm1846 = vcmp.eq.f32.partialorder %v1808, 0.0
    %v1847 = vand.u32 %v1808, 2147483648
    %v1848 = vsel %vm1846, %v1847, %v1845
    %v1849 = vrsqrt.pop %v1811
    %v1850 = vmul.f32 %v1811, %v1849
    %vm1851 = vcmp.eq.f32.partialorder %v1811, inf
    %v1852 = vsel %vm1851, %v1811, %v1850
    %vm1853 = vcmp.eq.f32.partialorder %v1811, 0.0
    %v1854 = vand.u32 %v1811, 2147483648
    %v1855 = vsel %vm1853, %v1854, %v1852
    %v1856 = vrsqrt.pop %v1814
    %v1857 = vmul.f32 %v1814, %v1856
    %vm1858 = vcmp.eq.f32.partialorder %v1814, inf
    %v1859 = vsel %vm1858, %v1814, %v1857
    %vm1860 = vcmp.eq.f32.partialorder %v1814, 0.0
    %v1861 = vand.u32 %v1814, 2147483648
    %v1862 = vsel %vm1860, %v1861, %v1859
    %v1863 = vrsqrt.pop %v1817
    %v1864 = vmul.f32 %v1817, %v1863
    %vm1865 = vcmp.eq.f32.partialorder %v1817, inf
    %v1866 = vsel %vm1865, %v1817, %v1864
    %vm1867 = vcmp.eq.f32.partialorder %v1817, 0.0
    %v1868 = vand.u32 %v1817, 2147483648
    %v1869 = vsel %vm1867, %v1868, %v1866
    %v1870 = vrsqrt.pop %v1820
    %v1871 = vmul.f32 %v1820, %v1870
    %vm1872 = vcmp.eq.f32.partialorder %v1820, inf
    %v1873 = vsel %vm1872, %v1820, %v1871
    %vm1874 = vcmp.eq.f32.partialorder %v1820, 0.0
    %v1875 = vand.u32 %v1820, 2147483648
    %v1876 = vsel %vm1874, %v1875, %v1873
    %v1877 = vmax.f32 %v1827, -0.9999999
    %v1878 = vmax.f32 %v1834, -0.9999999
    %v1879 = vmax.f32 %v1841, -0.9999999
    %v1880 = vmax.f32 %v1848, -0.9999999
    %v1881 = vmax.f32 %v1855, -0.9999999
    %v1882 = vmax.f32 %v1862, -0.9999999
    %v1883 = vmax.f32 %v1869, -0.9999999
    %v1884 = vmax.f32 %v1876, -0.9999999
    %v1885 = vmin.f32 %v1877, 0.9999999
    %v1886 = vmin.f32 %v1878, 0.9999999
    %v1887 = vmin.f32 %v1879, 0.9999999
    %v1888 = vmin.f32 %v1880, 0.9999999
    %v1889 = vmin.f32 %v1881, 0.9999999
    %v1890 = vmin.f32 %v1882, 0.9999999
    %v1891 = vmin.f32 %v1883, 0.9999999
    %v1892 = vmin.f32 %v1884, 0.9999999
    %v1893 = vadd.f32 %v1885, 1.0
    %v1894 = vadd.f32 %v1886, 1.0
    %v1895 = vadd.f32 %v1887, 1.0
    %v1896 = vadd.f32 %v1888, 1.0
    %v1897 = vadd.f32 %v1889, 1.0
    %v1898 = vadd.f32 %v1890, 1.0
    %v1899 = vadd.f32 %v1891, 1.0
    %v1900 = vadd.f32 %v1892, 1.0
    %v1901 = vsub.f32 1.0, %v1885
    %v1902 = vsub.f32 1.0, %v1886
    %v1903 = vsub.f32 1.0, %v1887
    %v1904 = vsub.f32 1.0, %v1888
    %v1905 = vsub.f32 1.0, %v1889
    %v1906 = vsub.f32 1.0, %v1890
    %v1907 = vsub.f32 1.0, %v1891
    %v1908 = vsub.f32 1.0, %v1892
    %v1909 = vrcp.pop %v1901
    %v1910 = vmul.f32 %v1893, %v1909
    %v1911 = vrcp.pop %v1902
    %v1912 = vmul.f32 %v1894, %v1911
    %v1913 = vrcp.pop %v1903
    %v1914 = vmul.f32 %v1895, %v1913
    %v1915 = vrcp.pop %v1904
    %v1916 = vmul.f32 %v1896, %v1915
    %v1917 = vrcp.pop %v1905
    %v1918 = vmul.f32 %v1897, %v1917
    %v1919 = vrcp.pop %v1906
    %v1920 = vmul.f32 %v1898, %v1919
    %v1921 = vrcp.pop %v1907
    %v1922 = vmul.f32 %v1899, %v1921
    %v1923 = vrcp.pop %v1908
    %v1924 = vmul.f32 %v1900, %v1923
    %v1925 = vlog2.pop %v1910
    %v1926 = vmul.f32 %v1925, 0.6931472
    %v1927 = vlog2.pop %v1912
    %v1928 = vmul.f32 %v1927, 0.6931472
    %v1929 = vlog2.pop %v1914
    %v1930 = vmul.f32 %v1929, 0.6931472
    %v1931 = vlog2.pop %v1916
    %v1932 = vmul.f32 %v1931, 0.6931472
    %v1933 = vlog2.pop %v1918
    %v1934 = vmul.f32 %v1933, 0.6931472
    %v1935 = vlog2.pop %v1920
    %v1936 = vmul.f32 %v1935, 0.6931472
    %v1937 = vlog2.pop %v1922
    %v1938 = vmul.f32 %v1937, 0.6931472
    %v1939 = vlog2.pop %v1924
    %v1940 = vmul.f32 %v1939, 0.6931472
    %v1941 = vmul.f32 %v1926, 0.5
    %v1942 = vmul.f32 %v1928, 0.5
    %v1943 = vmul.f32 %v1930, 0.5
    %v1944 = vmul.f32 %v1932, 0.5
    %v1945 = vmul.f32 %v1934, 0.5
    %v1946 = vmul.f32 %v1936, 0.5
    %v1947 = vmul.f32 %v1938, 0.5
    %v1948 = vmul.f32 %v1940, 0.5
    %v1949 = vmax.f32 %v1827, 1e-15
    %v1950 = vmax.f32 %v1834, 1e-15
    %v1951 = vmax.f32 %v1841, 1e-15
    %v1952 = vmax.f32 %v1848, 1e-15
    %v1953 = vmax.f32 %v1855, 1e-15
    %v1954 = vmax.f32 %v1862, 1e-15
    %v1955 = vmax.f32 %v1869, 1e-15
    %v1956 = vmax.f32 %v1876, 1e-15
    %v1957 = vrcp.pop %v1949
    %v1958 = vmul.f32 %v1941, %v1957
    %v1959 = vrcp.pop %v1950
    %v1960 = vmul.f32 %v1942, %v1959
    %v1961 = vrcp.pop %v1951
    %v1962 = vmul.f32 %v1943, %v1961
    %v1963 = vrcp.pop %v1952
    %v1964 = vmul.f32 %v1944, %v1963
    %v1965 = vrcp.pop %v1953
    %v1966 = vmul.f32 %v1945, %v1965
    %v1967 = vrcp.pop %v1954
    %v1968 = vmul.f32 %v1946, %v1967
    %v1969 = vrcp.pop %v1955
    %v1970 = vmul.f32 %v1947, %v1969
    %v1971 = vrcp.pop %v1956
    %v1972 = vmul.f32 %v1948, %v1971
    %v1973 = vmul.f32 %v1781, %v1958
    %v1974 = vmul.f32 %v1782, %v1960
    %v1975 = vmul.f32 %v1783, %v1962
    %v1976 = vmul.f32 %v1784, %v1964
    %v1977 = vmul.f32 %v1785, %v1966
    %v1978 = vmul.f32 %v1786, %v1968
    %v1979 = vmul.f32 %v1787, %v1970
    %v1980 = vmul.f32 %v1788, %v1972
    %v1981 = vtanh.pop %v1973
    %v1982 = vtanh.pop %v1974
    %v1983 = vtanh.pop %v1975
    %v1984 = vtanh.pop %v1976
    %v1985 = vtanh.pop %v1977
    %v1986 = vtanh.pop %v1978
    %v1987 = vtanh.pop %v1979
    %v1988 = vtanh.pop %v1980
    %v1989 = vmul.f32 %v1981, %v1981
    %v1990 = vmul.f32 %v1982, %v1982
    %v1991 = vmul.f32 %v1983, %v1983
    %v1992 = vmul.f32 %v1984, %v1984
    %v1993 = vmul.f32 %v1985, %v1985
    %v1994 = vmul.f32 %v1986, %v1986
    %v1995 = vmul.f32 %v1987, %v1987
    %v1996 = vmul.f32 %v1988, %v1988
    %v1997 = vsel %vm43, %v1989, 0.0
    %1998 = vadd.xlane.f32.xlu0 %v1997
    %v1999 = vpop.xlane.xlu0 %1998
    %v2000 = vsel %vm43, %v1990, 0.0
    %2001 = vadd.xlane.f32.xlu0 %v2000
    %v2002 = vpop.xlane.xlu0 %2001
    %v2003 = vsel %vm43, %v1991, 0.0
    %2004 = vadd.xlane.f32.xlu0 %v2003
    %v2005 = vpop.xlane.xlu0 %2004
    %v2006 = vsel %vm43, %v1992, 0.0
    %2007 = vadd.xlane.f32.xlu0 %v2006
    %v2008 = vpop.xlane.xlu0 %2007
    %v2009 = vsel %vm43, %v1993, 0.0
    %2010 = vadd.xlane.f32.xlu0 %v2009
    %v2011 = vpop.xlane.xlu0 %2010
    %v2012 = vsel %vm43, %v1994, 0.0
    %2013 = vadd.xlane.f32.xlu0 %v2012
    %v2014 = vpop.xlane.xlu0 %2013
    %v2015 = vsel %vm43, %v1995, 0.0
    %2016 = vadd.xlane.f32.xlu0 %v2015
    %v2017 = vpop.xlane.xlu0 %2016
    %v2018 = vsel %vm43, %v1996, 0.0
    %2019 = vadd.xlane.f32.xlu0 %v2018
    %v2020 = vpop.xlane.xlu0 %2019
    %v2021 = vrsqrt.pop %v1999
    %v2022 = vmul.f32 %v1999, %v2021
    %vm2023 = vcmp.eq.f32.partialorder %v1999, inf
    %v2024 = vsel %vm2023, %v1999, %v2022
    %vm2025 = vcmp.eq.f32.partialorder %v1999, 0.0
    %v2026 = vand.u32 %v1999, 2147483648
    %v2027 = vsel %vm2025, %v2026, %v2024
    %v2028 = vrsqrt.pop %v2002
    %v2029 = vmul.f32 %v2002, %v2028
    %vm2030 = vcmp.eq.f32.partialorder %v2002, inf
    %v2031 = vsel %vm2030, %v2002, %v2029
    %vm2032 = vcmp.eq.f32.partialorder %v2002, 0.0
    %v2033 = vand.u32 %v2002, 2147483648
    %v2034 = vsel %vm2032, %v2033, %v2031
    %v2035 = vrsqrt.pop %v2005
    %v2036 = vmul.f32 %v2005, %v2035
    %vm2037 = vcmp.eq.f32.partialorder %v2005, inf
    %v2038 = vsel %vm2037, %v2005, %v2036
    %vm2039 = vcmp.eq.f32.partialorder %v2005, 0.0
    %v2040 = vand.u32 %v2005, 2147483648
    %v2041 = vsel %vm2039, %v2040, %v2038
    %v2042 = vrsqrt.pop %v2008
    %v2043 = vmul.f32 %v2008, %v2042
    %vm2044 = vcmp.eq.f32.partialorder %v2008, inf
    %v2045 = vsel %vm2044, %v2008, %v2043
    %vm2046 = vcmp.eq.f32.partialorder %v2008, 0.0
    %v2047 = vand.u32 %v2008, 2147483648
    %v2048 = vsel %vm2046, %v2047, %v2045
    %v2049 = vrsqrt.pop %v2011
    %v2050 = vmul.f32 %v2011, %v2049
    %vm2051 = vcmp.eq.f32.partialorder %v2011, inf
    %v2052 = vsel %vm2051, %v2011, %v2050
    %vm2053 = vcmp.eq.f32.partialorder %v2011, 0.0
    %v2054 = vand.u32 %v2011, 2147483648
    %v2055 = vsel %vm2053, %v2054, %v2052
    %v2056 = vrsqrt.pop %v2014
    %v2057 = vmul.f32 %v2014, %v2056
    %vm2058 = vcmp.eq.f32.partialorder %v2014, inf
    %v2059 = vsel %vm2058, %v2014, %v2057
    %vm2060 = vcmp.eq.f32.partialorder %v2014, 0.0
    %v2061 = vand.u32 %v2014, 2147483648
    %v2062 = vsel %vm2060, %v2061, %v2059
    %v2063 = vrsqrt.pop %v2017
    %v2064 = vmul.f32 %v2017, %v2063
    %vm2065 = vcmp.eq.f32.partialorder %v2017, inf
    %v2066 = vsel %vm2065, %v2017, %v2064
    %vm2067 = vcmp.eq.f32.partialorder %v2017, 0.0
    %v2068 = vand.u32 %v2017, 2147483648
    %v2069 = vsel %vm2067, %v2068, %v2066
    %v2070 = vrsqrt.pop %v2020
    %v2071 = vmul.f32 %v2020, %v2070
    %vm2072 = vcmp.eq.f32.partialorder %v2020, inf
    %v2073 = vsel %vm2072, %v2020, %v2071
    %vm2074 = vcmp.eq.f32.partialorder %v2020, 0.0
    %v2075 = vand.u32 %v2020, 2147483648
    %v2076 = vsel %vm2074, %v2075, %v2073
    %v2077 = vtanh.pop %v2027
    %v2078 = vtanh.pop %v2034
    %v2079 = vtanh.pop %v2041
    %v2080 = vtanh.pop %v2048
    %v2081 = vtanh.pop %v2055
    %v2082 = vtanh.pop %v2062
    %v2083 = vtanh.pop %v2069
    %v2084 = vtanh.pop %v2076
    %v2085 = vmax.f32 %v2027, 1e-15
    %v2086 = vmax.f32 %v2034, 1e-15
    %v2087 = vmax.f32 %v2041, 1e-15
    %v2088 = vmax.f32 %v2048, 1e-15
    %v2089 = vmax.f32 %v2055, 1e-15
    %v2090 = vmax.f32 %v2062, 1e-15
    %v2091 = vmax.f32 %v2069, 1e-15
    %v2092 = vmax.f32 %v2076, 1e-15
    %v2093 = vrcp.pop %v2085
    %v2094 = vmul.f32 %v2077, %v2093
    %v2095 = vrcp.pop %v2086
    %v2096 = vmul.f32 %v2078, %v2095
    %v2097 = vrcp.pop %v2087
    %v2098 = vmul.f32 %v2079, %v2097
    %v2099 = vrcp.pop %v2088
    %v2100 = vmul.f32 %v2080, %v2099
    %v2101 = vrcp.pop %v2089
    %v2102 = vmul.f32 %v2081, %v2101
    %v2103 = vrcp.pop %v2090
    %v2104 = vmul.f32 %v2082, %v2103
    %v2105 = vrcp.pop %v2091
    %v2106 = vmul.f32 %v2083, %v2105
    %v2107 = vrcp.pop %v2092
    %v2108 = vmul.f32 %v2084, %v2107
    %v2109 = vmul.f32 %v1981, %v2094
    %v2110 = vmul.f32 %v1982, %v2096
    %v2111 = vmul.f32 %v1983, %v2098
    %v2112 = vmul.f32 %v1984, %v2100
    %v2113 = vmul.f32 %v1985, %v2102
    %v2114 = vmul.f32 %v1986, %v2104
    %v2115 = vmul.f32 %v1987, %v2106
    %v2116 = vmul.f32 %v1988, %v2108
    %vm2117 = vcmp.gt.f32.partialorder %v2077, 0.99999
    %vm2118 = vcmp.gt.f32.partialorder %v2078, 0.99999
    %vm2119 = vcmp.gt.f32.partialorder %v2079, 0.99999
    %vm2120 = vcmp.gt.f32.partialorder %v2080, 0.99999
    %vm2121 = vcmp.gt.f32.partialorder %v2081, 0.99999
    %vm2122 = vcmp.gt.f32.partialorder %v2082, 0.99999
    %vm2123 = vcmp.gt.f32.partialorder %v2083, 0.99999
    %vm2124 = vcmp.gt.f32.partialorder %v2084, 0.99999
    %v2125 = vmax.f32 %v2077, 1e-15
    %v2126 = vmax.f32 %v2078, 1e-15
    %v2127 = vmax.f32 %v2079, 1e-15
    %v2128 = vmax.f32 %v2080, 1e-15
    %v2129 = vmax.f32 %v2081, 1e-15
    %v2130 = vmax.f32 %v2082, 1e-15
    %v2131 = vmax.f32 %v2083, 1e-15
    %v2132 = vmax.f32 %v2084, 1e-15
    %v2133 = vrcp.pop %v2125
    %v2134 = vmul.f32 0.99999, %v2133
    %v2135 = vrcp.pop %v2126
    %v2136 = vmul.f32 0.99999, %v2135
    %v2137 = vrcp.pop %v2127
    %v2138 = vmul.f32 0.99999, %v2137
    %v2139 = vrcp.pop %v2128
    %v2140 = vmul.f32 0.99999, %v2139
    %v2141 = vrcp.pop %v2129
    %v2142 = vmul.f32 0.99999, %v2141
    %v2143 = vrcp.pop %v2130
    %v2144 = vmul.f32 0.99999, %v2143
    %v2145 = vrcp.pop %v2131
    %v2146 = vmul.f32 0.99999, %v2145
    %v2147 = vrcp.pop %v2132
    %v2148 = vmul.f32 0.99999, %v2147
    %v2149 = vsel %vm2117, %v2134, 1.0
    %v2150 = vsel %vm2118, %v2136, 1.0
    %v2151 = vsel %vm2119, %v2138, 1.0
    %v2152 = vsel %vm2120, %v2140, 1.0
    %v2153 = vsel %vm2121, %v2142, 1.0
    %v2154 = vsel %vm2122, %v2144, 1.0
    %v2155 = vsel %vm2123, %v2146, 1.0
    %v2156 = vsel %vm2124, %v2148, 1.0
    %v2157 = vmul.f32 %v2109, %v2149
    %v2158 = vmul.f32 %v2110, %v2150
    %v2159 = vmul.f32 %v2111, %v2151
    %v2160 = vmul.f32 %v2112, %v2152
    %v2161 = vmul.f32 %v2113, %v2153
    %v2162 = vmul.f32 %v2114, %v2154
    %v2163 = vmul.f32 %v2115, %v2155
    %v2164 = vmul.f32 %v2116, %v2156
    %v2165 = vld [vmem:[%s4] sm:$0x1]
    %v2166 = vld [vmem:[#allocation2] sm:$0x1]
    %v2167 = vmul.f32 %v2157, %v2157
    %v2168 = vmul.f32 %v2158, %v2158
    %v2169 = vmul.f32 %v2159, %v2159
    %v2170 = vmul.f32 %v2160, %v2160
    %v2171 = vmul.f32 %v2161, %v2161
    %v2172 = vmul.f32 %v2162, %v2162
    %v2173 = vmul.f32 %v2163, %v2163
    %v2174 = vmul.f32 %v2164, %v2164
    %vm2175 = vcmask 253952
    %v2176 = vsel %vm2175, %v2167, 0.0
    %2177 = vadd.xlane.f32.xlu0 %v2176
    %v2178 = vpop.xlane.xlu0 %2177
    %v2179 = vsel %vm2175, %v2168, 0.0
    %2180 = vadd.xlane.f32.xlu0 %v2179
    %v2181 = vpop.xlane.xlu0 %2180
    %v2182 = vsel %vm2175, %v2169, 0.0
    %2183 = vadd.xlane.f32.xlu0 %v2182
    %v2184 = vpop.xlane.xlu0 %2183
    %v2185 = vsel %vm2175, %v2170, 0.0
    %2186 = vadd.xlane.f32.xlu0 %v2185
    %v2187 = vpop.xlane.xlu0 %2186
    %v2188 = vsel %vm2175, %v2171, 0.0
    %2189 = vadd.xlane.f32.xlu0 %v2188
    %v2190 = vpop.xlane.xlu0 %2189
    %v2191 = vsel %vm2175, %v2172, 0.0
    %2192 = vadd.xlane.f32.xlu0 %v2191
    %v2193 = vpop.xlane.xlu0 %2192
    %v2194 = vsel %vm2175, %v2173, 0.0
    %2195 = vadd.xlane.f32.xlu0 %v2194
    %v2196 = vpop.xlane.xlu0 %2195
    %v2197 = vsel %vm2175, %v2174, 0.0
    %2198 = vadd.xlane.f32.xlu0 %v2197
    %v2199 = vpop.xlane.xlu0 %2198
    %v2200 = vmul.f32 %v2157, %v2165
    %v2201 = vmul.f32 %v2158, %v2165
    %v2202 = vmul.f32 %v2159, %v2165
    %v2203 = vmul.f32 %v2160, %v2165
    %v2204 = vmul.f32 %v2161, %v2165
    %v2205 = vmul.f32 %v2162, %v2165
    %v2206 = vmul.f32 %v2163, %v2165
    %v2207 = vmul.f32 %v2164, %v2165
    %v2208 = vsel %vm2175, %v2200, 0.0
    %2209 = vadd.xlane.f32.xlu0 %v2208
    %v2210 = vpop.xlane.xlu0 %2209
    %v2211 = vsel %vm2175, %v2201, 0.0
    %2212 = vadd.xlane.f32.xlu0 %v2211
    %v2213 = vpop.xlane.xlu0 %2212
    %v2214 = vsel %vm2175, %v2202, 0.0
    %2215 = vadd.xlane.f32.xlu0 %v2214
    %v2216 = vpop.xlane.xlu0 %2215
    %v2217 = vsel %vm2175, %v2203, 0.0
    %2218 = vadd.xlane.f32.xlu0 %v2217
    %v2219 = vpop.xlane.xlu0 %2218
    %v2220 = vsel %vm2175, %v2204, 0.0
    %2221 = vadd.xlane.f32.xlu0 %v2220
    %v2222 = vpop.xlane.xlu0 %2221
    %v2223 = vsel %vm2175, %v2205, 0.0
    %2224 = vadd.xlane.f32.xlu0 %v2223
    %v2225 = vpop.xlane.xlu0 %2224
    %v2226 = vsel %vm2175, %v2206, 0.0
    %2227 = vadd.xlane.f32.xlu0 %v2226
    %v2228 = vpop.xlane.xlu0 %2227
    %v2229 = vsel %vm2175, %v2207, 0.0
    %2230 = vadd.xlane.f32.xlu0 %v2229
    %v2231 = vpop.xlane.xlu0 %2230
    %v2232 = vmul.f32 %v2210, 2.0
    %v2233 = vmul.f32 %v2213, 2.0
    %v2234 = vmul.f32 %v2216, 2.0
    %v2235 = vmul.f32 %v2219, 2.0
    %v2236 = vmul.f32 %v2222, 2.0
    %v2237 = vmul.f32 %v2225, 2.0
    %v2238 = vmul.f32 %v2228, 2.0
    %v2239 = vmul.f32 %v2231, 2.0
    %v2240 = vadd.f32 %v2232, 1.0
    %v2241 = vadd.f32 %v2233, 1.0
    %v2242 = vadd.f32 %v2234, 1.0
    %v2243 = vadd.f32 %v2235, 1.0
    %v2244 = vadd.f32 %v2236, 1.0
    %v2245 = vadd.f32 %v2237, 1.0
    %v2246 = vadd.f32 %v2238, 1.0
    %v2247 = vadd.f32 %v2239, 1.0
    %v2248 = vadd.f32 %v2240, %v2166
    %v2249 = vadd.f32 %v2241, %v2166
    %v2250 = vadd.f32 %v2242, %v2166
    %v2251 = vadd.f32 %v2243, %v2166
    %v2252 = vadd.f32 %v2244, %v2166
    %v2253 = vadd.f32 %v2245, %v2166
    %v2254 = vadd.f32 %v2246, %v2166
    %v2255 = vadd.f32 %v2247, %v2166
    %2257 = vset.pattern.permute.xlu0 0
    %2258 = vperm.xlu0 %2257, %v2248
    %v2259 = vpop.permute.xlu0 %2258
    %2262 = vset.pattern.permute.xlu0 0
    %2263 = vperm.xlu0 %2262, %v2249
    %v2264 = vpop.permute.xlu0 %2263
    %2267 = vset.pattern.permute.xlu0 0
    %2268 = vperm.xlu0 %2267, %v2250
    %v2269 = vpop.permute.xlu0 %2268
    %2272 = vset.pattern.permute.xlu0 0
    %2273 = vperm.xlu0 %2272, %v2251
    %v2274 = vpop.permute.xlu0 %2273
    %2277 = vset.pattern.permute.xlu0 0
    %2278 = vperm.xlu0 %2277, %v2252
    %v2279 = vpop.permute.xlu0 %2278
    %2282 = vset.pattern.permute.xlu0 0
    %2283 = vperm.xlu0 %2282, %v2253
    %v2284 = vpop.permute.xlu0 %2283
    %2287 = vset.pattern.permute.xlu0 0
    %2288 = vperm.xlu0 %2287, %v2254
    %v2289 = vpop.permute.xlu0 %2288
    %2292 = vset.pattern.permute.xlu0 0
    %2293 = vperm.xlu0 %2292, %v2255
    %v2294 = vpop.permute.xlu0 %2293
    %v2296 = vmul.f32 %v2259, %v2157
    %v2297 = vmul.f32 %v2264, %v2158
    %v2298 = vmul.f32 %v2269, %v2159
    %v2299 = vmul.f32 %v2274, %v2160
    %v2300 = vmul.f32 %v2279, %v2161
    %v2301 = vmul.f32 %v2284, %v2162
    %v2302 = vmul.f32 %v2289, %v2163
    %v2303 = vmul.f32 %v2294, %v2164
    %v2304 = vsub.f32 1.0, %v2178
    %v2305 = vsub.f32 1.0, %v2181
    %v2306 = vsub.f32 1.0, %v2184
    %v2307 = vsub.f32 1.0, %v2187
    %v2308 = vsub.f32 1.0, %v2190
    %v2309 = vsub.f32 1.0, %v2193
    %v2310 = vsub.f32 1.0, %v2196
    %v2311 = vsub.f32 1.0, %v2199
    %v2312 = vmul.f32 %v2304, %v2165
    %v2313 = vmul.f32 %v2305, %v2165
    %v2314 = vmul.f32 %v2306, %v2165
    %v2315 = vmul.f32 %v2307, %v2165
    %v2316 = vmul.f32 %v2308, %v2165
    %v2317 = vmul.f32 %v2309, %v2165
    %v2318 = vmul.f32 %v2310, %v2165
    %v2319 = vmul.f32 %v2311, %v2165
    %v2320 = vadd.f32 %v2296, %v2312
    %v2321 = vadd.f32 %v2297, %v2313
    %v2322 = vadd.f32 %v2298, %v2314
    %v2323 = vadd.f32 %v2299, %v2315
    %v2324 = vadd.f32 %v2300, %v2316
    %v2325 = vadd.f32 %v2301, %v2317
    %v2326 = vadd.f32 %v2302, %v2318
    %v2327 = vadd.f32 %v2303, %v2319
    %v2328 = vmul.f32 %v2178, %v2166
    %v2329 = vmul.f32 %v2181, %v2166
    %v2330 = vmul.f32 %v2184, %v2166
    %v2331 = vmul.f32 %v2187, %v2166
    %v2332 = vmul.f32 %v2190, %v2166
    %v2333 = vmul.f32 %v2193, %v2166
    %v2334 = vmul.f32 %v2196, %v2166
    %v2335 = vmul.f32 %v2199, %v2166
    %v2336 = vadd.f32 %v2240, %v2328
    %v2337 = vadd.f32 %v2241, %v2329
    %v2338 = vadd.f32 %v2242, %v2330
    %v2339 = vadd.f32 %v2243, %v2331
    %v2340 = vadd.f32 %v2244, %v2332
    %v2341 = vadd.f32 %v2245, %v2333
    %v2342 = vadd.f32 %v2246, %v2334
    %v2343 = vadd.f32 %v2247, %v2335
    %v2344 = vmax.f32 %v2336, 1e-15
    %v2345 = vmax.f32 %v2337, 1e-15
    %v2346 = vmax.f32 %v2338, 1e-15
    %v2347 = vmax.f32 %v2339, 1e-15
    %v2348 = vmax.f32 %v2340, 1e-15
    %v2349 = vmax.f32 %v2341, 1e-15
    %v2350 = vmax.f32 %v2342, 1e-15
    %v2351 = vmax.f32 %v2343, 1e-15
    %v2352 = vrcp.pop %v2344
    %v2353 = vmul.f32 1.0, %v2352
    %v2354 = vrcp.pop %v2345
    %v2355 = vmul.f32 1.0, %v2354
    %v2356 = vrcp.pop %v2346
    %v2357 = vmul.f32 1.0, %v2356
    %v2358 = vrcp.pop %v2347
    %v2359 = vmul.f32 1.0, %v2358
    %v2360 = vrcp.pop %v2348
    %v2361 = vmul.f32 1.0, %v2360
    %v2362 = vrcp.pop %v2349
    %v2363 = vmul.f32 1.0, %v2362
    %v2364 = vrcp.pop %v2350
    %v2365 = vmul.f32 1.0, %v2364
    %v2366 = vrcp.pop %v2351
    %v2367 = vmul.f32 1.0, %v2366
    %2369 = vset.pattern.permute.xlu0 0
    %2370 = vperm.xlu0 %2369, %v2353
    %v2371 = vpop.permute.xlu0 %2370
    %2374 = vset.pattern.permute.xlu0 0
    %2375 = vperm.xlu0 %2374, %v2355
    %v2376 = vpop.permute.xlu0 %2375
    %2379 = vset.pattern.permute.xlu0 0
    %2380 = vperm.xlu0 %2379, %v2357
    %v2381 = vpop.permute.xlu0 %2380
    %2384 = vset.pattern.permute.xlu0 0
    %2385 = vperm.xlu0 %2384, %v2359
    %v2386 = vpop.permute.xlu0 %2385
    %2389 = vset.pattern.permute.xlu0 0
    %2390 = vperm.xlu0 %2389, %v2361
    %v2391 = vpop.permute.xlu0 %2390
    %2394 = vset.pattern.permute.xlu0 0
    %2395 = vperm.xlu0 %2394, %v2363
    %v2396 = vpop.permute.xlu0 %2395
    %2399 = vset.pattern.permute.xlu0 0
    %2400 = vperm.xlu0 %2399, %v2365
    %v2401 = vpop.permute.xlu0 %2400
    %2404 = vset.pattern.permute.xlu0 0
    %2405 = vperm.xlu0 %2404, %v2367
    %v2406 = vpop.permute.xlu0 %2405
    %v2408 = vmul.f32 %v2320, %v2371
    %v2409 = vmul.f32 %v2321, %v2376
    %v2410 = vmul.f32 %v2322, %v2381
    %v2411 = vmul.f32 %v2323, %v2386
    %v2412 = vmul.f32 %v2324, %v2391
    %v2413 = vmul.f32 %v2325, %v2396
    %v2414 = vmul.f32 %v2326, %v2401
    %v2415 = vmul.f32 %v2327, %v2406
    %v2416 = vmul.f32 %v2408, %v2408
    %v2417 = vmul.f32 %v2409, %v2409
    %v2418 = vmul.f32 %v2410, %v2410
    %v2419 = vmul.f32 %v2411, %v2411
    %v2420 = vmul.f32 %v2412, %v2412
    %v2421 = vmul.f32 %v2413, %v2413
    %v2422 = vmul.f32 %v2414, %v2414
    %v2423 = vmul.f32 %v2415, %v2415
    %v2424 = vsel %vm2175, %v2416, 0.0
    %2425 = vadd.xlane.f32.xlu0 %v2424
    %v2426 = vpop.xlane.xlu0 %2425
    %v2427 = vsel %vm2175, %v2417, 0.0
    %2428 = vadd.xlane.f32.xlu0 %v2427
    %v2429 = vpop.xlane.xlu0 %2428
    %v2430 = vsel %vm2175, %v2418, 0.0
    %2431 = vadd.xlane.f32.xlu0 %v2430
    %v2432 = vpop.xlane.xlu0 %2431
    %v2433 = vsel %vm2175, %v2419, 0.0
    %2434 = vadd.xlane.f32.xlu0 %v2433
    %v2435 = vpop.xlane.xlu0 %2434
    %v2436 = vsel %vm2175, %v2420, 0.0
    %2437 = vadd.xlane.f32.xlu0 %v2436
    %v2438 = vpop.xlane.xlu0 %2437
    %v2439 = vsel %vm2175, %v2421, 0.0
    %2440 = vadd.xlane.f32.xlu0 %v2439
    %v2441 = vpop.xlane.xlu0 %2440
    %v2442 = vsel %vm2175, %v2422, 0.0
    %2443 = vadd.xlane.f32.xlu0 %v2442
    %v2444 = vpop.xlane.xlu0 %2443
    %v2445 = vsel %vm2175, %v2423, 0.0
    %2446 = vadd.xlane.f32.xlu0 %v2445
    %v2447 = vpop.xlane.xlu0 %2446
    %v2448 = vsel %vm43, %v2167, 0.0
    %2449 = vadd.xlane.f32.xlu0 %v2448
    %v2450 = vpop.xlane.xlu0 %2449
    %v2451 = vsel %vm43, %v2168, 0.0
    %2452 = vadd.xlane.f32.xlu0 %v2451
    %v2453 = vpop.xlane.xlu0 %2452
    %v2454 = vsel %vm43, %v2169, 0.0
    %2455 = vadd.xlane.f32.xlu0 %v2454
    %v2456 = vpop.xlane.xlu0 %2455
    %v2457 = vsel %vm43, %v2170, 0.0
    %2458 = vadd.xlane.f32.xlu0 %v2457
    %v2459 = vpop.xlane.xlu0 %2458
    %v2460 = vsel %vm43, %v2171, 0.0
    %2461 = vadd.xlane.f32.xlu0 %v2460
    %v2462 = vpop.xlane.xlu0 %2461
    %v2463 = vsel %vm43, %v2172, 0.0
    %2464 = vadd.xlane.f32.xlu0 %v2463
    %v2465 = vpop.xlane.xlu0 %2464
    %v2466 = vsel %vm43, %v2173, 0.0
    %2467 = vadd.xlane.f32.xlu0 %v2466
    %v2468 = vpop.xlane.xlu0 %2467
    %v2469 = vsel %vm43, %v2174, 0.0
    %2470 = vadd.xlane.f32.xlu0 %v2469
    %v2471 = vpop.xlane.xlu0 %2470
    %v2472 = vlaneseq
    %v2473 = vshrl.u32 %v2472, 7
    %v2474 = vsub.s32 0, %v2473
    %v2475 = vrot.slane %v2408, %v2474
    %v2476 = vlaneseq
    %v2477 = vshrl.u32 %v2476, 7
    %v2478 = vsub.s32 0, %v2477
    %v2479 = vrot.slane %v2409, %v2478
    %v2480 = vlaneseq
    %v2481 = vshrl.u32 %v2480, 7
    %v2482 = vsub.s32 0, %v2481
    %v2483 = vrot.slane %v2410, %v2482
    %v2484 = vlaneseq
    %v2485 = vshrl.u32 %v2484, 7
    %v2486 = vsub.s32 0, %v2485
    %v2487 = vrot.slane %v2411, %v2486
    %v2488 = vlaneseq
    %v2489 = vshrl.u32 %v2488, 7
    %v2490 = vsub.s32 0, %v2489
    %v2491 = vrot.slane %v2412, %v2490
    %v2492 = vlaneseq
    %v2493 = vshrl.u32 %v2492, 7
    %v2494 = vsub.s32 0, %v2493
    %v2495 = vrot.slane %v2413, %v2494
    %v2496 = vlaneseq
    %v2497 = vshrl.u32 %v2496, 7
    %v2498 = vsub.s32 0, %v2497
    %v2499 = vrot.slane %v2414, %v2498
    %v2500 = vlaneseq
    %v2501 = vshrl.u32 %v2500, 7
    %v2502 = vsub.s32 0, %v2501
    %v2503 = vrot.slane %v2415, %v2502
    %v2504 = vsub.f32 %v2475, %v2157
    %v2505 = vsub.f32 %v2479, %v2158
    %v2506 = vsub.f32 %v2483, %v2159
    %v2507 = vsub.f32 %v2487, %v2160
    %v2508 = vsub.f32 %v2491, %v2161
    %v2509 = vsub.f32 %v2495, %v2162
    %v2510 = vsub.f32 %v2499, %v2163
    %v2511 = vsub.f32 %v2503, %v2164
    %v2512 = vmul.f32 %v2504, %v2504
    %v2513 = vmul.f32 %v2505, %v2505
    %v2514 = vmul.f32 %v2506, %v2506
    %v2515 = vmul.f32 %v2507, %v2507
    %v2516 = vmul.f32 %v2508, %v2508
    %v2517 = vmul.f32 %v2509, %v2509
    %v2518 = vmul.f32 %v2510, %v2510
    %v2519 = vmul.f32 %v2511, %v2511
    %v2520 = vsel %vm43, %v2512, 0.0
    %2521 = vadd.xlane.f32.xlu0 %v2520
    %v2522 = vpop.xlane.xlu0 %2521
    %v2523 = vsel %vm43, %v2513, 0.0
    %2524 = vadd.xlane.f32.xlu0 %v2523
    %v2525 = vpop.xlane.xlu0 %2524
    %v2526 = vsel %vm43, %v2514, 0.0
    %2527 = vadd.xlane.f32.xlu0 %v2526
    %v2528 = vpop.xlane.xlu0 %2527
    %v2529 = vsel %vm43, %v2515, 0.0
    %2530 = vadd.xlane.f32.xlu0 %v2529
    %v2531 = vpop.xlane.xlu0 %2530
    %v2532 = vsel %vm43, %v2516, 0.0
    %2533 = vadd.xlane.f32.xlu0 %v2532
    %v2534 = vpop.xlane.xlu0 %2533
    %v2535 = vsel %vm43, %v2517, 0.0
    %2536 = vadd.xlane.f32.xlu0 %v2535
    %v2537 = vpop.xlane.xlu0 %2536
    %v2538 = vsel %vm43, %v2518, 0.0
    %2539 = vadd.xlane.f32.xlu0 %v2538
    %v2540 = vpop.xlane.xlu0 %2539
    %v2541 = vsel %vm43, %v2519, 0.0
    %2542 = vadd.xlane.f32.xlu0 %v2541
    %v2543 = vpop.xlane.xlu0 %2542
    %v2544 = vsub.f32 1.0, %v2426
    %v2545 = vsub.f32 1.0, %v2429
    %v2546 = vsub.f32 1.0, %v2432
    %v2547 = vsub.f32 1.0, %v2435
    %v2548 = vsub.f32 1.0, %v2438
    %v2549 = vsub.f32 1.0, %v2441
    %v2550 = vsub.f32 1.0, %v2444
    %v2551 = vsub.f32 1.0, %v2447
    %v2552 = vsub.f32 1.0, %v2450
    %v2553 = vsub.f32 1.0, %v2453
    %v2554 = vsub.f32 1.0, %v2456
    %v2555 = vsub.f32 1.0, %v2459
    %v2556 = vsub.f32 1.0, %v2462
    %v2557 = vsub.f32 1.0, %v2465
    %v2558 = vsub.f32 1.0, %v2468
    %v2559 = vsub.f32 1.0, %v2471
    %v2560 = vlaneseq
    %v2561 = vshrl.u32 %v2560, 7
    %v2562 = vsub.s32 0, %v2561
    %v2563 = vrot.slane %v2544, %v2562
    %v2564 = vlaneseq
    %v2565 = vshrl.u32 %v2564, 7
    %v2566 = vsub.s32 0, %v2565
    %v2567 = vrot.slane %v2545, %v2566
    %v2568 = vlaneseq
    %v2569 = vshrl.u32 %v2568, 7
    %v2570 = vsub.s32 0, %v2569
    %v2571 = vrot.slane %v2546, %v2570
    %v2572 = vlaneseq
    %v2573 = vshrl.u32 %v2572, 7
    %v2574 = vsub.s32 0, %v2573
    %v2575 = vrot.slane %v2547, %v2574
    %v2576 = vlaneseq
    %v2577 = vshrl.u32 %v2576, 7
    %v2578 = vsub.s32 0, %v2577
    %v2579 = vrot.slane %v2548, %v2578
    %v2580 = vlaneseq
    %v2581 = vshrl.u32 %v2580, 7
    %v2582 = vsub.s32 0, %v2581
    %v2583 = vrot.slane %v2549, %v2582
    %v2584 = vlaneseq
    %v2585 = vshrl.u32 %v2584, 7
    %v2586 = vsub.s32 0, %v2585
    %v2587 = vrot.slane %v2550, %v2586
    %v2588 = vlaneseq
    %v2589 = vshrl.u32 %v2588, 7
    %v2590 = vsub.s32 0, %v2589
    %v2591 = vrot.slane %v2551, %v2590
    %v2592 = vmul.f32 %v2563, %v2552
    %v2593 = vmul.f32 %v2567, %v2553
    %v2594 = vmul.f32 %v2571, %v2554
    %v2595 = vmul.f32 %v2575, %v2555
    %v2596 = vmul.f32 %v2579, %v2556
    %v2597 = vmul.f32 %v2583, %v2557
    %v2598 = vmul.f32 %v2587, %v2558
    %v2599 = vmul.f32 %v2591, %v2559
    %v2600 = vmax.f32 %v2592, 1e-15
    %v2601 = vmax.f32 %v2593, 1e-15
    %v2602 = vmax.f32 %v2594, 1e-15
    %v2603 = vmax.f32 %v2595, 1e-15
    %v2604 = vmax.f32 %v2596, 1e-15
    %v2605 = vmax.f32 %v2597, 1e-15
    %v2606 = vmax.f32 %v2598, 1e-15
    %v2607 = vmax.f32 %v2599, 1e-15
    %v2608 = vmul.f32 %v2522, 2.0
    %v2609 = vmul.f32 %v2525, 2.0
    %v2610 = vmul.f32 %v2528, 2.0
    %v2611 = vmul.f32 %v2531, 2.0
    %v2612 = vmul.f32 %v2534, 2.0
    %v2613 = vmul.f32 %v2537, 2.0
    %v2614 = vmul.f32 %v2540, 2.0
    %v2615 = vmul.f32 %v2543, 2.0
    %v2616 = vrcp.pop %v2600
    %v2617 = vrcp.pop %v2601
    %v2618 = vrcp.pop %v2602
    %v2619 = vrcp.pop %v2603
    %v2620 = vrcp.pop %v2604
    %v2621 = vrcp.pop %v2605
    %v2622 = vrcp.pop %v2606
    %v2623 = vrcp.pop %v2607
    %v2624 = vmul.f32 %v2608, %v2616
    %v2625 = vmul.f32 %v2609, %v2617
    %v2626 = vmul.f32 %v2610, %v2618
    %v2627 = vmul.f32 %v2611, %v2619
    %v2628 = vmul.f32 %v2612, %v2620
    %v2629 = vmul.f32 %v2613, %v2621
    %v2630 = vmul.f32 %v2614, %v2622
    %v2631 = vmul.f32 %v2615, %v2623
    %v2632 = vmax.f32 %v2624, 1e-07
    %v2633 = vmax.f32 %v2625, 1e-07
    %v2634 = vmax.f32 %v2626, 1e-07
    %v2635 = vmax.f32 %v2627, 1e-07
    %v2636 = vmax.f32 %v2628, 1e-07
    %v2637 = vmax.f32 %v2629, 1e-07
    %v2638 = vmax.f32 %v2630, 1e-07
    %v2639 = vmax.f32 %v2631, 1e-07
    %v2640 = vadd.f32 %v2632, 1.0
    %v2641 = vadd.f32 %v2633, 1.0
    %v2642 = vadd.f32 %v2634, 1.0
    %v2643 = vadd.f32 %v2635, 1.0
    %v2644 = vadd.f32 %v2636, 1.0
    %v2645 = vadd.f32 %v2637, 1.0
    %v2646 = vadd.f32 %v2638, 1.0
    %v2647 = vadd.f32 %v2639, 1.0
    %v2648 = vadd.f32 %v2632, 2.0
    %v2649 = vadd.f32 %v2633, 2.0
    %v2650 = vadd.f32 %v2634, 2.0
    %v2651 = vadd.f32 %v2635, 2.0
    %v2652 = vadd.f32 %v2636, 2.0
    %v2653 = vadd.f32 %v2637, 2.0
    %v2654 = vadd.f32 %v2638, 2.0
    %v2655 = vadd.f32 %v2639, 2.0
    %v2656 = vmul.f32 %v2632, %v2648
    %v2657 = vmul.f32 %v2633, %v2649
    %v2658 = vmul.f32 %v2634, %v2650
    %v2659 = vmul.f32 %v2635, %v2651
    %v2660 = vmul.f32 %v2636, %v2652
    %v2661 = vmul.f32 %v2637, %v2653
    %v2662 = vmul.f32 %v2638, %v2654
    %v2663 = vmul.f32 %v2639, %v2655
    %v2664 = vrsqrt.pop %v2656
    %v2665 = vmul.f32 %v2656, %v2664
    %vm2666 = vcmp.eq.f32.partialorder %v2656, inf
    %v2667 = vsel %vm2666, %v2656, %v2665
    %vm2668 = vcmp.eq.f32.partialorder %v2656, 0.0
    %v2669 = vand.u32 %v2656, 2147483648
    %v2670 = vsel %vm2668, %v2669, %v2667
    %v2671 = vrsqrt.pop %v2657
    %v2672 = vmul.f32 %v2657, %v2671
    %vm2673 = vcmp.eq.f32.partialorder %v2657, inf
    %v2674 = vsel %vm2673, %v2657, %v2672
    %vm2675 = vcmp.eq.f32.partialorder %v2657, 0.0
    %v2676 = vand.u32 %v2657, 2147483648
    %v2677 = vsel %vm2675, %v2676, %v2674
    %v2678 = vrsqrt.pop %v2658
    %v2679 = vmul.f32 %v2658, %v2678
    %vm2680 = vcmp.eq.f32.partialorder %v2658, inf
    %v2681 = vsel %vm2680, %v2658, %v2679
    %vm2682 = vcmp.eq.f32.partialorder %v2658, 0.0
    %v2683 = vand.u32 %v2658, 2147483648
    %v2684 = vsel %vm2682, %v2683, %v2681
    %v2685 = vrsqrt.pop %v2659
    %v2686 = vmul.f32 %v2659, %v2685
    %vm2687 = vcmp.eq.f32.partialorder %v2659, inf
    %v2688 = vsel %vm2687, %v2659, %v2686
    %vm2689 = vcmp.eq.f32.partialorder %v2659, 0.0
    %v2690 = vand.u32 %v2659, 2147483648
    %v2691 = vsel %vm2689, %v2690, %v2688
    %v2692 = vrsqrt.pop %v2660
    %v2693 = vmul.f32 %v2660, %v2692
    %vm2694 = vcmp.eq.f32.partialorder %v2660, inf
    %v2695 = vsel %vm2694, %v2660, %v2693
    %vm2696 = vcmp.eq.f32.partialorder %v2660, 0.0
    %v2697 = vand.u32 %v2660, 2147483648
    %v2698 = vsel %vm2696, %v2697, %v2695
    %v2699 = vrsqrt.pop %v2661
    %v2700 = vmul.f32 %v2661, %v2699
    %vm2701 = vcmp.eq.f32.partialorder %v2661, inf
    %v2702 = vsel %vm2701, %v2661, %v2700
    %vm2703 = vcmp.eq.f32.partialorder %v2661, 0.0
    %v2704 = vand.u32 %v2661, 2147483648
    %v2705 = vsel %vm2703, %v2704, %v2702
    %v2706 = vrsqrt.pop %v2662
    %v2707 = vmul.f32 %v2662, %v2706
    %vm2708 = vcmp.eq.f32.partialorder %v2662, inf
    %v2709 = vsel %vm2708, %v2662, %v2707
    %vm2710 = vcmp.eq.f32.partialorder %v2662, 0.0
    %v2711 = vand.u32 %v2662, 2147483648
    %v2712 = vsel %vm2710, %v2711, %v2709
    %v2713 = vrsqrt.pop %v2663
    %v2714 = vmul.f32 %v2663, %v2713
    %vm2715 = vcmp.eq.f32.partialorder %v2663, inf
    %v2716 = vsel %vm2715, %v2663, %v2714
    %vm2717 = vcmp.eq.f32.partialorder %v2663, 0.0
    %v2718 = vand.u32 %v2663, 2147483648
    %v2719 = vsel %vm2717, %v2718, %v2716
    %v2720 = vadd.f32 %v2640, %v2670
    %v2721 = vadd.f32 %v2641, %v2677
    %v2722 = vadd.f32 %v2642, %v2684
    %v2723 = vadd.f32 %v2643, %v2691
    %v2724 = vadd.f32 %v2644, %v2698
    %v2725 = vadd.f32 %v2645, %v2705
    %v2726 = vadd.f32 %v2646, %v2712
    %v2727 = vadd.f32 %v2647, %v2719
    %v2728 = vlog2.pop %v2720
    %v2729 = vmul.f32 %v2728, 0.6931472
    %v2730 = vlog2.pop %v2721
    %v2731 = vmul.f32 %v2730, 0.6931472
    %v2732 = vlog2.pop %v2722
    %v2733 = vmul.f32 %v2732, 0.6931472
    %v2734 = vlog2.pop %v2723
    %v2735 = vmul.f32 %v2734, 0.6931472
    %v2736 = vlog2.pop %v2724
    %v2737 = vmul.f32 %v2736, 0.6931472
    %v2738 = vlog2.pop %v2725
    %v2739 = vmul.f32 %v2738, 0.6931472
    %v2740 = vlog2.pop %v2726
    %v2741 = vmul.f32 %v2740, 0.6931472
    %v2742 = vlog2.pop %v2727
    %v2743 = vmul.f32 %v2742, 0.6931472
    %v2752 = vlaneseq
    %v2753 = vand.u32 %v2752, 127
    %v2754 = vlaneseq
    %v2755 = vshrl.u32 %v2754, 7
    %v2756 = vsub.s32 %v2753, %v2755
    %v2757 = vrot.slane %v2729, %v2756
    %v2758 = vlaneseq
    %v2759 = vshrl.u32 %v2758, 7
    %v2760 = vsub.s32 %v2753, %v2759
    %v2761 = vrot.slane %v2731, %v2760
    %v2762 = vlaneseq
    %v2763 = vshrl.u32 %v2762, 7
    %v2764 = vsub.s32 %v2753, %v2763
    %v2765 = vrot.slane %v2733, %v2764
    %v2766 = vlaneseq
    %v2767 = vshrl.u32 %v2766, 7
    %v2768 = vsub.s32 %v2753, %v2767
    %v2769 = vrot.slane %v2735, %v2768
    %v2770 = vlaneseq
    %v2771 = vshrl.u32 %v2770, 7
    %v2772 = vsub.s32 %v2753, %v2771
    %v2773 = vrot.slane %v2737, %v2772
    %v2774 = vlaneseq
    %v2775 = vshrl.u32 %v2774, 7
    %v2776 = vsub.s32 %v2753, %v2775
    %v2777 = vrot.slane %v2739, %v2776
    %v2778 = vlaneseq
    %v2779 = vshrl.u32 %v2778, 7
    %v2780 = vsub.s32 %v2753, %v2779
    %v2781 = vrot.slane %v2741, %v2780
    %v2782 = vlaneseq
    %v2783 = vshrl.u32 %v2782, 7
    %v2784 = vsub.s32 %v2753, %v2783
    %v2785 = vrot.slane %v2743, %v2784
    %vm2786 = vcmask 1041409
    %v2787 = vsel %vm2786, %v2761, %v2757
    %vm2788 = vcmask 1042434
    %v2789 = vsel %vm2788, %v2765, %v2787
    %vm2790 = vcmask 1043459
    %v2791 = vsel %vm2790, %v2769, %v2789
    %vm2792 = vcmask 1044484
    %v2793 = vsel %vm2792, %v2773, %v2791
    %vm2794 = vcmask 1045509
    %v2795 = vsel %vm2794, %v2777, %v2793
    %vm2796 = vcmask 1046534
    %v2797 = vsel %vm2796, %v2781, %v2795
    %vm2798 = vcmask 1047559
    %v2799 = vsel %vm2798, %v2785, %v2797
    %vm2801 = vcmask 64512
    %2802 = vst.msk [vmem:[#allocation3] sm:$0xff] %vm2801, %v2799
    // Predicated region
    $region26: #{tpu_custom_call.1} parent=1 // pred_check
      _
    $region27: #{tpu_custom_call.1} parent=1 // pred_check_branch
      %2804 = sbr.rel (0) target = $region29
    $region28: #{tpu_custom_call.1} parent=1 // pred_region
      %s2806 = ssub.s32 128, 128
      %2807 = vsyncadd [#allocation4], %s2806
      %s2809 = sshll.u32 [#allocation3], 4
      %s2810 = int_to_ptr.vmem [resolvable:$true] %s2809
      %2812 = dma.vmem_to_hbm [thread:$0]  %s2810, 128, %s6, [#allocation4]
    $region29: #{tpu_custom_call.1} parent=1 // pred_fallthru
      _
    // Predicated region
    $region30: #{tpu_custom_call.1} parent=1 // pred_check
      _
    $region31: #{tpu_custom_call.1} parent=1 // pred_check_branch
      %2814 = sbr.rel (0) target = $region33
    $region32: #{tpu_custom_call.1} parent=1 // pred_region
      %2815 = dma.done [#allocation4], 128
    $region33: #{tpu_custom_call.1} parent=1 // pred_fallthru
      _
    %2816 = vsyncpa [#allocation4], 1

</llo_original>
